<compile_context>
chip_gen: v6e
topology: v6e:2x2x1
jax: 0.10.0
libtpu: 0.0.40
codegen_flags: <defaults>
</compile_context>

<pallas_src>
import functools

import jax
import jax.numpy as jnp
from jax.experimental import pallas as pl
from jax.experimental.pallas import tpu as pltpu

IN_DIM = 2000      # real input features
IN_PAD = 2048      # padded layer-1 K (multiple of TK)
HID_DIM = 1024
OUT_DIM = 2
OUT_PAD = 128      # 2 -> 128: lane-dense output stores, sliced in the wrapper

TK = 512           # layer-1 K chunk streamed per grid step (1 MiB bf16 of W1)
NK = IN_PAD // TK  # 4 K steps per batch tile
_N_FULL = IN_DIM // TK         # 3 full TK-wide chunks of real x columns
_REM = IN_DIM - _N_FULL * TK   # 464 real columns in the last (padded) chunk


def _silu(x):
    # SiLU(x) = x * sigmoid(x): sigmoid -> EUP slot, mul -> VPU; both are
    # filler next to the MXU / DMA work.
    return x * jax.nn.sigmoid(x)


def mlp_kernel(x_ref, w1_ref, b1_ref, w2_ref, b2_ref, w3_ref, b3_ref,
               o_ref, xpad_ref, acc_ref):
    k = pl.program_id(1)
    nk = pl.num_programs(1)

    @pl.when(k == 0)
    def _():
        # Once per batch tile: cast the f32 activations to bf16 and zero-pad
        # the feature dim 2000 -> 2048, staged as NK lane-aligned (tb, TK)
        # chunks so every K step feeds the MXU an aligned full-tile slab.
        for c in range(_N_FULL):
            xpad_ref[c] = x_ref[:, c * TK:(c + 1) * TK].astype(jnp.bfloat16)
        if _REM:
            xpad_ref[_N_FULL] = jnp.zeros(xpad_ref.shape[1:], dtype=xpad_ref.dtype)
            xpad_ref[_N_FULL, :, :_REM] = (
                x_ref[:, _N_FULL * TK:].astype(jnp.bfloat16))
        acc_ref[...] = jnp.zeros_like(acc_ref)

    # Layer-1 partial product for this K chunk: (tb, TK) @ (TK, 1024), f32 acc.
    # The next W1 chunk's DMA is prefetched by the pipeline while this runs.
    acc_ref[...] += jnp.dot(xpad_ref[k], w1_ref[...],
                            preferred_element_type=jnp.float32)

    @pl.when(k == nk - 1)
    def _():
        # Finalize: bias + SiLU, then layers 2 and 3 (their weights are small,
        # constant-index blocks resident in VMEM).
        h = _silu(acc_ref[...] + b1_ref[...])
        h = jnp.dot(h.astype(jnp.bfloat16), w2_ref[...],
                    preferred_element_type=jnp.float32)
        h = _silu(h + b2_ref[...])
        o_ref[...] = (
            jnp.dot(h.astype(jnp.bfloat16), w3_ref[...],
                    preferred_element_type=jnp.float32)
            + b3_ref[...]
        )


def _round_up(n, m):
    return (n + m - 1) // m * m


@functools.partial(jax.jit, static_argnames=("tb_max",))
def model_forward(x, params, *, tb_max=256):
    """Fused 3-layer MLP forward. x: (B, 2000) -> (B, 2) f32.

    tb_max=256 is a safe default on all generations; v6e can pass 512.
    """
    w1, b1, w2, b2, w3, b3 = params
    x = x.astype(jnp.float32)                 # matches `x.float()` in PyTorch
    B = x.shape[0]

    # Batch tile: whole (padded) batch for small B, capped at tb_max.
    # Rounded to 16 so bf16 intermediates are fully sublane-packed.
    tb = min(_round_up(B, 16), tb_max)
    Bp = _round_up(B, tb)
    if Bp != B:
        x = jnp.pad(x, ((0, Bp - B), (0, 0)))   # zero rows; sliced off below

    grid = (Bp // tb, NK)

    n_weight_elems = IN_PAD * HID_DIM + HID_DIM * HID_DIM + HID_DIM * OUT_PAD
    cost = pl.CostEstimate(
        flops=2 * Bp * n_weight_elems,
        transcendentals=2 * Bp * HID_DIM,                 # two SiLU layers
        bytes_accessed=(Bp * IN_DIM * 4 + Bp * OUT_PAD * 4
                        + 2 * n_weight_elems              # bf16 weights
                        + 4 * (2 * HID_DIM + OUT_PAD)),   # f32 biases
    )

    out = pl.pallas_call(
        mlp_kernel,
        out_shape=jax.ShapeDtypeStruct((Bp, OUT_PAD), jnp.float32),
        grid_spec=pltpu.PrefetchScalarGridSpec(
            num_scalar_prefetch=0,
            grid=grid,
            in_specs=[
                # activations: unpadded f32, full feature dim, constant in k
                pl.BlockSpec((tb, IN_DIM), lambda i, k: (i, 0)),
                # W1: streamed over K -> DMA overlaps the partial matmuls
                pl.BlockSpec((TK, HID_DIM), lambda i, k: (k, 0)),
                # constant blocks (fetched once; ~2.5 MiB total, VMEM-resident)
                pl.BlockSpec((1, HID_DIM), lambda i, k: (0, 0)),
                pl.BlockSpec((HID_DIM, HID_DIM), lambda i, k: (0, 0)),
                pl.BlockSpec((1, HID_DIM), lambda i, k: (0, 0)),
                pl.BlockSpec((HID_DIM, OUT_PAD), lambda i, k: (0, 0)),
                pl.BlockSpec((1, OUT_PAD), lambda i, k: (0, 0)),
            ],
            out_specs=pl.BlockSpec((tb, OUT_PAD), lambda i, k: (i, 0)),
            scratch_shapes=[
                # staged bf16 x chunks (NK, tb, TK) and f32 layer-1 accumulator
                pltpu.VMEM((NK, tb, TK), jnp.bfloat16),
                pltpu.VMEM((tb, HID_DIM), jnp.float32),
            ],
        ),
        compiler_params=pltpu.CompilerParams(
            # Batch axis "arbitrary": avoids each v7x TensorCore re-DMAing its
            # own full weight copy for mid-size batches (DMA-bound regime).
            dimension_semantics=("arbitrary", "arbitrary"),
            # Resident set ~13 MiB (incl. default double-buffering); 40 MiB
            # leaves headroom even on v7x's 64 MiB/TC VMEM.
            vmem_limit_bytes=40 << 20,
        ),
        cost_estimate=cost,
    )(x, w1, b1, w2, b2, w3, b3)

    return out[:B, :OUT_DIM]


def init_params(key):
    """Deterministic f32 init matching nn.Linear (weights stored as (in, out))."""
    ks = jax.random.split(key, 6)

    def linear(kw, kb, fan_in, fan_out):
        bound = 1.0 / jnp.sqrt(fan_in)
        w = jax.random.uniform(kw, (fan_in, fan_out), jnp.float32, -bound, bound)
        b = jax.random.uniform(kb, (1, fan_out), jnp.float32, -bound, bound)
        return w, b

    w1, b1 = linear(ks[0], ks[1], IN_DIM, HID_DIM)
    w2, b2 = linear(ks[2], ks[3], HID_DIM, HID_DIM)
    w3, b3 = linear(ks[4], ks[5], HID_DIM, OUT_DIM)
    return (w1, b1, w2, b2, w3, b3)


def prepare_params(params):
    """Kernel-ready params: bf16 weights, W1 K padded 2000->2048, N padded 2->128."""
    w1, b1, w2, b2, w3, b3 = params
    w1p = jnp.pad(w1, ((0, IN_PAD - IN_DIM), (0, 0))).astype(jnp.bfloat16)
    w2p = w2.astype(jnp.bfloat16)
    w3p = jnp.pad(w3, ((0, 0), (0, OUT_PAD - OUT_DIM))).astype(jnp.bfloat16)
    b3p = jnp.pad(b3, ((0, 0), (0, OUT_PAD - OUT_DIM))).astype(jnp.float32)
    return (w1p, b1.astype(jnp.float32), w2p, b2.astype(jnp.float32), w3p, b3p)


def model_ref(x, params):
    """Pure-JAX f32 reference of the PyTorch forward."""
    w1, b1, w2, b2, w3, b3 = params
    x = x.astype(jnp.float32)
    h = _silu(x @ w1 + b1)
    h = _silu(h @ w2 + b2)
    return h @ w3 + b3


if __name__ == "__main__":
    key = jax.random.PRNGKey(0)
    kp, kx = jax.random.split(key)
    params_f32 = init_params(kp)
    params = prepare_params(params_f32)

    B = 16
    x = jax.random.normal(kx, (B, IN_DIM), jnp.float32)

    out = model_forward(x, params)
    out = jax.block_until_ready(out)
    assert out.shape == (B, OUT_DIM), out.shape

    ref = model_ref(x, params_f32)
    err = float(jnp.max(jnp.abs(out - ref)))
    # bf16 matmul inputs with f32 accumulation vs. the pure-f32 reference.
    assert err < 5e-2, err

    print("KERNEL_OK")
</pallas_src>

<mosaic_0001>
module attributes {stable_mosaic.version = 11 : i64} {
  func.func @mlp_kernel(%arg0: i32, %arg1: i32, %arg2: memref<16x2000xf32, #tpu.memory_space<vmem>>, %arg3: memref<512x1024xbf16, #tpu.memory_space<vmem>>, %arg4: memref<1x1024xf32, #tpu.memory_space<vmem>>, %arg5: memref<1024x1024xbf16, #tpu.memory_space<vmem>>, %arg6: memref<1x1024xf32, #tpu.memory_space<vmem>>, %arg7: memref<1024x128xbf16, #tpu.memory_space<vmem>>, %arg8: memref<1x128xf32, #tpu.memory_space<vmem>>, %arg9: memref<16x128xf32, #tpu.memory_space<vmem>>, %arg10: memref<4x16x512xbf16, #tpu.memory_space<vmem>>, %arg11: memref<16x1024xf32, #tpu.memory_space<vmem>>) attributes {dimension_semantics = [#tpu.dimension_semantics<arbitrary>, #tpu.dimension_semantics<arbitrary>], iteration_bounds = array<i64: 1, 4>, scalar_prefetch = 0 : i64, scratch_operands = 2 : i64, tpu.core_type = #tpu.core_type<tc>, window_params = [{transform_indices = @transform_0, window_bounds = array<i64: 16, 2000>}, {transform_indices = @transform_1, window_bounds = array<i64: 512, 1024>}, {pipeline_mode = #tpu.pipeline_mode<synchronous>, transform_indices = @transform_2, window_bounds = array<i64: 1, 1024>}, {pipeline_mode = #tpu.pipeline_mode<synchronous>, transform_indices = @transform_3, window_bounds = array<i64: 1024, 1024>}, {pipeline_mode = #tpu.pipeline_mode<synchronous>, transform_indices = @transform_4, window_bounds = array<i64: 1, 1024>}, {pipeline_mode = #tpu.pipeline_mode<synchronous>, transform_indices = @transform_5, window_bounds = array<i64: 1024, 128>}, {pipeline_mode = #tpu.pipeline_mode<synchronous>, transform_indices = @transform_6, window_bounds = array<i64: 1, 128>}, {transform_indices = @transform_7, window_bounds = array<i64: 16, 128>}]} {
    %c0_i32 = arith.constant 0 : i32
    %0 = arith.cmpi eq, %arg1, %c0_i32 : i32
    %1 = arith.extui %0 : i1 to i32
    %c0_i32_0 = arith.constant 0 : i32
    %2 = arith.cmpi ne, %1, %c0_i32_0 : i32
    scf.if %2 {
      %c0_9 = arith.constant 0 : index
      %c0_10 = arith.constant 0 : index
      %14 = vector.load %arg2[%c0_9, %c0_10] : memref<16x2000xf32, #tpu.memory_space<vmem>>, vector<16x512xf32>
      %15 = arith.truncf %14 : vector<16x512xf32> to vector<16x512xbf16>
      %c0_11 = arith.constant 0 : index
      %c0_12 = arith.constant 0 : index
      %c0_13 = arith.constant 0 : index
      %16 = vector.load %arg10[%c0_11, %c0_12, %c0_13] : memref<4x16x512xbf16, #tpu.memory_space<vmem>>, vector<1x16x512xbf16>
      %17 = vector.shape_cast %16 : vector<1x16x512xbf16> to vector<16x512xbf16>
      %18 = vector.shape_cast %15 : vector<16x512xbf16> to vector<1x16x512xbf16>
      tpu.vector_store %arg10[%c0_11, %c0_12, %c0_13], %18 {strides = array<i32>} : memref<4x16x512xbf16, #tpu.memory_space<vmem>>, vector<1x16x512xbf16>,
      %c0_14 = arith.constant 0 : index
      %c512 = arith.constant 512 : index
      %19 = vector.load %arg2[%c0_14, %c512] : memref<16x2000xf32, #tpu.memory_space<vmem>>, vector<16x512xf32>
      %20 = arith.truncf %19 : vector<16x512xf32> to vector<16x512xbf16>
      %c1 = arith.constant 1 : index
      %c0_15 = arith.constant 0 : index
      %c0_16 = arith.constant 0 : index
      %21 = vector.load %arg10[%c1, %c0_15, %c0_16] : memref<4x16x512xbf16, #tpu.memory_space<vmem>>, vector<1x16x512xbf16>
      %22 = vector.shape_cast %21 : vector<1x16x512xbf16> to vector<16x512xbf16>
      %23 = vector.shape_cast %20 : vector<16x512xbf16> to vector<1x16x512xbf16>
      tpu.vector_store %arg10[%c1, %c0_15, %c0_16], %23 {strides = array<i32>} : memref<4x16x512xbf16, #tpu.memory_space<vmem>>, vector<1x16x512xbf16>,
      %c0_17 = arith.constant 0 : index
      %c1024 = arith.constant 1024 : index
      %24 = vector.load %arg2[%c0_17, %c1024] : memref<16x2000xf32, #tpu.memory_space<vmem>>, vector<16x512xf32>
      %25 = arith.truncf %24 : vector<16x512xf32> to vector<16x512xbf16>
      %c2 = arith.constant 2 : index
      %c0_18 = arith.constant 0 : index
      %c0_19 = arith.constant 0 : index
      %26 = vector.load %arg10[%c2, %c0_18, %c0_19] : memref<4x16x512xbf16, #tpu.memory_space<vmem>>, vector<1x16x512xbf16>
      %27 = vector.shape_cast %26 : vector<1x16x512xbf16> to vector<16x512xbf16>
      %28 = vector.shape_cast %25 : vector<16x512xbf16> to vector<1x16x512xbf16>
      tpu.vector_store %arg10[%c2, %c0_18, %c0_19], %28 {strides = array<i32>} : memref<4x16x512xbf16, #tpu.memory_space<vmem>>, vector<1x16x512xbf16>,
      %cst_20 = arith.constant 0.000000e+00 : bf16
      %29 = vector.broadcast %cst_20 : bf16 to vector<16x512xbf16>
      %c3 = arith.constant 3 : index
      %c0_21 = arith.constant 0 : index
      %c0_22 = arith.constant 0 : index
      %30 = vector.load %arg10[%c3, %c0_21, %c0_22] : memref<4x16x512xbf16, #tpu.memory_space<vmem>>, vector<1x16x512xbf16>
      %31 = vector.shape_cast %30 : vector<1x16x512xbf16> to vector<16x512xbf16>
      %32 = vector.shape_cast %29 : vector<16x512xbf16> to vector<1x16x512xbf16>
      tpu.vector_store %arg10[%c3, %c0_21, %c0_22], %32 {strides = array<i32>} : memref<4x16x512xbf16, #tpu.memory_space<vmem>>, vector<1x16x512xbf16>,
      %c0_23 = arith.constant 0 : index
      %c1536 = arith.constant 1536 : index
      %33 = vector.load %arg2[%c0_23, %c1536] : memref<16x2000xf32, #tpu.memory_space<vmem>>, vector<16x464xf32>
      %34 = arith.truncf %33 : vector<16x464xf32> to vector<16x464xbf16>
      %c3_24 = arith.constant 3 : index
      %c0_25 = arith.constant 0 : index
      %c0_26 = arith.constant 0 : index
      %35 = vector.load %arg10[%c3_24, %c0_25, %c0_26] : memref<4x16x512xbf16, #tpu.memory_space<vmem>>, vector<1x16x464xbf16>
      %36 = vector.shape_cast %35 : vector<1x16x464xbf16> to vector<16x464xbf16>
      %37 = vector.shape_cast %34 : vector<16x464xbf16> to vector<1x16x464xbf16>
      tpu.vector_store %arg10[%c3_24, %c0_25, %c0_26], %37 {strides = array<i32>} : memref<4x16x512xbf16, #tpu.memory_space<vmem>>, vector<1x16x464xbf16>,
      %cst_27 = arith.constant 0.000000e+00 : f32
      %38 = vector.broadcast %cst_27 : f32 to vector<16x1024xf32>
      %c0_28 = arith.constant 0 : index
      %c0_29 = arith.constant 0 : index
      %39 = vector.load %arg11[%c0_28, %c0_29] : memref<16x1024xf32, #tpu.memory_space<vmem>>, vector<16x1024xf32>
      tpu.vector_store %arg11[%c0_28, %c0_29], %38 {strides = array<i32>} : memref<16x1024xf32, #tpu.memory_space<vmem>>, vector<16x1024xf32>,
    } else {
    }
    %c0 = arith.constant 0 : index
    %c0_1 = arith.constant 0 : index
    %3 = vector.load %arg11[%c0, %c0_1] : memref<16x1024xf32, #tpu.memory_space<vmem>>, vector<16x1024xf32>
    %4 = arith.index_cast %arg1 : i32 to index
    %c0_2 = arith.constant 0 : index
    %c0_3 = arith.constant 0 : index
    %5 = vector.load %arg10[%4, %c0_2, %c0_3] : memref<4x16x512xbf16, #tpu.memory_space<vmem>>, vector<1x16x512xbf16>
    %6 = vector.shape_cast %5 : vector<1x16x512xbf16> to vector<16x512xbf16>
    %c0_4 = arith.constant 0 : index
    %c0_5 = arith.constant 0 : index
    %7 = vector.load %arg3[%c0_4, %c0_5] : memref<512x1024xbf16, #tpu.memory_space<vmem>>, vector<512x1024xbf16>
    %cst = arith.constant dense<0.000000e+00> : vector<16x1024xf32>
    %8 = tpu.matmul %6, %7, %cst {dimension_numbers = #tpu.dot_dimension_numbers<[1], [0], [0], [1], [0, 0, 1, 1], [], []>} : vector<16x512xbf16>, vector<512x1024xbf16>, vector<16x1024xf32> -> vector<16x1024xf32>
    %9 = arith.addf %3, %8 : vector<16x1024xf32>
    %c0_6 = arith.constant 0 : index
    %c0_7 = arith.constant 0 : index
    %10 = vector.load %arg11[%c0_6, %c0_7] : memref<16x1024xf32, #tpu.memory_space<vmem>>, vector<16x1024xf32>
    tpu.vector_store %arg11[%c0_6, %c0_7], %9 {strides = array<i32>} : memref<16x1024xf32, #tpu.memory_space<vmem>>, vector<16x1024xf32>,
    %c3_i32 = arith.constant 3 : i32
    %11 = arith.cmpi eq, %arg1, %c3_i32 : i32
    %12 = arith.extui %11 : i1 to i32
    %c0_i32_8 = arith.constant 0 : i32
    %13 = arith.cmpi ne, %12, %c0_i32_8 : i32
    scf.if %13 {
      %c0_9 = arith.constant 0 : index
      %c0_10 = arith.constant 0 : index
      %14 = vector.load %arg11[%c0_9, %c0_10] : memref<16x1024xf32, #tpu.memory_space<vmem>>, vector<16x1024xf32>
      %c0_11 = arith.constant 0 : index
      %c0_12 = arith.constant 0 : index
      %15 = vector.load %arg4[%c0_11, %c0_12] : memref<1x1024xf32, #tpu.memory_space<vmem>>, vector<1x1024xf32>
      %16 = vector.broadcast %15 : vector<1x1024xf32> to vector<16x1024xf32>
      %17 = arith.addf %14, %16 : vector<16x1024xf32>
      %18 = arith.negf %17 : vector<16x1024xf32>
      %19 = math.exp %18 : vector<16x1024xf32>
      %cst_13 = arith.constant 1.000000e+00 : f32
      %20 = vector.broadcast %cst_13 : f32 to vector<16x1024xf32>
      %21 = arith.addf %20, %19 : vector<16x1024xf32>
      %22 = arith.divf %20, %21 : vector<16x1024xf32>
      %23 = arith.mulf %17, %22 : vector<16x1024xf32>
      %24 = arith.truncf %23 : vector<16x1024xf32> to vector<16x1024xbf16>
      %c0_14 = arith.constant 0 : index
      %c0_15 = arith.constant 0 : index
      %25 = vector.load %arg5[%c0_14, %c0_15] : memref<1024x1024xbf16, #tpu.memory_space<vmem>>, vector<1024x1024xbf16>
      %cst_16 = arith.constant dense<0.000000e+00> : vector<16x1024xf32>
      %26 = tpu.matmul %24, %25, %cst_16 {dimension_numbers = #tpu.dot_dimension_numbers<[1], [0], [0], [1], [0, 0, 1, 1], [], []>} : vector<16x1024xbf16>, vector<1024x1024xbf16>, vector<16x1024xf32> -> vector<16x1024xf32>
      %c0_17 = arith.constant 0 : index
      %c0_18 = arith.constant 0 : index
      %27 = vector.load %arg6[%c0_17, %c0_18] : memref<1x1024xf32, #tpu.memory_space<vmem>>, vector<1x1024xf32>
      %28 = vector.broadcast %27 : vector<1x1024xf32> to vector<16x1024xf32>
      %29 = arith.addf %26, %28 : vector<16x1024xf32>
      %30 = arith.negf %29 : vector<16x1024xf32>
      %31 = math.exp %30 : vector<16x1024xf32>
      %cst_19 = arith.constant 1.000000e+00 : f32
      %32 = vector.broadcast %cst_19 : f32 to vector<16x1024xf32>
      %33 = arith.addf %32, %31 : vector<16x1024xf32>
      %34 = arith.divf %32, %33 : vector<16x1024xf32>
      %35 = arith.mulf %29, %34 : vector<16x1024xf32>
      %36 = arith.truncf %35 : vector<16x1024xf32> to vector<16x1024xbf16>
      %c0_20 = arith.constant 0 : index
      %c0_21 = arith.constant 0 : index
      %37 = vector.load %arg7[%c0_20, %c0_21] : memref<1024x128xbf16, #tpu.memory_space<vmem>>, vector<1024x128xbf16>
      %cst_22 = arith.constant dense<0.000000e+00> : vector<16x128xf32>
      %38 = tpu.matmul %36, %37, %cst_22 {dimension_numbers = #tpu.dot_dimension_numbers<[1], [0], [0], [1], [0, 0, 1, 1], [], []>} : vector<16x1024xbf16>, vector<1024x128xbf16>, vector<16x128xf32> -> vector<16x128xf32>
      %c0_23 = arith.constant 0 : index
      %c0_24 = arith.constant 0 : index
      %39 = vector.load %arg8[%c0_23, %c0_24] : memref<1x128xf32, #tpu.memory_space<vmem>>, vector<1x128xf32>
      %40 = vector.broadcast %39 : vector<1x128xf32> to vector<16x128xf32>
      %41 = arith.addf %38, %40 : vector<16x128xf32>
      %c0_25 = arith.constant 0 : index
      %c0_26 = arith.constant 0 : index
      %42 = vector.load %arg9[%c0_25, %c0_26] : memref<16x128xf32, #tpu.memory_space<vmem>>, vector<16x128xf32>
      tpu.vector_store %arg9[%c0_25, %c0_26], %41 {strides = array<i32>} : memref<16x128xf32, #tpu.memory_space<vmem>>, vector<16x128xf32>,
    } else {
    }
    return
  }
  func.func @transform_0(%arg0: i32, %arg1: i32) -> (i32, i32) {
    %c0_i32 = arith.constant 0 : i32
    %c0_i32_0 = arith.constant 0 : i32
    return %arg0, %c0_i32 : i32, i32
  }
  func.func @transform_1(%arg0: i32, %arg1: i32) -> (i32, i32) {
    %c0_i32 = arith.constant 0 : i32
    %c0_i32_0 = arith.constant 0 : i32
    return %arg1, %c0_i32 : i32, i32
  }
  func.func @transform_2(%arg0: i32, %arg1: i32) -> (i32, i32) {
    %c0_i32 = arith.constant 0 : i32
    %c0_i32_0 = arith.constant 0 : i32
    %c0_i32_1 = arith.constant 0 : i32
    return %c0_i32, %c0_i32_0 : i32, i32
  }
  func.func @transform_3(%arg0: i32, %arg1: i32) -> (i32, i32) {
    %c0_i32 = arith.constant 0 : i32
    %c0_i32_0 = arith.constant 0 : i32
    %c0_i32_1 = arith.constant 0 : i32
    return %c0_i32, %c0_i32_0 : i32, i32
  }
  func.func @transform_4(%arg0: i32, %arg1: i32) -> (i32, i32) {
    %c0_i32 = arith.constant 0 : i32
    %c0_i32_0 = arith.constant 0 : i32
    %c0_i32_1 = arith.constant 0 : i32
    return %c0_i32, %c0_i32_0 : i32, i32
  }
  func.func @transform_5(%arg0: i32, %arg1: i32) -> (i32, i32) {
    %c0_i32 = arith.constant 0 : i32
    %c0_i32_0 = arith.constant 0 : i32
    %c0_i32_1 = arith.constant 0 : i32
    return %c0_i32, %c0_i32_0 : i32, i32
  }
  func.func @transform_6(%arg0: i32, %arg1: i32) -> (i32, i32) {
    %c0_i32 = arith.constant 0 : i32
    %c0_i32_0 = arith.constant 0 : i32
    %c0_i32_1 = arith.constant 0 : i32
    return %c0_i32, %c0_i32_0 : i32, i32
  }
  func.func @transform_7(%arg0: i32, %arg1: i32) -> (i32, i32) {
    %c0_i32 = arith.constant 0 : i32
    %c0_i32_0 = arith.constant 0 : i32
    return %arg0, %c0_i32 : i32, i32
  }
}

</mosaic_0001>

<llo_original>
// kernel: model_forward.1
$region0: #{model_forward.1}
  #allocation0 [shape = 'u32[]', space=smem, size = 0x4, offset = 0x4, fixed_abs, tag = 'smem constant byte address 0x4 - core index']
  #allocation1 [shape = 'u32[144,128]{1,0:T(1,128)}', space=vmem, size = 0x12000, scoped, tag = 'internal scratch']
  #allocation2 [shape = 'bf16[4,16,512]{2,1,0:T(8,128)(2,1)}', space=vmem, size = 0x10000, scoped, tag = 'scratch operand']
  #allocation3 [shape = 'f32[16,1024]{1,0:T(8,128)}', space=vmem, size = 0x10000, scoped, tag = 'scratch operand']
  %s0 = inlined_call_operand.hbm [shape: f32[16,2000], index: 0, kind: input, shape index: {}]
  %s1 = inlined_call_operand.hbm [shape: bf16[2048,1024], index: 1, kind: input, shape index: {}]
  %s2 = inlined_call_operand.hbm [shape: f32[1,1024], index: 2, kind: input, shape index: {}]
  %s3 = inlined_call_operand.hbm [shape: bf16[1024,1024], index: 3, kind: input, shape index: {}]
  %s4 = inlined_call_operand.hbm [shape: f32[1,1024], index: 4, kind: input, shape index: {}]
  %s5 = inlined_call_operand.hbm [shape: bf16[1024,128], index: 5, kind: input, shape index: {}]
  %s6 = inlined_call_operand.hbm [shape: f32[1,128], index: 6, kind: input, shape index: {}]
  %s7 = inlined_call_operand.vmem [shape: f32[16,128], index: 7, kind: output, shape index: {}]
  %s8 = sld [smem:[#allocation0]]
  $region97: #{model_forward.1} parent=0
    _
  %s10 = ssub.s32 1, %s8
  %s11 = scalar_select 0, %s10, %s8
  $region1: #{model_forward.1} parent=0
    #allocation4 [shape = 'u8[131072]{0}', space=vmem, size = 0x20000, scoped, tag = 'input window, operand 0, single buffered']
    #allocation5 [shape = 's32[2]{0}', space=sflag, size = 0x8, scoped, tag = 'scoped memory for model_forward.1']
    #allocation6 [shape = 'u8[2097152]{0}', space=vmem, size = 0x200000, scoped, tag = 'input window, operand 1']
    #allocation7 [shape = 's32[2]{0}', space=sflag, size = 0x8, scoped, tag = 'scoped memory for model_forward.1']
    #allocation8 [shape = 'u8[4096]{0}', space=vmem, size = 0x1000, scoped, tag = 'input window, operand 2, single buffered']
    #allocation9 [shape = 'u8[2097152]{0}', space=vmem, size = 0x200000, scoped, tag = 'input window, operand 3, single buffered']
    #allocation10 [shape = 's32[1]{0}', space=sflag, size = 0x4, scoped, tag = 'scoped memory for model_forward.1']
    #allocation11 [shape = 'u8[4096]{0}', space=vmem, size = 0x1000, scoped, tag = 'input window, operand 4, single buffered']
    #allocation12 [shape = 'u8[262144]{0}', space=vmem, size = 0x40000, scoped, tag = 'input window, operand 5, single buffered']
    #allocation13 [shape = 's32[1]{0}', space=sflag, size = 0x4, scoped, tag = 'scoped memory for model_forward.1']
    #allocation14 [shape = 'u8[512]{0}', space=vmem, size = 0x400, scoped, tag = 'input window, operand 6, single buffered']
    %12 = vsyncpa [#allocation5], 0
    %13 = vsyncpa [#allocation7], 0
    %s14 = scalar_lea.sflag [#allocation7], 1
    %15 = vsyncpa %s14, 0
    %16 = vsyncpa [#allocation10], 0
    %17 = vsyncpa [#allocation13], 0
    loop: start=0, step=1, limit=6
    $region2: #{model_forward.1} parent=1 // loop_pre_header
      _
    $region3: #{model_forward.1} parent=1 // loop_header
      %s19 = sphi 0, %s23
      %p20 = scmp.ge.s32.totalorder %s19, 6
      %s26 = sphi 0, %s38
      %s27 = sphi 0, %s34
      %s28 = sphi 0, %s26
      %s29 = sphi 0, %s27
      %s30 = sphi 0, %s28
      %s31 = sphi 0, %s29
      %s41 = sphi 0, %s43
      %s44 = sphi 0, %s41
      %s45 = sphi 0, %s44
      %s61 = sphi 0, %s45
      %s67 = sphi 0, %s69
      %s70 = sphi 0, %s67
      %s71 = sphi 0, %s70
      %s87 = sphi 0, %s71
      %s91 = sphi 0, %s91
      %s93 = sphi 0, %s91
      %s94 = sphi 0, %s93
      %s108 = sphi 0, %s94
      %s112 = sphi 0, %s112
      %s114 = sphi 0, %s112
      %s115 = sphi 0, %s114
      %s129 = sphi 0, %s115
      %s133 = sphi 0, %s133
      %s135 = sphi 0, %s133
      %s136 = sphi 0, %s135
      %s150 = sphi 0, %s136
      %s154 = sphi 0, %s154
      %s156 = sphi 0, %s154
      %s157 = sphi 0, %s156
      %s171 = sphi 0, %s157
      %s175 = sphi 0, %s175
      %s177 = sphi 0, %s175
      %s178 = sphi 0, %s177
      %s192 = sphi 0, %s178
      %s198 = sphi 0, %s200
      %s201 = sphi 0, %s198
      %s202 = sphi 0, %s201
      %s218 = sphi 0, %s202
    $region4: #{model_forward.1} parent=1 // loop_header_branch
      %22 = sbr.rel (%p20) target = $region8
    $region5: #{model_forward.1} parent=1 // loop_body
      %s24 = ssub.s32 %s19, 1
      %s25 = ssub.s32 %s19, 2
      %s32 = sadd.s32 1, %s27
      %p33 = scmp.ge.s32.totalorder %s32, 4
      %s34 = scalar_select %p33, 0, %s32
      %s35 = sadd.s32 1, %s26
      %s36 = scalar_select %p33, %s35, %s26
      %p37 = scmp.ge.s32.totalorder %s36, 1
      %s38 = scalar_select %p37, 0, %s36
      %s39 = ssub.s32 %s26, %s38
      %p40 = scmp.eq.s32.totalorder %s39, 0
      %s42 = sadd.s32 %s41, 1
      %s43 = scalar_select %p40, %s41, %s42
      %p46 = pneg %p40
      %p47 = scmp.eq.s32.totalorder %s19, 3
      %p48 = por %p46, %p47
      %p49 = scmp.ne.s32.totalorder %s41, %s44
      %p50 = scmp.eq.s32.totalorder %s19, 0
      %p51 = por %p49, %p50
      %p52 = scmp.ne.s32.totalorder %s41, %s44
      %p53 = scmp.eq.s32.totalorder %s24, 3
      %p54 = por %p52, %p53
      %p55 = scmp.ne.s32.totalorder %s44, %s45
      %p56 = scmp.eq.s32.totalorder %s24, 0
      %p57 = por %p55, %p56
      %p58 = scmp.ne.s32.totalorder %s44, %s45
      %p59 = scmp.eq.s32.totalorder %s25, 3
      %p60 = por %p58, %p59
      %p62 = scmp.ne.s32.totalorder %s45, %s61
      %p63 = scmp.eq.s32.totalorder %s25, 0
      %p64 = por %p62, %p63
      %s65 = ssub.s32 %s27, %s34
      %p66 = scmp.eq.s32.totalorder %s65, 0
      %s68 = sadd.s32 %s67, 1
      %s69 = scalar_select %p66, %s67, %s68
      %p72 = pneg %p66
      %p73 = scmp.eq.s32.totalorder %s19, 3
      %p74 = por %p72, %p73
      %p75 = scmp.ne.s32.totalorder %s67, %s70
      %p76 = scmp.eq.s32.totalorder %s19, 0
      %p77 = por %p75, %p76
      %p78 = scmp.ne.s32.totalorder %s67, %s70
      %p79 = scmp.eq.s32.totalorder %s24, 3
      %p80 = por %p78, %p79
      %p81 = scmp.ne.s32.totalorder %s70, %s71
      %p82 = scmp.eq.s32.totalorder %s24, 0
      %p83 = por %p81, %p82
      %p84 = scmp.ne.s32.totalorder %s70, %s71
      %p85 = scmp.eq.s32.totalorder %s25, 3
      %p86 = por %p84, %p85
      %p88 = scmp.ne.s32.totalorder %s71, %s87
      %p89 = scmp.eq.s32.totalorder %s25, 0
      %p90 = por %p88, %p89
      %s92 = sadd.s32 %s91, 1
      %p95 = scmp.eq.s32.totalorder %s19, 3
      %p96 = scmp.ne.s32.totalorder %s91, %s93
      %p97 = scmp.eq.s32.totalorder %s19, 0
      %p98 = por %p96, %p97
      %p99 = scmp.ne.s32.totalorder %s91, %s93
      %p100 = scmp.eq.s32.totalorder %s24, 3
      %p101 = por %p99, %p100
      %p102 = scmp.ne.s32.totalorder %s93, %s94
      %p103 = scmp.eq.s32.totalorder %s24, 0
      %p104 = por %p102, %p103
      %p105 = scmp.ne.s32.totalorder %s93, %s94
      %p106 = scmp.eq.s32.totalorder %s25, 3
      %p107 = por %p105, %p106
      %p109 = scmp.ne.s32.totalorder %s94, %s108
      %p110 = scmp.eq.s32.totalorder %s25, 0
      %p111 = por %p109, %p110
      %s113 = sadd.s32 %s112, 1
      %p116 = scmp.eq.s32.totalorder %s19, 3
      %p117 = scmp.ne.s32.totalorder %s112, %s114
      %p118 = scmp.eq.s32.totalorder %s19, 0
      %p119 = por %p117, %p118
      %p120 = scmp.ne.s32.totalorder %s112, %s114
      %p121 = scmp.eq.s32.totalorder %s24, 3
      %p122 = por %p120, %p121
      %p123 = scmp.ne.s32.totalorder %s114, %s115
      %p124 = scmp.eq.s32.totalorder %s24, 0
      %p125 = por %p123, %p124
      %p126 = scmp.ne.s32.totalorder %s114, %s115
      %p127 = scmp.eq.s32.totalorder %s25, 3
      %p128 = por %p126, %p127
      %p130 = scmp.ne.s32.totalorder %s115, %s129
      %p131 = scmp.eq.s32.totalorder %s25, 0
      %p132 = por %p130, %p131
      %s134 = sadd.s32 %s133, 1
      %p137 = scmp.eq.s32.totalorder %s19, 3
      %p138 = scmp.ne.s32.totalorder %s133, %s135
      %p139 = scmp.eq.s32.totalorder %s19, 0
      %p140 = por %p138, %p139
      %p141 = scmp.ne.s32.totalorder %s133, %s135
      %p142 = scmp.eq.s32.totalorder %s24, 3
      %p143 = por %p141, %p142
      %p144 = scmp.ne.s32.totalorder %s135, %s136
      %p145 = scmp.eq.s32.totalorder %s24, 0
      %p146 = por %p144, %p145
      %p147 = scmp.ne.s32.totalorder %s135, %s136
      %p148 = scmp.eq.s32.totalorder %s25, 3
      %p149 = por %p147, %p148
      %p151 = scmp.ne.s32.totalorder %s136, %s150
      %p152 = scmp.eq.s32.totalorder %s25, 0
      %p153 = por %p151, %p152
      %s155 = sadd.s32 %s154, 1
      %p158 = scmp.eq.s32.totalorder %s19, 3
      %p159 = scmp.ne.s32.totalorder %s154, %s156
      %p160 = scmp.eq.s32.totalorder %s19, 0
      %p161 = por %p159, %p160
      %p162 = scmp.ne.s32.totalorder %s154, %s156
      %p163 = scmp.eq.s32.totalorder %s24, 3
      %p164 = por %p162, %p163
      %p165 = scmp.ne.s32.totalorder %s156, %s157
      %p166 = scmp.eq.s32.totalorder %s24, 0
      %p167 = por %p165, %p166
      %p168 = scmp.ne.s32.totalorder %s156, %s157
      %p169 = scmp.eq.s32.totalorder %s25, 3
      %p170 = por %p168, %p169
      %p172 = scmp.ne.s32.totalorder %s157, %s171
      %p173 = scmp.eq.s32.totalorder %s25, 0
      %p174 = por %p172, %p173
      %s176 = sadd.s32 %s175, 1
      %p179 = scmp.eq.s32.totalorder %s19, 3
      %p180 = scmp.ne.s32.totalorder %s175, %s177
      %p181 = scmp.eq.s32.totalorder %s19, 0
      %p182 = por %p180, %p181
      %p183 = scmp.ne.s32.totalorder %s175, %s177
      %p184 = scmp.eq.s32.totalorder %s24, 3
      %p185 = por %p183, %p184
      %p186 = scmp.ne.s32.totalorder %s177, %s178
      %p187 = scmp.eq.s32.totalorder %s24, 0
      %p188 = por %p186, %p187
      %p189 = scmp.ne.s32.totalorder %s177, %s178
      %p190 = scmp.eq.s32.totalorder %s25, 3
      %p191 = por %p189, %p190
      %p193 = scmp.ne.s32.totalorder %s178, %s192
      %p194 = scmp.eq.s32.totalorder %s25, 0
      %p195 = por %p193, %p194
      %s196 = ssub.s32 %s26, %s38
      %p197 = scmp.eq.s32.totalorder %s196, 0
      %s199 = sadd.s32 %s198, 1
      %s200 = scalar_select %p197, %s198, %s199
      %p203 = pneg %p197
      %p204 = scmp.eq.s32.totalorder %s19, 3
      %p205 = por %p203, %p204
      %p206 = scmp.ne.s32.totalorder %s198, %s201
      %p207 = scmp.eq.s32.totalorder %s19, 0
      %p208 = por %p206, %p207
      %p209 = scmp.ne.s32.totalorder %s198, %s201
      %p210 = scmp.eq.s32.totalorder %s24, 3
      %p211 = por %p209, %p210
      %p212 = scmp.ne.s32.totalorder %s201, %s202
      %p213 = scmp.eq.s32.totalorder %s24, 0
      %p214 = por %p212, %p213
      %p215 = scmp.ne.s32.totalorder %s201, %s202
      %p216 = scmp.eq.s32.totalorder %s25, 3
      %p217 = por %p215, %p216
      %p219 = scmp.ne.s32.totalorder %s202, %s218
      %p220 = scmp.eq.s32.totalorder %s25, 0
      %p221 = por %p219, %p220
      %p222 = scmp.le.s32.totalorder 1, %s19
      %p223 = scmp.lt.s32.totalorder %s19, 5
      %p224 = pnand %p222, %p223
      %p225 = pneg %p224
      // Predicated region
      $region9: #{model_forward.1} parent=5 // pred_check
        _
      $region10: #{model_forward.1} parent=5 // pred_check_branch
        %227 = sbr.rel (%p224) target = $region12
      $region11: #{model_forward.1} parent=5 // pred_region
        %s228 = ssub.s32 %s19, 1
        // Predicated region
        $region13: #{model_forward.1} parent=11 // pred_check
          %p229 = pneg %p57
        $region14: #{model_forward.1} parent=11 // pred_check_branch
          %231 = sbr.rel (%p229) target = $region16
        $region15: #{model_forward.1} parent=11 // pred_region
          %s232 = smul.u32 2, %s28
          %s234 = ssub.s32 4096, 4096
          %235 = vsyncadd [#allocation5], %s234
          %s236 = smul.addr %s232, 16
          %s237 = smul.addr %s236, 128
          %s238 = scalar_lea.hbm %s0, %s237
          %s239 = sshll.u32 [#allocation4], 4
          %s240 = int_to_ptr.vmem [resolvable:$true] %s239
          %245 = dma.hbm_to_vmem [thread:$0]  %s238, 4096, %s240, [#allocation5], 2048, 2048, 128
        $region16: #{model_forward.1} parent=11 // pred_fallthru
          _
        // Predicated region
        $region17: #{model_forward.1} parent=11 // pred_check
          %p246 = pneg %p104
        $region18: #{model_forward.1} parent=11 // pred_check_branch
          %248 = sbr.rel (%p246) target = $region20
        $region19: #{model_forward.1} parent=11 // pred_region
          %s250 = ssub.s32 128, 128
          %251 = vsyncadd [#allocation7], %s250
          %s253 = sshll.u32 [#allocation8], 4
          %s254 = int_to_ptr.vmem [resolvable:$true] %s253
          %256 = dma.hbm_to_vmem [thread:$0]  %s2, 128, %s254, [#allocation7]
        $region20: #{model_forward.1} parent=11 // pred_fallthru
          _
        // Predicated region
        $region21: #{model_forward.1} parent=11 // pred_check
          %p257 = pneg %p125
        $region22: #{model_forward.1} parent=11 // pred_check_branch
          %259 = sbr.rel (%p257) target = $region24
        $region23: #{model_forward.1} parent=11 // pred_region
          %s261 = ssub.s32 65536, 65536
          %262 = vsyncadd [#allocation10], %s261
          %s263 = sshll.u32 [#allocation9], 4
          %s264 = int_to_ptr.vmem [resolvable:$true] %s263
          %269 = dma.hbm_to_vmem [thread:$0]  %s3, 65536, %s264, [#allocation10], 512, 512, 32
        $region24: #{model_forward.1} parent=11 // pred_fallthru
          _
        // Predicated region
        $region25: #{model_forward.1} parent=11 // pred_check
          %p270 = pneg %p146
        $region26: #{model_forward.1} parent=11 // pred_check_branch
          %272 = sbr.rel (%p270) target = $region28
        $region27: #{model_forward.1} parent=11 // pred_region
          %s274 = ssub.s32 128, 128
          %275 = vsyncadd [#allocation10], %s274
          %s277 = sshll.u32 [#allocation11], 4
          %s278 = int_to_ptr.vmem [resolvable:$true] %s277
          %280 = dma.hbm_to_vmem [thread:$0]  %s4, 128, %s278, [#allocation10]
        $region28: #{model_forward.1} parent=11 // pred_fallthru
          _
        // Predicated region
        $region29: #{model_forward.1} parent=11 // pred_check
          %p281 = pneg %p167
        $region30: #{model_forward.1} parent=11 // pred_check_branch
          %283 = sbr.rel (%p281) target = $region32
        $region31: #{model_forward.1} parent=11 // pred_region
          %s285 = ssub.s32 8192, 8192
          %286 = vsyncadd [#allocation13], %s285
          %s287 = sshll.u32 [#allocation12], 4
          %s288 = int_to_ptr.vmem [resolvable:$true] %s287
          %293 = dma.hbm_to_vmem [thread:$0]  %s5, 8192, %s288, [#allocation13], 64, 64, 4
        $region32: #{model_forward.1} parent=11 // pred_fallthru
          _
        // Predicated region
        $region33: #{model_forward.1} parent=11 // pred_check
          %p294 = pneg %p188
        $region34: #{model_forward.1} parent=11 // pred_check_branch
          %296 = sbr.rel (%p294) target = $region36
        $region35: #{model_forward.1} parent=11 // pred_region
          %s298 = ssub.s32 16, 16
          %299 = vsyncadd [#allocation13], %s298
          %s301 = sshll.u32 [#allocation14], 4
          %s302 = int_to_ptr.vmem [resolvable:$true] %s301
          %304 = dma.hbm_to_vmem [thread:$0]  %s6, 16, %s302, [#allocation13]
        $region36: #{model_forward.1} parent=11 // pred_fallthru
          _
      $region12: #{model_forward.1} parent=5 // pred_fallthru
        _
      %p305 = scmp.lt.s32.totalorder %s19, 4
      // Predicated region
      $region37: #{model_forward.1} parent=5 // pred_check
        %p306 = pneg %p305
      $region38: #{model_forward.1} parent=5 // pred_check_branch
        %308 = sbr.rel (%p306) target = $region40
      $region39: #{model_forward.1} parent=5 // pred_region
        // Predicated region
        $region41: #{model_forward.1} parent=39 // pred_check
          %p309 = pneg %p77
        $region42: #{model_forward.1} parent=39 // pred_check_branch
          %311 = sbr.rel (%p309) target = $region44
        $region43: #{model_forward.1} parent=39 // pred_region
          %s312 = sand.u32 %s19, 1
          %s313 = scalar_lea.sflag [#allocation7], %s312
          %s314 = sand.u32 %s67, 1
          %s315 = smul.addr %s314, 2048
          %s316 = scalar_lea.vmem [#allocation6], %s315
          %s317 = smul.u32 64, %s27
          %s319 = ssub.s32 32768, 32768
          %320 = vsyncadd %s313, %s319
          %s321 = smul.addr %s317, 8
          %s322 = smul.addr %s321, 64
          %s323 = scalar_lea.hbm %s1, %s322
          %s324 = sshll.u32 %s316, 4
          %s325 = int_to_ptr.vmem [resolvable:$true] %s324
          %330 = dma.hbm_to_vmem [thread:$0]  %s323, 32768, %s325, %s313, 512, 512, 32
        $region44: #{model_forward.1} parent=39 // pred_fallthru
          _
      $region40: #{model_forward.1} parent=5 // pred_fallthru
        _
      %p331 = scmp.le.s32.totalorder 1, %s19
      %p332 = scmp.lt.s32.totalorder %s19, 5
      %p333 = pnand %p331, %p332
      %p334 = pneg %p333
      // Predicated region
      $region45: #{model_forward.1} parent=5 // pred_check
        _
      $region46: #{model_forward.1} parent=5 // pred_check_branch
        %336 = sbr.rel (%p333) target = $region48
      $region47: #{model_forward.1} parent=5 // pred_region
        %s337 = ssub.s32 %s19, 1
        // Predicated region
        $region49: #{model_forward.1} parent=47 // pred_check
          %p338 = pneg %p57
        $region50: #{model_forward.1} parent=47 // pred_check_branch
          %340 = sbr.rel (%p338) target = $region52
        $region51: #{model_forward.1} parent=47 // pred_region
          %341 = dma.done [#allocation5], 4096
        $region52: #{model_forward.1} parent=47 // pred_fallthru
          _
        %s342 = sand.u32 %s24, 1
        %s343 = scalar_lea.sflag [#allocation7], %s342
        %s344 = sand.u32 %s70, 1
        %s345 = smul.addr %s344, 2048
        %s346 = scalar_lea.vmem [#allocation6], %s345
        // Predicated region
        $region53: #{model_forward.1} parent=47 // pred_check
          %p347 = pneg %p83
        $region54: #{model_forward.1} parent=47 // pred_check_branch
          %349 = sbr.rel (%p347) target = $region56
        $region55: #{model_forward.1} parent=47 // pred_region
          %350 = dma.done %s343, 32768
        $region56: #{model_forward.1} parent=47 // pred_fallthru
          _
        // Predicated region
        $region57: #{model_forward.1} parent=47 // pred_check
          %p351 = pneg %p104
        $region58: #{model_forward.1} parent=47 // pred_check_branch
          %353 = sbr.rel (%p351) target = $region60
        $region59: #{model_forward.1} parent=47 // pred_region
          %354 = dma.done [#allocation7], 128
        $region60: #{model_forward.1} parent=47 // pred_fallthru
          _
        // Predicated region
        $region61: #{model_forward.1} parent=47 // pred_check
          %p355 = pneg %p125
        $region62: #{model_forward.1} parent=47 // pred_check_branch
          %357 = sbr.rel (%p355) target = $region64
        $region63: #{model_forward.1} parent=47 // pred_region
          %358 = dma.done [#allocation10], 65536
        $region64: #{model_forward.1} parent=47 // pred_fallthru
          _
        // Predicated region
        $region65: #{model_forward.1} parent=47 // pred_check
          %p359 = pneg %p146
        $region66: #{model_forward.1} parent=47 // pred_check_branch
          %361 = sbr.rel (%p359) target = $region68
        $region67: #{model_forward.1} parent=47 // pred_region
          %362 = dma.done [#allocation10], 128
        $region68: #{model_forward.1} parent=47 // pred_fallthru
          _
        // Predicated region
        $region69: #{model_forward.1} parent=47 // pred_check
          %p363 = pneg %p167
        $region70: #{model_forward.1} parent=47 // pred_check_branch
          %365 = sbr.rel (%p363) target = $region72
        $region71: #{model_forward.1} parent=47 // pred_region
          %366 = dma.done [#allocation13], 8192
        $region72: #{model_forward.1} parent=47 // pred_fallthru
          _
        // Predicated region
        $region73: #{model_forward.1} parent=47 // pred_check
          %p367 = pneg %p188
        $region74: #{model_forward.1} parent=47 // pred_check_branch
          %369 = sbr.rel (%p367) target = $region76
        $region75: #{model_forward.1} parent=47 // pred_region
          %370 = dma.done [#allocation13], 16
        $region76: #{model_forward.1} parent=47 // pred_fallthru
          _
        %p371 = pneg %p57
        %p372 = pneg %p54
        %s373 = sand.u32 %s24, 1
        %s374 = scalar_lea.sflag [#allocation7], %s373
        %s375 = sand.u32 %s70, 1
        %s376 = smul.addr %s375, 2048
        %s377 = scalar_lea.vmem [#allocation6], %s376
        %p378 = pneg %p83
        %p379 = pneg %p80
        %p380 = pneg %p104
        %p381 = pneg %p101
        %p382 = pneg %p125
        %p383 = pneg %p122
        %p384 = pneg %p146
        %p385 = pneg %p143
        %p386 = pneg %p167
        %p387 = pneg %p164
        %p388 = pneg %p188
        %p389 = pneg %p185
        %p390 = pneg %p214
        %p391 = pneg %p211
        %s392 = smul.u32 2, %s28
        %p393 = scmp.lt.s32.totalorder %s392, 1
        %s394 = scalar_select %p393, %s392, 1
        %s395 = smul.addr %s394, 8
        %s396 = scalar_lea.vmem %s7, %s395
        %s397 = smul.u32 2, %s28
        %s398 = smul.u32 64, %s29
        %s399 = smul.u32 2, %s28
        %p400 = scmp.lt.s32.totalorder %s399, 1
        %s401 = scalar_select %p400, %s399, 1
        %s402 = smul.addr %s401, 8
        %s403 = scalar_lea.vmem %s7, %s402
        %s404 = smul.u32 2, %s28
        %p406 = scmp.eq.s32.totalorder %s29, 0
        // Predicated region
        $region77: #{model_forward.1} parent=47 // pred_check
          %p407 = pneg %p406
        $region78: #{model_forward.1} parent=47 // pred_check_branch
          %409 = sbr.rel (%p407) target = $region80
        $region79: #{model_forward.1} parent=47 // pred_region
          %v410 = vld [vmem:[#allocation4] sm:$0xff]
          %v411 = vld [vmem:[#allocation4 + $0x8] sm:$0xff]
          %v412 = vld [vmem:[#allocation4 + $0x10] sm:$0xff]
          %v413 = vld [vmem:[#allocation4 + $0x18] sm:$0xff]
          %v414 = vld [vmem:[#allocation4 + $0x80] sm:$0xff]
          %v415 = vld [vmem:[#allocation4 + $0x88] sm:$0xff]
          %v416 = vld [vmem:[#allocation4 + $0x90] sm:$0xff]
          %v417 = vld [vmem:[#allocation4 + $0x98] sm:$0xff]
          %v418 = vpack.c.bf16 %v414, %v410
          %v419 = vpack.c.bf16 %v415, %v411
          %v420 = vpack.c.bf16 %v416, %v412
          %v421 = vpack.c.bf16 %v417, %v413
          %v426 = vunpack.c.l.b16 %v418
          %v427 = vunpack.c.l.b16 %v419
          %v428 = vunpack.c.l.b16 %v420
          %v429 = vunpack.c.l.b16 %v421
          %v430 = vunpack.c.h.b16 %v418
          %v431 = vunpack.c.h.b16 %v419
          %v432 = vunpack.c.h.b16 %v420
          %v433 = vunpack.c.h.b16 %v421
          %v434 = vpack.c.b16 %v427, %v426
          %v435 = vpack.c.b16 %v429, %v428
          %v436 = vpack.c.b16 %v431, %v430
          %v437 = vpack.c.b16 %v433, %v432
          %442 = vst [vmem:[#allocation2] sm:$0xff] %v434
          %443 = vst [vmem:[#allocation2 + $0x8] sm:$0xff] %v435
          %444 = vst [vmem:[#allocation2 + $0x10] sm:$0xff] %v436
          %445 = vst [vmem:[#allocation2 + $0x18] sm:$0xff] %v437
          %v446 = vld [vmem:[#allocation4 + $0x20] sm:$0xff]
          %v447 = vld [vmem:[#allocation4 + $0x28] sm:$0xff]
          %v448 = vld [vmem:[#allocation4 + $0x30] sm:$0xff]
          %v449 = vld [vmem:[#allocation4 + $0x38] sm:$0xff]
          %v450 = vld [vmem:[#allocation4 + $0xa0] sm:$0xff]
          %v451 = vld [vmem:[#allocation4 + $0xa8] sm:$0xff]
          %v452 = vld [vmem:[#allocation4 + $0xb0] sm:$0xff]
          %v453 = vld [vmem:[#allocation4 + $0xb8] sm:$0xff]
          %v454 = vpack.c.bf16 %v450, %v446
          %v455 = vpack.c.bf16 %v451, %v447
          %v456 = vpack.c.bf16 %v452, %v448
          %v457 = vpack.c.bf16 %v453, %v449
          %v462 = vunpack.c.l.b16 %v454
          %v463 = vunpack.c.l.b16 %v455
          %v464 = vunpack.c.l.b16 %v456
          %v465 = vunpack.c.l.b16 %v457
          %v466 = vunpack.c.h.b16 %v454
          %v467 = vunpack.c.h.b16 %v455
          %v468 = vunpack.c.h.b16 %v456
          %v469 = vunpack.c.h.b16 %v457
          %v470 = vpack.c.b16 %v463, %v462
          %v471 = vpack.c.b16 %v465, %v464
          %v472 = vpack.c.b16 %v467, %v466
          %v473 = vpack.c.b16 %v469, %v468
          %s478 = scalar_lea.vmem [#allocation2], 32
          %479 = vst [vmem:[%s478] sm:$0xff] %v470
          %480 = vst [vmem:[%s478 + $0x8] sm:$0xff] %v471
          %481 = vst [vmem:[%s478 + $0x10] sm:$0xff] %v472
          %482 = vst [vmem:[%s478 + $0x18] sm:$0xff] %v473
          %v483 = vld [vmem:[#allocation4 + $0x40] sm:$0xff]
          %v484 = vld [vmem:[#allocation4 + $0x48] sm:$0xff]
          %v485 = vld [vmem:[#allocation4 + $0x50] sm:$0xff]
          %v486 = vld [vmem:[#allocation4 + $0x58] sm:$0xff]
          %v487 = vld [vmem:[#allocation4 + $0xc0] sm:$0xff]
          %v488 = vld [vmem:[#allocation4 + $0xc8] sm:$0xff]
          %v489 = vld [vmem:[#allocation4 + $0xd0] sm:$0xff]
          %v490 = vld [vmem:[#allocation4 + $0xd8] sm:$0xff]
          %v491 = vpack.c.bf16 %v487, %v483
          %v492 = vpack.c.bf16 %v488, %v484
          %v493 = vpack.c.bf16 %v489, %v485
          %v494 = vpack.c.bf16 %v490, %v486
          %v499 = vunpack.c.l.b16 %v491
          %v500 = vunpack.c.l.b16 %v492
          %v501 = vunpack.c.l.b16 %v493
          %v502 = vunpack.c.l.b16 %v494
          %v503 = vunpack.c.h.b16 %v491
          %v504 = vunpack.c.h.b16 %v492
          %v505 = vunpack.c.h.b16 %v493
          %v506 = vunpack.c.h.b16 %v494
          %v507 = vpack.c.b16 %v500, %v499
          %v508 = vpack.c.b16 %v502, %v501
          %v509 = vpack.c.b16 %v504, %v503
          %v510 = vpack.c.b16 %v506, %v505
          %s515 = scalar_lea.vmem [#allocation2], 64
          %516 = vst [vmem:[%s515] sm:$0xff] %v507
          %517 = vst [vmem:[%s515 + $0x8] sm:$0xff] %v508
          %518 = vst [vmem:[%s515 + $0x10] sm:$0xff] %v509
          %519 = vst [vmem:[%s515 + $0x18] sm:$0xff] %v510
          %s520 = scalar_lea.vmem [#allocation2], 96
          %521 = vst [vmem:[%s520] sm:$0xff] 0
          %522 = vst [vmem:[%s520 + $0x8] sm:$0xff] 0
          %523 = vst [vmem:[%s520 + $0x10] sm:$0xff] 0
          %524 = vst [vmem:[%s520 + $0x18] sm:$0xff] 0
          %v525 = vld [vmem:[#allocation4 + $0x60] sm:$0xff]
          %v526 = vld [vmem:[#allocation4 + $0x68] sm:$0xff]
          %v527 = vld [vmem:[#allocation4 + $0x70] sm:$0xff]
          %v528 = vld [vmem:[#allocation4 + $0x78] sm:$0xff]
          %v529 = vld [vmem:[#allocation4 + $0xe0] sm:$0xff]
          %v530 = vld [vmem:[#allocation4 + $0xe8] sm:$0xff]
          %v531 = vld [vmem:[#allocation4 + $0xf0] sm:$0xff]
          %v532 = vld [vmem:[#allocation4 + $0xf8] sm:$0xff]
          %v533 = vpack.c.bf16 %v529, %v525
          %v534 = vpack.c.bf16 %v530, %v526
          %v535 = vpack.c.bf16 %v531, %v527
          %v536 = vpack.c.bf16 %v532, %v528
          %v541 = vunpack.c.l.b16 %v533
          %v542 = vunpack.c.l.b16 %v534
          %v543 = vunpack.c.l.b16 %v535
          %v544 = vunpack.c.l.b16 %v536
          %v545 = vunpack.c.h.b16 %v533
          %v546 = vunpack.c.h.b16 %v534
          %v547 = vunpack.c.h.b16 %v535
          %v548 = vunpack.c.h.b16 %v536
          %v549 = vpack.c.b16 %v542, %v541
          %v550 = vpack.c.b16 %v544, %v543
          %v551 = vpack.c.b16 %v546, %v545
          %v552 = vpack.c.b16 %v548, %v547
          %557 = vst [vmem:[%s520] sm:$0xff] %v549
          %vm558 = vcmask 1043456
          %vm559 = vcmask 654340
          %vm560 = vmor %vm559, %vm558
          %561 = vst.msk [vmem:[%s520 + $0x8] sm:$0xff] %vm560, %v550
          %562 = vst [vmem:[%s520 + $0x10] sm:$0xff] %v551
          %563 = vst.msk [vmem:[%s520 + $0x18] sm:$0xff] %vm560, %v552
          %564 = vst [vmem:[#allocation3] sm:$0xff] 0.0
          %565 = vst [vmem:[#allocation3 + $0x8] sm:$0xff] 0.0
          %566 = vst [vmem:[#allocation3 + $0x10] sm:$0xff] 0.0
          %567 = vst [vmem:[#allocation3 + $0x18] sm:$0xff] 0.0
          %568 = vst [vmem:[#allocation3 + $0x20] sm:$0xff] 0.0
          %569 = vst [vmem:[#allocation3 + $0x28] sm:$0xff] 0.0
          %570 = vst [vmem:[#allocation3 + $0x30] sm:$0xff] 0.0
          %571 = vst [vmem:[#allocation3 + $0x38] sm:$0xff] 0.0
          %572 = vst [vmem:[#allocation3 + $0x40] sm:$0xff] 0.0
          %573 = vst [vmem:[#allocation3 + $0x48] sm:$0xff] 0.0
          %574 = vst [vmem:[#allocation3 + $0x50] sm:$0xff] 0.0
          %575 = vst [vmem:[#allocation3 + $0x58] sm:$0xff] 0.0
          %576 = vst [vmem:[#allocation3 + $0x60] sm:$0xff] 0.0
          %577 = vst [vmem:[#allocation3 + $0x68] sm:$0xff] 0.0
          %578 = vst [vmem:[#allocation3 + $0x70] sm:$0xff] 0.0
          %579 = vst [vmem:[#allocation3 + $0x78] sm:$0xff] 0.0
        $region80: #{model_forward.1} parent=47 // pred_fallthru
          _
        %v580 = vld [vmem:[#allocation3] sm:$0xff]
        %v581 = vld [vmem:[#allocation3 + $0x8] sm:$0xff]
        %v582 = vld [vmem:[#allocation3 + $0x10] sm:$0xff]
        %v583 = vld [vmem:[#allocation3 + $0x18] sm:$0xff]
        %v584 = vld [vmem:[#allocation3 + $0x20] sm:$0xff]
        %v585 = vld [vmem:[#allocation3 + $0x28] sm:$0xff]
        %v586 = vld [vmem:[#allocation3 + $0x30] sm:$0xff]
        %v587 = vld [vmem:[#allocation3 + $0x38] sm:$0xff]
        %v588 = vld [vmem:[#allocation3 + $0x40] sm:$0xff]
        %v589 = vld [vmem:[#allocation3 + $0x48] sm:$0xff]
        %v590 = vld [vmem:[#allocation3 + $0x50] sm:$0xff]
        %v591 = vld [vmem:[#allocation3 + $0x58] sm:$0xff]
        %v592 = vld [vmem:[#allocation3 + $0x60] sm:$0xff]
        %v593 = vld [vmem:[#allocation3 + $0x68] sm:$0xff]
        %v594 = vld [vmem:[#allocation3 + $0x70] sm:$0xff]
        %v595 = vld [vmem:[#allocation3 + $0x78] sm:$0xff]
        %s596 = smul.u32 %s29, 8
        %s597 = smul.addr %s596, 4
        %s598 = scalar_lea.vmem [#allocation2], %s597
        %v599 = vld [vmem:[%s598] sm:$0xff]
        %v600 = vld [vmem:[%s598 + $0x8] sm:$0xff]
        %v601 = vld [vmem:[%s598 + $0x10] sm:$0xff]
        %v602 = vld [vmem:[%s598 + $0x18] sm:$0xff]
        %v603 = vld [vmem:[%s346] sm:$0xff]
        %v604 = vld [vmem:[%s346 + $0x8] sm:$0xff]
        %v605 = vld [vmem:[%s346 + $0x10] sm:$0xff]
        %v606 = vld [vmem:[%s346 + $0x18] sm:$0xff]
        %v607 = vld [vmem:[%s346 + $0x20] sm:$0xff]
        %v608 = vld [vmem:[%s346 + $0x28] sm:$0xff]
        %v609 = vld [vmem:[%s346 + $0x30] sm:$0xff]
        %v610 = vld [vmem:[%s346 + $0x38] sm:$0xff]
        %v611 = vld [vmem:[%s346 + $0x40] sm:$0xff]
        %v612 = vld [vmem:[%s346 + $0x48] sm:$0xff]
        %v613 = vld [vmem:[%s346 + $0x50] sm:$0xff]
        %v614 = vld [vmem:[%s346 + $0x58] sm:$0xff]
        %v615 = vld [vmem:[%s346 + $0x60] sm:$0xff]
        %v616 = vld [vmem:[%s346 + $0x68] sm:$0xff]
        %v617 = vld [vmem:[%s346 + $0x70] sm:$0xff]
        %v618 = vld [vmem:[%s346 + $0x78] sm:$0xff]
        %v619 = vld [vmem:[%s346 + $0x80] sm:$0xff]
        %v620 = vld [vmem:[%s346 + $0x88] sm:$0xff]
        %v621 = vld [vmem:[%s346 + $0x90] sm:$0xff]
        %v622 = vld [vmem:[%s346 + $0x98] sm:$0xff]
        %v623 = vld [vmem:[%s346 + $0xa0] sm:$0xff]
        %v624 = vld [vmem:[%s346 + $0xa8] sm:$0xff]
        %v625 = vld [vmem:[%s346 + $0xb0] sm:$0xff]
        %v626 = vld [vmem:[%s346 + $0xb8] sm:$0xff]
        %v627 = vld [vmem:[%s346 + $0xc0] sm:$0xff]
        %v628 = vld [vmem:[%s346 + $0xc8] sm:$0xff]
        %v629 = vld [vmem:[%s346 + $0xd0] sm:$0xff]
        %v630 = vld [vmem:[%s346 + $0xd8] sm:$0xff]
        %v631 = vld [vmem:[%s346 + $0xe0] sm:$0xff]
        %v632 = vld [vmem:[%s346 + $0xe8] sm:$0xff]
        %v633 = vld [vmem:[%s346 + $0xf0] sm:$0xff]
        %v634 = vld [vmem:[%s346 + $0xf8] sm:$0xff]
        %v635 = vld [vmem:[%s346 + $0x100] sm:$0xff]
        %v636 = vld [vmem:[%s346 + $0x108] sm:$0xff]
        %v637 = vld [vmem:[%s346 + $0x110] sm:$0xff]
        %v638 = vld [vmem:[%s346 + $0x118] sm:$0xff]
        %v639 = vld [vmem:[%s346 + $0x120] sm:$0xff]
        %v640 = vld [vmem:[%s346 + $0x128] sm:$0xff]
        %v641 = vld [vmem:[%s346 + $0x130] sm:$0xff]
        %v642 = vld [vmem:[%s346 + $0x138] sm:$0xff]
        %v643 = vld [vmem:[%s346 + $0x140] sm:$0xff]
        %v644 = vld [vmem:[%s346 + $0x148] sm:$0xff]
        %v645 = vld [vmem:[%s346 + $0x150] sm:$0xff]
        %v646 = vld [vmem:[%s346 + $0x158] sm:$0xff]
        %v647 = vld [vmem:[%s346 + $0x160] sm:$0xff]
        %v648 = vld [vmem:[%s346 + $0x168] sm:$0xff]
        %v649 = vld [vmem:[%s346 + $0x170] sm:$0xff]
        %v650 = vld [vmem:[%s346 + $0x178] sm:$0xff]
        %v651 = vld [vmem:[%s346 + $0x180] sm:$0xff]
        %v652 = vld [vmem:[%s346 + $0x188] sm:$0xff]
        %v653 = vld [vmem:[%s346 + $0x190] sm:$0xff]
        %v654 = vld [vmem:[%s346 + $0x198] sm:$0xff]
        %v655 = vld [vmem:[%s346 + $0x1a0] sm:$0xff]
        %v656 = vld [vmem:[%s346 + $0x1a8] sm:$0xff]
        %v657 = vld [vmem:[%s346 + $0x1b0] sm:$0xff]
        %v658 = vld [vmem:[%s346 + $0x1b8] sm:$0xff]
        %v659 = vld [vmem:[%s346 + $0x1c0] sm:$0xff]
        %v660 = vld [vmem:[%s346 + $0x1c8] sm:$0xff]
        %v661 = vld [vmem:[%s346 + $0x1d0] sm:$0xff]
        %v662 = vld [vmem:[%s346 + $0x1d8] sm:$0xff]
        %v663 = vld [vmem:[%s346 + $0x1e0] sm:$0xff]
        %v664 = vld [vmem:[%s346 + $0x1e8] sm:$0xff]
        %v665 = vld [vmem:[%s346 + $0x1f0] sm:$0xff]
        %v666 = vld [vmem:[%s346 + $0x1f8] sm:$0xff]
        %v667 = vld [vmem:[%s346 + $0x200] sm:$0xff]
        %v668 = vld [vmem:[%s346 + $0x208] sm:$0xff]
        %v669 = vld [vmem:[%s346 + $0x210] sm:$0xff]
        %v670 = vld [vmem:[%s346 + $0x218] sm:$0xff]
        %v671 = vld [vmem:[%s346 + $0x220] sm:$0xff]
        %v672 = vld [vmem:[%s346 + $0x228] sm:$0xff]
        %v673 = vld [vmem:[%s346 + $0x230] sm:$0xff]
        %v674 = vld [vmem:[%s346 + $0x238] sm:$0xff]
        %v675 = vld [vmem:[%s346 + $0x240] sm:$0xff]
        %v676 = vld [vmem:[%s346 + $0x248] sm:$0xff]
        %v677 = vld [vmem:[%s346 + $0x250] sm:$0xff]
        %v678 = vld [vmem:[%s346 + $0x258] sm:$0xff]
        %v679 = vld [vmem:[%s346 + $0x260] sm:$0xff]
        %v680 = vld [vmem:[%s346 + $0x268] sm:$0xff]
        %v681 = vld [vmem:[%s346 + $0x270] sm:$0xff]
        %v682 = vld [vmem:[%s346 + $0x278] sm:$0xff]
        %v683 = vld [vmem:[%s346 + $0x280] sm:$0xff]
        %v684 = vld [vmem:[%s346 + $0x288] sm:$0xff]
        %v685 = vld [vmem:[%s346 + $0x290] sm:$0xff]
        %v686 = vld [vmem:[%s346 + $0x298] sm:$0xff]
        %v687 = vld [vmem:[%s346 + $0x2a0] sm:$0xff]
        %v688 = vld [vmem:[%s346 + $0x2a8] sm:$0xff]
        %v689 = vld [vmem:[%s346 + $0x2b0] sm:$0xff]
        %v690 = vld [vmem:[%s346 + $0x2b8] sm:$0xff]
        %v691 = vld [vmem:[%s346 + $0x2c0] sm:$0xff]
        %v692 = vld [vmem:[%s346 + $0x2c8] sm:$0xff]
        %v693 = vld [vmem:[%s346 + $0x2d0] sm:$0xff]
        %v694 = vld [vmem:[%s346 + $0x2d8] sm:$0xff]
        %v695 = vld [vmem:[%s346 + $0x2e0] sm:$0xff]
        %v696 = vld [vmem:[%s346 + $0x2e8] sm:$0xff]
        %v697 = vld [vmem:[%s346 + $0x2f0] sm:$0xff]
        %v698 = vld [vmem:[%s346 + $0x2f8] sm:$0xff]
        %v699 = vld [vmem:[%s346 + $0x300] sm:$0xff]
        %v700 = vld [vmem:[%s346 + $0x308] sm:$0xff]
        %v701 = vld [vmem:[%s346 + $0x310] sm:$0xff]
        %v702 = vld [vmem:[%s346 + $0x318] sm:$0xff]
        %v703 = vld [vmem:[%s346 + $0x320] sm:$0xff]
        %v704 = vld [vmem:[%s346 + $0x328] sm:$0xff]
        %v705 = vld [vmem:[%s346 + $0x330] sm:$0xff]
        %v706 = vld [vmem:[%s346 + $0x338] sm:$0xff]
        %v707 = vld [vmem:[%s346 + $0x340] sm:$0xff]
        %v708 = vld [vmem:[%s346 + $0x348] sm:$0xff]
        %v709 = vld [vmem:[%s346 + $0x350] sm:$0xff]
        %v710 = vld [vmem:[%s346 + $0x358] sm:$0xff]
        %v711 = vld [vmem:[%s346 + $0x360] sm:$0xff]
        %v712 = vld [vmem:[%s346 + $0x368] sm:$0xff]
        %v713 = vld [vmem:[%s346 + $0x370] sm:$0xff]
        %v714 = vld [vmem:[%s346 + $0x378] sm:$0xff]
        %v715 = vld [vmem:[%s346 + $0x380] sm:$0xff]
        %v716 = vld [vmem:[%s346 + $0x388] sm:$0xff]
        %v717 = vld [vmem:[%s346 + $0x390] sm:$0xff]
        %v718 = vld [vmem:[%s346 + $0x398] sm:$0xff]
        %v719 = vld [vmem:[%s346 + $0x3a0] sm:$0xff]
        %v720 = vld [vmem:[%s346 + $0x3a8] sm:$0xff]
        %v721 = vld [vmem:[%s346 + $0x3b0] sm:$0xff]
        %v722 = vld [vmem:[%s346 + $0x3b8] sm:$0xff]
        %v723 = vld [vmem:[%s346 + $0x3c0] sm:$0xff]
        %v724 = vld [vmem:[%s346 + $0x3c8] sm:$0xff]
        %v725 = vld [vmem:[%s346 + $0x3d0] sm:$0xff]
        %v726 = vld [vmem:[%s346 + $0x3d8] sm:$0xff]
        %v727 = vld [vmem:[%s346 + $0x3e0] sm:$0xff]
        %v728 = vld [vmem:[%s346 + $0x3e8] sm:$0xff]
        %v729 = vld [vmem:[%s346 + $0x3f0] sm:$0xff]
        %v730 = vld [vmem:[%s346 + $0x3f8] sm:$0xff]
        %v731 = vld [vmem:[%s346 + $0x400] sm:$0xff]
        %v732 = vld [vmem:[%s346 + $0x408] sm:$0xff]
        %v733 = vld [vmem:[%s346 + $0x410] sm:$0xff]
        %v734 = vld [vmem:[%s346 + $0x418] sm:$0xff]
        %v735 = vld [vmem:[%s346 + $0x420] sm:$0xff]
        %v736 = vld [vmem:[%s346 + $0x428] sm:$0xff]
        %v737 = vld [vmem:[%s346 + $0x430] sm:$0xff]
        %v738 = vld [vmem:[%s346 + $0x438] sm:$0xff]
        %v739 = vld [vmem:[%s346 + $0x440] sm:$0xff]
        %v740 = vld [vmem:[%s346 + $0x448] sm:$0xff]
        %v741 = vld [vmem:[%s346 + $0x450] sm:$0xff]
        %v742 = vld [vmem:[%s346 + $0x458] sm:$0xff]
        %v743 = vld [vmem:[%s346 + $0x460] sm:$0xff]
        %v744 = vld [vmem:[%s346 + $0x468] sm:$0xff]
        %v745 = vld [vmem:[%s346 + $0x470] sm:$0xff]
        %v746 = vld [vmem:[%s346 + $0x478] sm:$0xff]
        %v747 = vld [vmem:[%s346 + $0x480] sm:$0xff]
        %v748 = vld [vmem:[%s346 + $0x488] sm:$0xff]
        %v749 = vld [vmem:[%s346 + $0x490] sm:$0xff]
        %v750 = vld [vmem:[%s346 + $0x498] sm:$0xff]
        %v751 = vld [vmem:[%s346 + $0x4a0] sm:$0xff]
        %v752 = vld [vmem:[%s346 + $0x4a8] sm:$0xff]
        %v753 = vld [vmem:[%s346 + $0x4b0] sm:$0xff]
        %v754 = vld [vmem:[%s346 + $0x4b8] sm:$0xff]
        %v755 = vld [vmem:[%s346 + $0x4c0] sm:$0xff]
        %v756 = vld [vmem:[%s346 + $0x4c8] sm:$0xff]
        %v757 = vld [vmem:[%s346 + $0x4d0] sm:$0xff]
        %v758 = vld [vmem:[%s346 + $0x4d8] sm:$0xff]
        %v759 = vld [vmem:[%s346 + $0x4e0] sm:$0xff]
        %v760 = vld [vmem:[%s346 + $0x4e8] sm:$0xff]
        %v761 = vld [vmem:[%s346 + $0x4f0] sm:$0xff]
        %v762 = vld [vmem:[%s346 + $0x4f8] sm:$0xff]
        %v763 = vld [vmem:[%s346 + $0x500] sm:$0xff]
        %v764 = vld [vmem:[%s346 + $0x508] sm:$0xff]
        %v765 = vld [vmem:[%s346 + $0x510] sm:$0xff]
        %v766 = vld [vmem:[%s346 + $0x518] sm:$0xff]
        %v767 = vld [vmem:[%s346 + $0x520] sm:$0xff]
        %v768 = vld [vmem:[%s346 + $0x528] sm:$0xff]
        %v769 = vld [vmem:[%s346 + $0x530] sm:$0xff]
        %v770 = vld [vmem:[%s346 + $0x538] sm:$0xff]
        %v771 = vld [vmem:[%s346 + $0x540] sm:$0xff]
        %v772 = vld [vmem:[%s346 + $0x548] sm:$0xff]
        %v773 = vld [vmem:[%s346 + $0x550] sm:$0xff]
        %v774 = vld [vmem:[%s346 + $0x558] sm:$0xff]
        %v775 = vld [vmem:[%s346 + $0x560] sm:$0xff]
        %v776 = vld [vmem:[%s346 + $0x568] sm:$0xff]
        %v777 = vld [vmem:[%s346 + $0x570] sm:$0xff]
        %v778 = vld [vmem:[%s346 + $0x578] sm:$0xff]
        %v779 = vld [vmem:[%s346 + $0x580] sm:$0xff]
        %v780 = vld [vmem:[%s346 + $0x588] sm:$0xff]
        %v781 = vld [vmem:[%s346 + $0x590] sm:$0xff]
        %v782 = vld [vmem:[%s346 + $0x598] sm:$0xff]
        %v783 = vld [vmem:[%s346 + $0x5a0] sm:$0xff]
        %v784 = vld [vmem:[%s346 + $0x5a8] sm:$0xff]
        %v785 = vld [vmem:[%s346 + $0x5b0] sm:$0xff]
        %v786 = vld [vmem:[%s346 + $0x5b8] sm:$0xff]
        %v787 = vld [vmem:[%s346 + $0x5c0] sm:$0xff]
        %v788 = vld [vmem:[%s346 + $0x5c8] sm:$0xff]
        %v789 = vld [vmem:[%s346 + $0x5d0] sm:$0xff]
        %v790 = vld [vmem:[%s346 + $0x5d8] sm:$0xff]
        %v791 = vld [vmem:[%s346 + $0x5e0] sm:$0xff]
        %v792 = vld [vmem:[%s346 + $0x5e8] sm:$0xff]
        %v793 = vld [vmem:[%s346 + $0x5f0] sm:$0xff]
        %v794 = vld [vmem:[%s346 + $0x5f8] sm:$0xff]
        %v795 = vld [vmem:[%s346 + $0x600] sm:$0xff]
        %v796 = vld [vmem:[%s346 + $0x608] sm:$0xff]
        %v797 = vld [vmem:[%s346 + $0x610] sm:$0xff]
        %v798 = vld [vmem:[%s346 + $0x618] sm:$0xff]
        %v799 = vld [vmem:[%s346 + $0x620] sm:$0xff]
        %v800 = vld [vmem:[%s346 + $0x628] sm:$0xff]
        %v801 = vld [vmem:[%s346 + $0x630] sm:$0xff]
        %v802 = vld [vmem:[%s346 + $0x638] sm:$0xff]
        %v803 = vld [vmem:[%s346 + $0x640] sm:$0xff]
        %v804 = vld [vmem:[%s346 + $0x648] sm:$0xff]
        %v805 = vld [vmem:[%s346 + $0x650] sm:$0xff]
        %v806 = vld [vmem:[%s346 + $0x658] sm:$0xff]
        %v807 = vld [vmem:[%s346 + $0x660] sm:$0xff]
        %v808 = vld [vmem:[%s346 + $0x668] sm:$0xff]
        %v809 = vld [vmem:[%s346 + $0x670] sm:$0xff]
        %v810 = vld [vmem:[%s346 + $0x678] sm:$0xff]
        %v811 = vld [vmem:[%s346 + $0x680] sm:$0xff]
        %v812 = vld [vmem:[%s346 + $0x688] sm:$0xff]
        %v813 = vld [vmem:[%s346 + $0x690] sm:$0xff]
        %v814 = vld [vmem:[%s346 + $0x698] sm:$0xff]
        %v815 = vld [vmem:[%s346 + $0x6a0] sm:$0xff]
        %v816 = vld [vmem:[%s346 + $0x6a8] sm:$0xff]
        %v817 = vld [vmem:[%s346 + $0x6b0] sm:$0xff]
        %v818 = vld [vmem:[%s346 + $0x6b8] sm:$0xff]
        %v819 = vld [vmem:[%s346 + $0x6c0] sm:$0xff]
        %v820 = vld [vmem:[%s346 + $0x6c8] sm:$0xff]
        %v821 = vld [vmem:[%s346 + $0x6d0] sm:$0xff]
        %v822 = vld [vmem:[%s346 + $0x6d8] sm:$0xff]
        %v823 = vld [vmem:[%s346 + $0x6e0] sm:$0xff]
        %v824 = vld [vmem:[%s346 + $0x6e8] sm:$0xff]
        %v825 = vld [vmem:[%s346 + $0x6f0] sm:$0xff]
        %v826 = vld [vmem:[%s346 + $0x6f8] sm:$0xff]
        %v827 = vld [vmem:[%s346 + $0x700] sm:$0xff]
        %v828 = vld [vmem:[%s346 + $0x708] sm:$0xff]
        %v829 = vld [vmem:[%s346 + $0x710] sm:$0xff]
        %v830 = vld [vmem:[%s346 + $0x718] sm:$0xff]
        %v831 = vld [vmem:[%s346 + $0x720] sm:$0xff]
        %v832 = vld [vmem:[%s346 + $0x728] sm:$0xff]
        %v833 = vld [vmem:[%s346 + $0x730] sm:$0xff]
        %v834 = vld [vmem:[%s346 + $0x738] sm:$0xff]
        %v835 = vld [vmem:[%s346 + $0x740] sm:$0xff]
        %v836 = vld [vmem:[%s346 + $0x748] sm:$0xff]
        %v837 = vld [vmem:[%s346 + $0x750] sm:$0xff]
        %v838 = vld [vmem:[%s346 + $0x758] sm:$0xff]
        %v839 = vld [vmem:[%s346 + $0x760] sm:$0xff]
        %v840 = vld [vmem:[%s346 + $0x768] sm:$0xff]
        %v841 = vld [vmem:[%s346 + $0x770] sm:$0xff]
        %v842 = vld [vmem:[%s346 + $0x778] sm:$0xff]
        %v843 = vld [vmem:[%s346 + $0x780] sm:$0xff]
        %v844 = vld [vmem:[%s346 + $0x788] sm:$0xff]
        %v845 = vld [vmem:[%s346 + $0x790] sm:$0xff]
        %v846 = vld [vmem:[%s346 + $0x798] sm:$0xff]
        %v847 = vld [vmem:[%s346 + $0x7a0] sm:$0xff]
        %v848 = vld [vmem:[%s346 + $0x7a8] sm:$0xff]
        %v849 = vld [vmem:[%s346 + $0x7b0] sm:$0xff]
        %v850 = vld [vmem:[%s346 + $0x7b8] sm:$0xff]
        %v851 = vld [vmem:[%s346 + $0x7c0] sm:$0xff]
        %v852 = vld [vmem:[%s346 + $0x7c8] sm:$0xff]
        %v853 = vld [vmem:[%s346 + $0x7d0] sm:$0xff]
        %v854 = vld [vmem:[%s346 + $0x7d8] sm:$0xff]
        %v855 = vld [vmem:[%s346 + $0x7e0] sm:$0xff]
        %v856 = vld [vmem:[%s346 + $0x7e8] sm:$0xff]
        %v857 = vld [vmem:[%s346 + $0x7f0] sm:$0xff]
        %v858 = vld [vmem:[%s346 + $0x7f8] sm:$0xff]
        %v863 = vunpack.c.l.b16 %v599
        %v864 = vunpack.c.h.b16 %v599
        %v865 = vunpack.c.l.b16 %v600
        %v866 = vunpack.c.h.b16 %v600
        %v867 = vunpack.c.l.b16 %v601
        %v868 = vunpack.c.h.b16 %v601
        %v869 = vunpack.c.l.b16 %v602
        %v870 = vunpack.c.h.b16 %v602
        %v871 = vpack.c.b16 %v867, %v863
        %v872 = vpack.c.b16 %v868, %v864
        %v873 = vpack.c.b16 %v869, %v865
        %v874 = vpack.c.b16 %v870, %v866
        %v1135 = vunpack.c.l.b16 %v603
        %v1136 = vunpack.c.h.b16 %v603
        %v1137 = vunpack.c.l.b16 %v604
        %v1138 = vunpack.c.h.b16 %v604
        %v1139 = vunpack.c.l.b16 %v605
        %v1140 = vunpack.c.h.b16 %v605
        %v1141 = vunpack.c.l.b16 %v606
        %v1142 = vunpack.c.h.b16 %v606
        %v1143 = vunpack.c.l.b16 %v607
        %v1144 = vunpack.c.h.b16 %v607
        %v1145 = vunpack.c.l.b16 %v608
        %v1146 = vunpack.c.h.b16 %v608
        %v1147 = vunpack.c.l.b16 %v609
        %v1148 = vunpack.c.h.b16 %v609
        %v1149 = vunpack.c.l.b16 %v610
        %v1150 = vunpack.c.h.b16 %v610
        %v1151 = vunpack.c.l.b16 %v611
        %v1152 = vunpack.c.h.b16 %v611
        %v1153 = vunpack.c.l.b16 %v612
        %v1154 = vunpack.c.h.b16 %v612
        %v1155 = vunpack.c.l.b16 %v613
        %v1156 = vunpack.c.h.b16 %v613
        %v1157 = vunpack.c.l.b16 %v614
        %v1158 = vunpack.c.h.b16 %v614
        %v1159 = vunpack.c.l.b16 %v615
        %v1160 = vunpack.c.h.b16 %v615
        %v1161 = vunpack.c.l.b16 %v616
        %v1162 = vunpack.c.h.b16 %v616
        %v1163 = vunpack.c.l.b16 %v617
        %v1164 = vunpack.c.h.b16 %v617
        %v1165 = vunpack.c.l.b16 %v618
        %v1166 = vunpack.c.h.b16 %v618
        %v1167 = vunpack.c.l.b16 %v619
        %v1168 = vunpack.c.h.b16 %v619
        %v1169 = vunpack.c.l.b16 %v620
        %v1170 = vunpack.c.h.b16 %v620
        %v1171 = vunpack.c.l.b16 %v621
        %v1172 = vunpack.c.h.b16 %v621
        %v1173 = vunpack.c.l.b16 %v622
        %v1174 = vunpack.c.h.b16 %v622
        %v1175 = vunpack.c.l.b16 %v623
        %v1176 = vunpack.c.h.b16 %v623
        %v1177 = vunpack.c.l.b16 %v624
        %v1178 = vunpack.c.h.b16 %v624
        %v1179 = vunpack.c.l.b16 %v625
        %v1180 = vunpack.c.h.b16 %v625
        %v1181 = vunpack.c.l.b16 %v626
        %v1182 = vunpack.c.h.b16 %v626
        %v1183 = vunpack.c.l.b16 %v627
        %v1184 = vunpack.c.h.b16 %v627
        %v1185 = vunpack.c.l.b16 %v628
        %v1186 = vunpack.c.h.b16 %v628
        %v1187 = vunpack.c.l.b16 %v629
        %v1188 = vunpack.c.h.b16 %v629
        %v1189 = vunpack.c.l.b16 %v630
        %v1190 = vunpack.c.h.b16 %v630
        %v1191 = vunpack.c.l.b16 %v631
        %v1192 = vunpack.c.h.b16 %v631
        %v1193 = vunpack.c.l.b16 %v632
        %v1194 = vunpack.c.h.b16 %v632
        %v1195 = vunpack.c.l.b16 %v633
        %v1196 = vunpack.c.h.b16 %v633
        %v1197 = vunpack.c.l.b16 %v634
        %v1198 = vunpack.c.h.b16 %v634
        %v1199 = vunpack.c.l.b16 %v635
        %v1200 = vunpack.c.h.b16 %v635
        %v1201 = vunpack.c.l.b16 %v636
        %v1202 = vunpack.c.h.b16 %v636
        %v1203 = vunpack.c.l.b16 %v637
        %v1204 = vunpack.c.h.b16 %v637
        %v1205 = vunpack.c.l.b16 %v638
        %v1206 = vunpack.c.h.b16 %v638
        %v1207 = vunpack.c.l.b16 %v639
        %v1208 = vunpack.c.h.b16 %v639
        %v1209 = vunpack.c.l.b16 %v640
        %v1210 = vunpack.c.h.b16 %v640
        %v1211 = vunpack.c.l.b16 %v641
        %v1212 = vunpack.c.h.b16 %v641
        %v1213 = vunpack.c.l.b16 %v642
        %v1214 = vunpack.c.h.b16 %v642
        %v1215 = vunpack.c.l.b16 %v643
        %v1216 = vunpack.c.h.b16 %v643
        %v1217 = vunpack.c.l.b16 %v644
        %v1218 = vunpack.c.h.b16 %v644
        %v1219 = vunpack.c.l.b16 %v645
        %v1220 = vunpack.c.h.b16 %v645
        %v1221 = vunpack.c.l.b16 %v646
        %v1222 = vunpack.c.h.b16 %v646
        %v1223 = vunpack.c.l.b16 %v647
        %v1224 = vunpack.c.h.b16 %v647
        %v1225 = vunpack.c.l.b16 %v648
        %v1226 = vunpack.c.h.b16 %v648
        %v1227 = vunpack.c.l.b16 %v649
        %v1228 = vunpack.c.h.b16 %v649
        %v1229 = vunpack.c.l.b16 %v650
        %v1230 = vunpack.c.h.b16 %v650
        %v1231 = vunpack.c.l.b16 %v651
        %v1232 = vunpack.c.h.b16 %v651
        %v1233 = vunpack.c.l.b16 %v652
        %v1234 = vunpack.c.h.b16 %v652
        %v1235 = vunpack.c.l.b16 %v653
        %v1236 = vunpack.c.h.b16 %v653
        %v1237 = vunpack.c.l.b16 %v654
        %v1238 = vunpack.c.h.b16 %v654
        %v1239 = vunpack.c.l.b16 %v655
        %v1240 = vunpack.c.h.b16 %v655
        %v1241 = vunpack.c.l.b16 %v656
        %v1242 = vunpack.c.h.b16 %v656
        %v1243 = vunpack.c.l.b16 %v657
        %v1244 = vunpack.c.h.b16 %v657
        %v1245 = vunpack.c.l.b16 %v658
        %v1246 = vunpack.c.h.b16 %v658
        %v1247 = vunpack.c.l.b16 %v659
        %v1248 = vunpack.c.h.b16 %v659
        %v1249 = vunpack.c.l.b16 %v660
        %v1250 = vunpack.c.h.b16 %v660
        %v1251 = vunpack.c.l.b16 %v661
        %v1252 = vunpack.c.h.b16 %v661
        %v1253 = vunpack.c.l.b16 %v662
        %v1254 = vunpack.c.h.b16 %v662
        %v1255 = vunpack.c.l.b16 %v663
        %v1256 = vunpack.c.h.b16 %v663
        %v1257 = vunpack.c.l.b16 %v664
        %v1258 = vunpack.c.h.b16 %v664
        %v1259 = vunpack.c.l.b16 %v665
        %v1260 = vunpack.c.h.b16 %v665
        %v1261 = vunpack.c.l.b16 %v666
        %v1262 = vunpack.c.h.b16 %v666
        %v1263 = vunpack.c.l.b16 %v667
        %v1264 = vunpack.c.h.b16 %v667
        %v1265 = vunpack.c.l.b16 %v668
        %v1266 = vunpack.c.h.b16 %v668
        %v1267 = vunpack.c.l.b16 %v669
        %v1268 = vunpack.c.h.b16 %v669
        %v1269 = vunpack.c.l.b16 %v670
        %v1270 = vunpack.c.h.b16 %v670
        %v1271 = vunpack.c.l.b16 %v671
        %v1272 = vunpack.c.h.b16 %v671
        %v1273 = vunpack.c.l.b16 %v672
        %v1274 = vunpack.c.h.b16 %v672
        %v1275 = vunpack.c.l.b16 %v673
        %v1276 = vunpack.c.h.b16 %v673
        %v1277 = vunpack.c.l.b16 %v674
        %v1278 = vunpack.c.h.b16 %v674
        %v1279 = vunpack.c.l.b16 %v675
        %v1280 = vunpack.c.h.b16 %v675
        %v1281 = vunpack.c.l.b16 %v676
        %v1282 = vunpack.c.h.b16 %v676
        %v1283 = vunpack.c.l.b16 %v677
        %v1284 = vunpack.c.h.b16 %v677
        %v1285 = vunpack.c.l.b16 %v678
        %v1286 = vunpack.c.h.b16 %v678
        %v1287 = vunpack.c.l.b16 %v679
        %v1288 = vunpack.c.h.b16 %v679
        %v1289 = vunpack.c.l.b16 %v680
        %v1290 = vunpack.c.h.b16 %v680
        %v1291 = vunpack.c.l.b16 %v681
        %v1292 = vunpack.c.h.b16 %v681
        %v1293 = vunpack.c.l.b16 %v682
        %v1294 = vunpack.c.h.b16 %v682
        %v1295 = vunpack.c.l.b16 %v683
        %v1296 = vunpack.c.h.b16 %v683
        %v1297 = vunpack.c.l.b16 %v684
        %v1298 = vunpack.c.h.b16 %v684
        %v1299 = vunpack.c.l.b16 %v685
        %v1300 = vunpack.c.h.b16 %v685
        %v1301 = vunpack.c.l.b16 %v686
        %v1302 = vunpack.c.h.b16 %v686
        %v1303 = vunpack.c.l.b16 %v687
        %v1304 = vunpack.c.h.b16 %v687
        %v1305 = vunpack.c.l.b16 %v688
        %v1306 = vunpack.c.h.b16 %v688
        %v1307 = vunpack.c.l.b16 %v689
        %v1308 = vunpack.c.h.b16 %v689
        %v1309 = vunpack.c.l.b16 %v690
        %v1310 = vunpack.c.h.b16 %v690
        %v1311 = vunpack.c.l.b16 %v691
        %v1312 = vunpack.c.h.b16 %v691
        %v1313 = vunpack.c.l.b16 %v692
        %v1314 = vunpack.c.h.b16 %v692
        %v1315 = vunpack.c.l.b16 %v693
        %v1316 = vunpack.c.h.b16 %v693
        %v1317 = vunpack.c.l.b16 %v694
        %v1318 = vunpack.c.h.b16 %v694
        %v1319 = vunpack.c.l.b16 %v695
        %v1320 = vunpack.c.h.b16 %v695
        %v1321 = vunpack.c.l.b16 %v696
        %v1322 = vunpack.c.h.b16 %v696
        %v1323 = vunpack.c.l.b16 %v697
        %v1324 = vunpack.c.h.b16 %v697
        %v1325 = vunpack.c.l.b16 %v698
        %v1326 = vunpack.c.h.b16 %v698
        %v1327 = vunpack.c.l.b16 %v699
        %v1328 = vunpack.c.h.b16 %v699
        %v1329 = vunpack.c.l.b16 %v700
        %v1330 = vunpack.c.h.b16 %v700
        %v1331 = vunpack.c.l.b16 %v701
        %v1332 = vunpack.c.h.b16 %v701
        %v1333 = vunpack.c.l.b16 %v702
        %v1334 = vunpack.c.h.b16 %v702
        %v1335 = vunpack.c.l.b16 %v703
        %v1336 = vunpack.c.h.b16 %v703
        %v1337 = vunpack.c.l.b16 %v704
        %v1338 = vunpack.c.h.b16 %v704
        %v1339 = vunpack.c.l.b16 %v705
        %v1340 = vunpack.c.h.b16 %v705
        %v1341 = vunpack.c.l.b16 %v706
        %v1342 = vunpack.c.h.b16 %v706
        %v1343 = vunpack.c.l.b16 %v707
        %v1344 = vunpack.c.h.b16 %v707
        %v1345 = vunpack.c.l.b16 %v708
        %v1346 = vunpack.c.h.b16 %v708
        %v1347 = vunpack.c.l.b16 %v709
        %v1348 = vunpack.c.h.b16 %v709
        %v1349 = vunpack.c.l.b16 %v710
        %v1350 = vunpack.c.h.b16 %v710
        %v1351 = vunpack.c.l.b16 %v711
        %v1352 = vunpack.c.h.b16 %v711
        %v1353 = vunpack.c.l.b16 %v712
        %v1354 = vunpack.c.h.b16 %v712
        %v1355 = vunpack.c.l.b16 %v713
        %v1356 = vunpack.c.h.b16 %v713
        %v1357 = vunpack.c.l.b16 %v714
        %v1358 = vunpack.c.h.b16 %v714
        %v1359 = vunpack.c.l.b16 %v715
        %v1360 = vunpack.c.h.b16 %v715
        %v1361 = vunpack.c.l.b16 %v716
        %v1362 = vunpack.c.h.b16 %v716
        %v1363 = vunpack.c.l.b16 %v717
        %v1364 = vunpack.c.h.b16 %v717
        %v1365 = vunpack.c.l.b16 %v718
        %v1366 = vunpack.c.h.b16 %v718
        %v1367 = vunpack.c.l.b16 %v719
        %v1368 = vunpack.c.h.b16 %v719
        %v1369 = vunpack.c.l.b16 %v720
        %v1370 = vunpack.c.h.b16 %v720
        %v1371 = vunpack.c.l.b16 %v721
        %v1372 = vunpack.c.h.b16 %v721
        %v1373 = vunpack.c.l.b16 %v722
        %v1374 = vunpack.c.h.b16 %v722
        %v1375 = vunpack.c.l.b16 %v723
        %v1376 = vunpack.c.h.b16 %v723
        %v1377 = vunpack.c.l.b16 %v724
        %v1378 = vunpack.c.h.b16 %v724
        %v1379 = vunpack.c.l.b16 %v725
        %v1380 = vunpack.c.h.b16 %v725
        %v1381 = vunpack.c.l.b16 %v726
        %v1382 = vunpack.c.h.b16 %v726
        %v1383 = vunpack.c.l.b16 %v727
        %v1384 = vunpack.c.h.b16 %v727
        %v1385 = vunpack.c.l.b16 %v728
        %v1386 = vunpack.c.h.b16 %v728
        %v1387 = vunpack.c.l.b16 %v729
        %v1388 = vunpack.c.h.b16 %v729
        %v1389 = vunpack.c.l.b16 %v730
        %v1390 = vunpack.c.h.b16 %v730
        %v1391 = vunpack.c.l.b16 %v731
        %v1392 = vunpack.c.h.b16 %v731
        %v1393 = vunpack.c.l.b16 %v732
        %v1394 = vunpack.c.h.b16 %v732
        %v1395 = vunpack.c.l.b16 %v733
        %v1396 = vunpack.c.h.b16 %v733
        %v1397 = vunpack.c.l.b16 %v734
        %v1398 = vunpack.c.h.b16 %v734
        %v1399 = vunpack.c.l.b16 %v735
        %v1400 = vunpack.c.h.b16 %v735
        %v1401 = vunpack.c.l.b16 %v736
        %v1402 = vunpack.c.h.b16 %v736
        %v1403 = vunpack.c.l.b16 %v737
        %v1404 = vunpack.c.h.b16 %v737
        %v1405 = vunpack.c.l.b16 %v738
        %v1406 = vunpack.c.h.b16 %v738
        %v1407 = vunpack.c.l.b16 %v739
        %v1408 = vunpack.c.h.b16 %v739
        %v1409 = vunpack.c.l.b16 %v740
        %v1410 = vunpack.c.h.b16 %v740
        %v1411 = vunpack.c.l.b16 %v741
        %v1412 = vunpack.c.h.b16 %v741
        %v1413 = vunpack.c.l.b16 %v742
        %v1414 = vunpack.c.h.b16 %v742
        %v1415 = vunpack.c.l.b16 %v743
        %v1416 = vunpack.c.h.b16 %v743
        %v1417 = vunpack.c.l.b16 %v744
        %v1418 = vunpack.c.h.b16 %v744
        %v1419 = vunpack.c.l.b16 %v745
        %v1420 = vunpack.c.h.b16 %v745
        %v1421 = vunpack.c.l.b16 %v746
        %v1422 = vunpack.c.h.b16 %v746
        %v1423 = vunpack.c.l.b16 %v747
        %v1424 = vunpack.c.h.b16 %v747
        %v1425 = vunpack.c.l.b16 %v748
        %v1426 = vunpack.c.h.b16 %v748
        %v1427 = vunpack.c.l.b16 %v749
        %v1428 = vunpack.c.h.b16 %v749
        %v1429 = vunpack.c.l.b16 %v750
        %v1430 = vunpack.c.h.b16 %v750
        %v1431 = vunpack.c.l.b16 %v751
        %v1432 = vunpack.c.h.b16 %v751
        %v1433 = vunpack.c.l.b16 %v752
        %v1434 = vunpack.c.h.b16 %v752
        %v1435 = vunpack.c.l.b16 %v753
        %v1436 = vunpack.c.h.b16 %v753
        %v1437 = vunpack.c.l.b16 %v754
        %v1438 = vunpack.c.h.b16 %v754
        %v1439 = vunpack.c.l.b16 %v755
        %v1440 = vunpack.c.h.b16 %v755
        %v1441 = vunpack.c.l.b16 %v756
        %v1442 = vunpack.c.h.b16 %v756
        %v1443 = vunpack.c.l.b16 %v757
        %v1444 = vunpack.c.h.b16 %v757
        %v1445 = vunpack.c.l.b16 %v758
        %v1446 = vunpack.c.h.b16 %v758
        %v1447 = vunpack.c.l.b16 %v759
        %v1448 = vunpack.c.h.b16 %v759
        %v1449 = vunpack.c.l.b16 %v760
        %v1450 = vunpack.c.h.b16 %v760
        %v1451 = vunpack.c.l.b16 %v761
        %v1452 = vunpack.c.h.b16 %v761
        %v1453 = vunpack.c.l.b16 %v762
        %v1454 = vunpack.c.h.b16 %v762
        %v1455 = vunpack.c.l.b16 %v763
        %v1456 = vunpack.c.h.b16 %v763
        %v1457 = vunpack.c.l.b16 %v764
        %v1458 = vunpack.c.h.b16 %v764
        %v1459 = vunpack.c.l.b16 %v765
        %v1460 = vunpack.c.h.b16 %v765
        %v1461 = vunpack.c.l.b16 %v766
        %v1462 = vunpack.c.h.b16 %v766
        %v1463 = vunpack.c.l.b16 %v767
        %v1464 = vunpack.c.h.b16 %v767
        %v1465 = vunpack.c.l.b16 %v768
        %v1466 = vunpack.c.h.b16 %v768
        %v1467 = vunpack.c.l.b16 %v769
        %v1468 = vunpack.c.h.b16 %v769
        %v1469 = vunpack.c.l.b16 %v770
        %v1470 = vunpack.c.h.b16 %v770
        %v1471 = vunpack.c.l.b16 %v771
        %v1472 = vunpack.c.h.b16 %v771
        %v1473 = vunpack.c.l.b16 %v772
        %v1474 = vunpack.c.h.b16 %v772
        %v1475 = vunpack.c.l.b16 %v773
        %v1476 = vunpack.c.h.b16 %v773
        %v1477 = vunpack.c.l.b16 %v774
        %v1478 = vunpack.c.h.b16 %v774
        %v1479 = vunpack.c.l.b16 %v775
        %v1480 = vunpack.c.h.b16 %v775
        %v1481 = vunpack.c.l.b16 %v776
        %v1482 = vunpack.c.h.b16 %v776
        %v1483 = vunpack.c.l.b16 %v777
        %v1484 = vunpack.c.h.b16 %v777
        %v1485 = vunpack.c.l.b16 %v778
        %v1486 = vunpack.c.h.b16 %v778
        %v1487 = vunpack.c.l.b16 %v779
        %v1488 = vunpack.c.h.b16 %v779
        %v1489 = vunpack.c.l.b16 %v780
        %v1490 = vunpack.c.h.b16 %v780
        %v1491 = vunpack.c.l.b16 %v781
        %v1492 = vunpack.c.h.b16 %v781
        %v1493 = vunpack.c.l.b16 %v782
        %v1494 = vunpack.c.h.b16 %v782
        %v1495 = vunpack.c.l.b16 %v783
        %v1496 = vunpack.c.h.b16 %v783
        %v1497 = vunpack.c.l.b16 %v784
        %v1498 = vunpack.c.h.b16 %v784
        %v1499 = vunpack.c.l.b16 %v785
        %v1500 = vunpack.c.h.b16 %v785
        %v1501 = vunpack.c.l.b16 %v786
        %v1502 = vunpack.c.h.b16 %v786
        %v1503 = vunpack.c.l.b16 %v787
        %v1504 = vunpack.c.h.b16 %v787
        %v1505 = vunpack.c.l.b16 %v788
        %v1506 = vunpack.c.h.b16 %v788
        %v1507 = vunpack.c.l.b16 %v789
        %v1508 = vunpack.c.h.b16 %v789
        %v1509 = vunpack.c.l.b16 %v790
        %v1510 = vunpack.c.h.b16 %v790
        %v1511 = vunpack.c.l.b16 %v791
        %v1512 = vunpack.c.h.b16 %v791
        %v1513 = vunpack.c.l.b16 %v792
        %v1514 = vunpack.c.h.b16 %v792
        %v1515 = vunpack.c.l.b16 %v793
        %v1516 = vunpack.c.h.b16 %v793
        %v1517 = vunpack.c.l.b16 %v794
        %v1518 = vunpack.c.h.b16 %v794
        %v1519 = vunpack.c.l.b16 %v795
        %v1520 = vunpack.c.h.b16 %v795
        %v1521 = vunpack.c.l.b16 %v796
        %v1522 = vunpack.c.h.b16 %v796
        %v1523 = vunpack.c.l.b16 %v797
        %v1524 = vunpack.c.h.b16 %v797
        %v1525 = vunpack.c.l.b16 %v798
        %v1526 = vunpack.c.h.b16 %v798
        %v1527 = vunpack.c.l.b16 %v799
        %v1528 = vunpack.c.h.b16 %v799
        %v1529 = vunpack.c.l.b16 %v800
        %v1530 = vunpack.c.h.b16 %v800
        %v1531 = vunpack.c.l.b16 %v801
        %v1532 = vunpack.c.h.b16 %v801
        %v1533 = vunpack.c.l.b16 %v802
        %v1534 = vunpack.c.h.b16 %v802
        %v1535 = vunpack.c.l.b16 %v803
        %v1536 = vunpack.c.h.b16 %v803
        %v1537 = vunpack.c.l.b16 %v804
        %v1538 = vunpack.c.h.b16 %v804
        %v1539 = vunpack.c.l.b16 %v805
        %v1540 = vunpack.c.h.b16 %v805
        %v1541 = vunpack.c.l.b16 %v806
        %v1542 = vunpack.c.h.b16 %v806
        %v1543 = vunpack.c.l.b16 %v807
        %v1544 = vunpack.c.h.b16 %v807
        %v1545 = vunpack.c.l.b16 %v808
        %v1546 = vunpack.c.h.b16 %v808
        %v1547 = vunpack.c.l.b16 %v809
        %v1548 = vunpack.c.h.b16 %v809
        %v1549 = vunpack.c.l.b16 %v810
        %v1550 = vunpack.c.h.b16 %v810
        %v1551 = vunpack.c.l.b16 %v811
        %v1552 = vunpack.c.h.b16 %v811
        %v1553 = vunpack.c.l.b16 %v812
        %v1554 = vunpack.c.h.b16 %v812
        %v1555 = vunpack.c.l.b16 %v813
        %v1556 = vunpack.c.h.b16 %v813
        %v1557 = vunpack.c.l.b16 %v814
        %v1558 = vunpack.c.h.b16 %v814
        %v1559 = vunpack.c.l.b16 %v815
        %v1560 = vunpack.c.h.b16 %v815
        %v1561 = vunpack.c.l.b16 %v816
        %v1562 = vunpack.c.h.b16 %v816
        %v1563 = vunpack.c.l.b16 %v817
        %v1564 = vunpack.c.h.b16 %v817
        %v1565 = vunpack.c.l.b16 %v818
        %v1566 = vunpack.c.h.b16 %v818
        %v1567 = vunpack.c.l.b16 %v819
        %v1568 = vunpack.c.h.b16 %v819
        %v1569 = vunpack.c.l.b16 %v820
        %v1570 = vunpack.c.h.b16 %v820
        %v1571 = vunpack.c.l.b16 %v821
        %v1572 = vunpack.c.h.b16 %v821
        %v1573 = vunpack.c.l.b16 %v822
        %v1574 = vunpack.c.h.b16 %v822
        %v1575 = vunpack.c.l.b16 %v823
        %v1576 = vunpack.c.h.b16 %v823
        %v1577 = vunpack.c.l.b16 %v824
        %v1578 = vunpack.c.h.b16 %v824
        %v1579 = vunpack.c.l.b16 %v825
        %v1580 = vunpack.c.h.b16 %v825
        %v1581 = vunpack.c.l.b16 %v826
        %v1582 = vunpack.c.h.b16 %v826
        %v1583 = vunpack.c.l.b16 %v827
        %v1584 = vunpack.c.h.b16 %v827
        %v1585 = vunpack.c.l.b16 %v828
        %v1586 = vunpack.c.h.b16 %v828
        %v1587 = vunpack.c.l.b16 %v829
        %v1588 = vunpack.c.h.b16 %v829
        %v1589 = vunpack.c.l.b16 %v830
        %v1590 = vunpack.c.h.b16 %v830
        %v1591 = vunpack.c.l.b16 %v831
        %v1592 = vunpack.c.h.b16 %v831
        %v1593 = vunpack.c.l.b16 %v832
        %v1594 = vunpack.c.h.b16 %v832
        %v1595 = vunpack.c.l.b16 %v833
        %v1596 = vunpack.c.h.b16 %v833
        %v1597 = vunpack.c.l.b16 %v834
        %v1598 = vunpack.c.h.b16 %v834
        %v1599 = vunpack.c.l.b16 %v835
        %v1600 = vunpack.c.h.b16 %v835
        %v1601 = vunpack.c.l.b16 %v836
        %v1602 = vunpack.c.h.b16 %v836
        %v1603 = vunpack.c.l.b16 %v837
        %v1604 = vunpack.c.h.b16 %v837
        %v1605 = vunpack.c.l.b16 %v838
        %v1606 = vunpack.c.h.b16 %v838
        %v1607 = vunpack.c.l.b16 %v839
        %v1608 = vunpack.c.h.b16 %v839
        %v1609 = vunpack.c.l.b16 %v840
        %v1610 = vunpack.c.h.b16 %v840
        %v1611 = vunpack.c.l.b16 %v841
        %v1612 = vunpack.c.h.b16 %v841
        %v1613 = vunpack.c.l.b16 %v842
        %v1614 = vunpack.c.h.b16 %v842
        %v1615 = vunpack.c.l.b16 %v843
        %v1616 = vunpack.c.h.b16 %v843
        %v1617 = vunpack.c.l.b16 %v844
        %v1618 = vunpack.c.h.b16 %v844
        %v1619 = vunpack.c.l.b16 %v845
        %v1620 = vunpack.c.h.b16 %v845
        %v1621 = vunpack.c.l.b16 %v846
        %v1622 = vunpack.c.h.b16 %v846
        %v1623 = vunpack.c.l.b16 %v847
        %v1624 = vunpack.c.h.b16 %v847
        %v1625 = vunpack.c.l.b16 %v848
        %v1626 = vunpack.c.h.b16 %v848
        %v1627 = vunpack.c.l.b16 %v849
        %v1628 = vunpack.c.h.b16 %v849
        %v1629 = vunpack.c.l.b16 %v850
        %v1630 = vunpack.c.h.b16 %v850
        %v1631 = vunpack.c.l.b16 %v851
        %v1632 = vunpack.c.h.b16 %v851
        %v1633 = vunpack.c.l.b16 %v852
        %v1634 = vunpack.c.h.b16 %v852
        %v1635 = vunpack.c.l.b16 %v853
        %v1636 = vunpack.c.h.b16 %v853
        %v1637 = vunpack.c.l.b16 %v854
        %v1638 = vunpack.c.h.b16 %v854
        %v1639 = vunpack.c.l.b16 %v855
        %v1640 = vunpack.c.h.b16 %v855
        %v1641 = vunpack.c.l.b16 %v856
        %v1642 = vunpack.c.h.b16 %v856
        %v1643 = vunpack.c.l.b16 %v857
        %v1644 = vunpack.c.h.b16 %v857
        %v1645 = vunpack.c.l.b16 %v858
        %v1646 = vunpack.c.h.b16 %v858
        %v1647 = vpack.c.b16 %v1143, %v1135
        %v1648 = vpack.c.b16 %v1144, %v1136
        %v1649 = vpack.c.b16 %v1145, %v1137
        %v1650 = vpack.c.b16 %v1146, %v1138
        %v1651 = vpack.c.b16 %v1147, %v1139
        %v1652 = vpack.c.b16 %v1148, %v1140
        %v1653 = vpack.c.b16 %v1149, %v1141
        %v1654 = vpack.c.b16 %v1150, %v1142
        %v1655 = vpack.c.b16 %v1159, %v1151
        %v1656 = vpack.c.b16 %v1160, %v1152
        %v1657 = vpack.c.b16 %v1161, %v1153
        %v1658 = vpack.c.b16 %v1162, %v1154
        %v1659 = vpack.c.b16 %v1163, %v1155
        %v1660 = vpack.c.b16 %v1164, %v1156
        %v1661 = vpack.c.b16 %v1165, %v1157
        %v1662 = vpack.c.b16 %v1166, %v1158
        %v1663 = vpack.c.b16 %v1175, %v1167
        %v1664 = vpack.c.b16 %v1176, %v1168
        %v1665 = vpack.c.b16 %v1177, %v1169
        %v1666 = vpack.c.b16 %v1178, %v1170
        %v1667 = vpack.c.b16 %v1179, %v1171
        %v1668 = vpack.c.b16 %v1180, %v1172
        %v1669 = vpack.c.b16 %v1181, %v1173
        %v1670 = vpack.c.b16 %v1182, %v1174
        %v1671 = vpack.c.b16 %v1191, %v1183
        %v1672 = vpack.c.b16 %v1192, %v1184
        %v1673 = vpack.c.b16 %v1193, %v1185
        %v1674 = vpack.c.b16 %v1194, %v1186
        %v1675 = vpack.c.b16 %v1195, %v1187
        %v1676 = vpack.c.b16 %v1196, %v1188
        %v1677 = vpack.c.b16 %v1197, %v1189
        %v1678 = vpack.c.b16 %v1198, %v1190
        %v1679 = vpack.c.b16 %v1207, %v1199
        %v1680 = vpack.c.b16 %v1208, %v1200
        %v1681 = vpack.c.b16 %v1209, %v1201
        %v1682 = vpack.c.b16 %v1210, %v1202
        %v1683 = vpack.c.b16 %v1211, %v1203
        %v1684 = vpack.c.b16 %v1212, %v1204
        %v1685 = vpack.c.b16 %v1213, %v1205
        %v1686 = vpack.c.b16 %v1214, %v1206
        %v1687 = vpack.c.b16 %v1223, %v1215
        %v1688 = vpack.c.b16 %v1224, %v1216
        %v1689 = vpack.c.b16 %v1225, %v1217
        %v1690 = vpack.c.b16 %v1226, %v1218
        %v1691 = vpack.c.b16 %v1227, %v1219
        %v1692 = vpack.c.b16 %v1228, %v1220
        %v1693 = vpack.c.b16 %v1229, %v1221
        %v1694 = vpack.c.b16 %v1230, %v1222
        %v1695 = vpack.c.b16 %v1239, %v1231
        %v1696 = vpack.c.b16 %v1240, %v1232
        %v1697 = vpack.c.b16 %v1241, %v1233
        %v1698 = vpack.c.b16 %v1242, %v1234
        %v1699 = vpack.c.b16 %v1243, %v1235
        %v1700 = vpack.c.b16 %v1244, %v1236
        %v1701 = vpack.c.b16 %v1245, %v1237
        %v1702 = vpack.c.b16 %v1246, %v1238
        %v1703 = vpack.c.b16 %v1255, %v1247
        %v1704 = vpack.c.b16 %v1256, %v1248
        %v1705 = vpack.c.b16 %v1257, %v1249
        %v1706 = vpack.c.b16 %v1258, %v1250
        %v1707 = vpack.c.b16 %v1259, %v1251
        %v1708 = vpack.c.b16 %v1260, %v1252
        %v1709 = vpack.c.b16 %v1261, %v1253
        %v1710 = vpack.c.b16 %v1262, %v1254
        %v1711 = vpack.c.b16 %v1271, %v1263
        %v1712 = vpack.c.b16 %v1272, %v1264
        %v1713 = vpack.c.b16 %v1273, %v1265
        %v1714 = vpack.c.b16 %v1274, %v1266
        %v1715 = vpack.c.b16 %v1275, %v1267
        %v1716 = vpack.c.b16 %v1276, %v1268
        %v1717 = vpack.c.b16 %v1277, %v1269
        %v1718 = vpack.c.b16 %v1278, %v1270
        %v1719 = vpack.c.b16 %v1287, %v1279
        %v1720 = vpack.c.b16 %v1288, %v1280
        %v1721 = vpack.c.b16 %v1289, %v1281
        %v1722 = vpack.c.b16 %v1290, %v1282
        %v1723 = vpack.c.b16 %v1291, %v1283
        %v1724 = vpack.c.b16 %v1292, %v1284
        %v1725 = vpack.c.b16 %v1293, %v1285
        %v1726 = vpack.c.b16 %v1294, %v1286
        %v1727 = vpack.c.b16 %v1303, %v1295
        %v1728 = vpack.c.b16 %v1304, %v1296
        %v1729 = vpack.c.b16 %v1305, %v1297
        %v1730 = vpack.c.b16 %v1306, %v1298
        %v1731 = vpack.c.b16 %v1307, %v1299
        %v1732 = vpack.c.b16 %v1308, %v1300
        %v1733 = vpack.c.b16 %v1309, %v1301
        %v1734 = vpack.c.b16 %v1310, %v1302
        %v1735 = vpack.c.b16 %v1319, %v1311
        %v1736 = vpack.c.b16 %v1320, %v1312
        %v1737 = vpack.c.b16 %v1321, %v1313
        %v1738 = vpack.c.b16 %v1322, %v1314
        %v1739 = vpack.c.b16 %v1323, %v1315
        %v1740 = vpack.c.b16 %v1324, %v1316
        %v1741 = vpack.c.b16 %v1325, %v1317
        %v1742 = vpack.c.b16 %v1326, %v1318
        %v1743 = vpack.c.b16 %v1335, %v1327
        %v1744 = vpack.c.b16 %v1336, %v1328
        %v1745 = vpack.c.b16 %v1337, %v1329
        %v1746 = vpack.c.b16 %v1338, %v1330
        %v1747 = vpack.c.b16 %v1339, %v1331
        %v1748 = vpack.c.b16 %v1340, %v1332
        %v1749 = vpack.c.b16 %v1341, %v1333
        %v1750 = vpack.c.b16 %v1342, %v1334
        %v1751 = vpack.c.b16 %v1351, %v1343
        %v1752 = vpack.c.b16 %v1352, %v1344
        %v1753 = vpack.c.b16 %v1353, %v1345
        %v1754 = vpack.c.b16 %v1354, %v1346
        %v1755 = vpack.c.b16 %v1355, %v1347
        %v1756 = vpack.c.b16 %v1356, %v1348
        %v1757 = vpack.c.b16 %v1357, %v1349
        %v1758 = vpack.c.b16 %v1358, %v1350
        %v1759 = vpack.c.b16 %v1367, %v1359
        %v1760 = vpack.c.b16 %v1368, %v1360
        %v1761 = vpack.c.b16 %v1369, %v1361
        %v1762 = vpack.c.b16 %v1370, %v1362
        %v1763 = vpack.c.b16 %v1371, %v1363
        %v1764 = vpack.c.b16 %v1372, %v1364
        %v1765 = vpack.c.b16 %v1373, %v1365
        %v1766 = vpack.c.b16 %v1374, %v1366
        %v1767 = vpack.c.b16 %v1383, %v1375
        %v1768 = vpack.c.b16 %v1384, %v1376
        %v1769 = vpack.c.b16 %v1385, %v1377
        %v1770 = vpack.c.b16 %v1386, %v1378
        %v1771 = vpack.c.b16 %v1387, %v1379
        %v1772 = vpack.c.b16 %v1388, %v1380
        %v1773 = vpack.c.b16 %v1389, %v1381
        %v1774 = vpack.c.b16 %v1390, %v1382
        %v1775 = vpack.c.b16 %v1399, %v1391
        %v1776 = vpack.c.b16 %v1400, %v1392
        %v1777 = vpack.c.b16 %v1401, %v1393
        %v1778 = vpack.c.b16 %v1402, %v1394
        %v1779 = vpack.c.b16 %v1403, %v1395
        %v1780 = vpack.c.b16 %v1404, %v1396
        %v1781 = vpack.c.b16 %v1405, %v1397
        %v1782 = vpack.c.b16 %v1406, %v1398
        %v1783 = vpack.c.b16 %v1415, %v1407
        %v1784 = vpack.c.b16 %v1416, %v1408
        %v1785 = vpack.c.b16 %v1417, %v1409
        %v1786 = vpack.c.b16 %v1418, %v1410
        %v1787 = vpack.c.b16 %v1419, %v1411
        %v1788 = vpack.c.b16 %v1420, %v1412
        %v1789 = vpack.c.b16 %v1421, %v1413
        %v1790 = vpack.c.b16 %v1422, %v1414
        %v1791 = vpack.c.b16 %v1431, %v1423
        %v1792 = vpack.c.b16 %v1432, %v1424
        %v1793 = vpack.c.b16 %v1433, %v1425
        %v1794 = vpack.c.b16 %v1434, %v1426
        %v1795 = vpack.c.b16 %v1435, %v1427
        %v1796 = vpack.c.b16 %v1436, %v1428
        %v1797 = vpack.c.b16 %v1437, %v1429
        %v1798 = vpack.c.b16 %v1438, %v1430
        %v1799 = vpack.c.b16 %v1447, %v1439
        %v1800 = vpack.c.b16 %v1448, %v1440
        %v1801 = vpack.c.b16 %v1449, %v1441
        %v1802 = vpack.c.b16 %v1450, %v1442
        %v1803 = vpack.c.b16 %v1451, %v1443
        %v1804 = vpack.c.b16 %v1452, %v1444
        %v1805 = vpack.c.b16 %v1453, %v1445
        %v1806 = vpack.c.b16 %v1454, %v1446
        %v1807 = vpack.c.b16 %v1463, %v1455
        %v1808 = vpack.c.b16 %v1464, %v1456
        %v1809 = vpack.c.b16 %v1465, %v1457
        %v1810 = vpack.c.b16 %v1466, %v1458
        %v1811 = vpack.c.b16 %v1467, %v1459
        %v1812 = vpack.c.b16 %v1468, %v1460
        %v1813 = vpack.c.b16 %v1469, %v1461
        %v1814 = vpack.c.b16 %v1470, %v1462
        %v1815 = vpack.c.b16 %v1479, %v1471
        %v1816 = vpack.c.b16 %v1480, %v1472
        %v1817 = vpack.c.b16 %v1481, %v1473
        %v1818 = vpack.c.b16 %v1482, %v1474
        %v1819 = vpack.c.b16 %v1483, %v1475
        %v1820 = vpack.c.b16 %v1484, %v1476
        %v1821 = vpack.c.b16 %v1485, %v1477
        %v1822 = vpack.c.b16 %v1486, %v1478
        %v1823 = vpack.c.b16 %v1495, %v1487
        %v1824 = vpack.c.b16 %v1496, %v1488
        %v1825 = vpack.c.b16 %v1497, %v1489
        %v1826 = vpack.c.b16 %v1498, %v1490
        %v1827 = vpack.c.b16 %v1499, %v1491
        %v1828 = vpack.c.b16 %v1500, %v1492
        %v1829 = vpack.c.b16 %v1501, %v1493
        %v1830 = vpack.c.b16 %v1502, %v1494
        %v1831 = vpack.c.b16 %v1511, %v1503
        %v1832 = vpack.c.b16 %v1512, %v1504
        %v1833 = vpack.c.b16 %v1513, %v1505
        %v1834 = vpack.c.b16 %v1514, %v1506
        %v1835 = vpack.c.b16 %v1515, %v1507
        %v1836 = vpack.c.b16 %v1516, %v1508
        %v1837 = vpack.c.b16 %v1517, %v1509
        %v1838 = vpack.c.b16 %v1518, %v1510
        %v1839 = vpack.c.b16 %v1527, %v1519
        %v1840 = vpack.c.b16 %v1528, %v1520
        %v1841 = vpack.c.b16 %v1529, %v1521
        %v1842 = vpack.c.b16 %v1530, %v1522
        %v1843 = vpack.c.b16 %v1531, %v1523
        %v1844 = vpack.c.b16 %v1532, %v1524
        %v1845 = vpack.c.b16 %v1533, %v1525
        %v1846 = vpack.c.b16 %v1534, %v1526
        %v1847 = vpack.c.b16 %v1543, %v1535
        %v1848 = vpack.c.b16 %v1544, %v1536
        %v1849 = vpack.c.b16 %v1545, %v1537
        %v1850 = vpack.c.b16 %v1546, %v1538
        %v1851 = vpack.c.b16 %v1547, %v1539
        %v1852 = vpack.c.b16 %v1548, %v1540
        %v1853 = vpack.c.b16 %v1549, %v1541
        %v1854 = vpack.c.b16 %v1550, %v1542
        %v1855 = vpack.c.b16 %v1559, %v1551
        %v1856 = vpack.c.b16 %v1560, %v1552
        %v1857 = vpack.c.b16 %v1561, %v1553
        %v1858 = vpack.c.b16 %v1562, %v1554
        %v1859 = vpack.c.b16 %v1563, %v1555
        %v1860 = vpack.c.b16 %v1564, %v1556
        %v1861 = vpack.c.b16 %v1565, %v1557
        %v1862 = vpack.c.b16 %v1566, %v1558
        %v1863 = vpack.c.b16 %v1575, %v1567
        %v1864 = vpack.c.b16 %v1576, %v1568
        %v1865 = vpack.c.b16 %v1577, %v1569
        %v1866 = vpack.c.b16 %v1578, %v1570
        %v1867 = vpack.c.b16 %v1579, %v1571
        %v1868 = vpack.c.b16 %v1580, %v1572
        %v1869 = vpack.c.b16 %v1581, %v1573
        %v1870 = vpack.c.b16 %v1582, %v1574
        %v1871 = vpack.c.b16 %v1591, %v1583
        %v1872 = vpack.c.b16 %v1592, %v1584
        %v1873 = vpack.c.b16 %v1593, %v1585
        %v1874 = vpack.c.b16 %v1594, %v1586
        %v1875 = vpack.c.b16 %v1595, %v1587
        %v1876 = vpack.c.b16 %v1596, %v1588
        %v1877 = vpack.c.b16 %v1597, %v1589
        %v1878 = vpack.c.b16 %v1598, %v1590
        %v1879 = vpack.c.b16 %v1607, %v1599
        %v1880 = vpack.c.b16 %v1608, %v1600
        %v1881 = vpack.c.b16 %v1609, %v1601
        %v1882 = vpack.c.b16 %v1610, %v1602
        %v1883 = vpack.c.b16 %v1611, %v1603
        %v1884 = vpack.c.b16 %v1612, %v1604
        %v1885 = vpack.c.b16 %v1613, %v1605
        %v1886 = vpack.c.b16 %v1614, %v1606
        %v1887 = vpack.c.b16 %v1623, %v1615
        %v1888 = vpack.c.b16 %v1624, %v1616
        %v1889 = vpack.c.b16 %v1625, %v1617
        %v1890 = vpack.c.b16 %v1626, %v1618
        %v1891 = vpack.c.b16 %v1627, %v1619
        %v1892 = vpack.c.b16 %v1628, %v1620
        %v1893 = vpack.c.b16 %v1629, %v1621
        %v1894 = vpack.c.b16 %v1630, %v1622
        %v1895 = vpack.c.b16 %v1639, %v1631
        %v1896 = vpack.c.b16 %v1640, %v1632
        %v1897 = vpack.c.b16 %v1641, %v1633
        %v1898 = vpack.c.b16 %v1642, %v1634
        %v1899 = vpack.c.b16 %v1643, %v1635
        %v1900 = vpack.c.b16 %v1644, %v1636
        %v1901 = vpack.c.b16 %v1645, %v1637
        %v1902 = vpack.c.b16 %v1646, %v1638
        %2159 = vmatprep.subr.bf16.mxu0 %v1704
        %2160 = vmatpush1.bf16.msra.mxu0 %v1703
        %2161 = vmatprep.subr.bf16.mxu0 %v1696
        %2162 = vmatpush1.bf16.msra.mxu0 %v1695
        %2163 = vmatprep.subr.bf16.mxu0 %v1688
        %2164 = vmatpush1.bf16.msra.mxu0 %v1687
        %2165 = vmatprep.subr.bf16.mxu0 %v1680
        %2166 = vmatpush1.bf16.msra.mxu0 %v1679
        %2167 = vmatprep.subr.bf16.mxu0 %v1672
        %2168 = vmatpush1.bf16.msra.mxu0 %v1671
        %2169 = vmatprep.subr.bf16.mxu0 %v1664
        %2170 = vmatpush1.bf16.msra.mxu0 %v1663
        %2171 = vmatprep.subr.bf16.mxu0 %v1656
        %2172 = vmatpush1.bf16.msra.mxu0 %v1655
        %2173 = vmatprep.subr.bf16.mxu0 %v1648
        %2174 = vmatpush1.bf16.msra.mxu0 %v1647
        %2175 = vmatprep.subr.bf16.mxu0 %v1768
        %2176 = vmatpush2.bf16.msra.mxu0 %v1767
        %2177 = vmatprep.subr.bf16.mxu0 %v1760
        %2178 = vmatpush2.bf16.msra.mxu0 %v1759
        %2179 = vmatprep.subr.bf16.mxu0 %v1752
        %2180 = vmatpush2.bf16.msra.mxu0 %v1751
        %2181 = vmatprep.subr.bf16.mxu0 %v1744
        %2182 = vmatpush2.bf16.msra.mxu0 %v1743
        %2183 = vmatprep.subr.bf16.mxu0 %v1736
        %2184 = vmatpush2.bf16.msra.mxu0 %v1735
        %2185 = vmatprep.subr.bf16.mxu0 %v1728
        %2186 = vmatpush2.bf16.msra.mxu0 %v1727
        %2187 = vmatprep.subr.bf16.mxu0 %v1720
        %2188 = vmatpush2.bf16.msra.mxu0 %v1719
        %2189 = vmatprep.subr.bf16.mxu0 %v1712
        %2190 = vmatpush2.bf16.msra.mxu0 %v1711
        %2191 = vmatprep.mubr.bf16.mxu0 %v872
        %2192 = vmatmul.mubr.bf16.gmra.mxu0 %v871
        %v2193 = vpop.f32.mrf.mxu0
        %v2194 = vadd.f32 0.0, %v2193
        %v2195 = vpop.f32.mrf.mxu0
        %v2196 = vadd.f32 0.0, %v2195
        %v2197 = vpop.f32.mrf.mxu0
        %v2198 = vadd.f32 0.0, %v2197
        %v2199 = vpop.f32.mrf.mxu0
        %v2200 = vadd.f32 0.0, %v2199
        %2201 = vdwg.mxu0
        %2202 = vmatprep.subr.bf16.mxu0 %v1832
        %2203 = vmatpush1.bf16.msra.mxu0 %v1831
        %2204 = vmatprep.subr.bf16.mxu0 %v1824
        %2205 = vmatpush1.bf16.msra.mxu0 %v1823
        %2206 = vmatprep.subr.bf16.mxu0 %v1816
        %2207 = vmatpush1.bf16.msra.mxu0 %v1815
        %2208 = vmatprep.subr.bf16.mxu0 %v1808
        %2209 = vmatpush1.bf16.msra.mxu0 %v1807
        %2210 = vmatprep.subr.bf16.mxu0 %v1800
        %2211 = vmatpush1.bf16.msra.mxu0 %v1799
        %2212 = vmatprep.subr.bf16.mxu0 %v1792
        %2213 = vmatpush1.bf16.msra.mxu0 %v1791
        %2214 = vmatprep.subr.bf16.mxu0 %v1784
        %2215 = vmatpush1.bf16.msra.mxu0 %v1783
        %2216 = vmatprep.subr.bf16.mxu0 %v1776
        %2217 = vmatpush1.bf16.msra.mxu0 %v1775
        %2218 = vmatprep.subr.bf16.mxu0 %v1896
        %2219 = vmatpush2.bf16.msra.mxu0 %v1895
        %2220 = vmatprep.subr.bf16.mxu0 %v1888
        %2221 = vmatpush2.bf16.msra.mxu0 %v1887
        %2222 = vmatprep.subr.bf16.mxu0 %v1880
        %2223 = vmatpush2.bf16.msra.mxu0 %v1879
        %2224 = vmatprep.subr.bf16.mxu0 %v1872
        %2225 = vmatpush2.bf16.msra.mxu0 %v1871
        %2226 = vmatprep.subr.bf16.mxu0 %v1864
        %2227 = vmatpush2.bf16.msra.mxu0 %v1863
        %2228 = vmatprep.subr.bf16.mxu0 %v1856
        %2229 = vmatpush2.bf16.msra.mxu0 %v1855
        %2230 = vmatprep.subr.bf16.mxu0 %v1848
        %2231 = vmatpush2.bf16.msra.mxu0 %v1847
        %2232 = vmatprep.subr.bf16.mxu0 %v1840
        %2233 = vmatpush2.bf16.msra.mxu0 %v1839
        %2234 = vmatprep.mubr.bf16.mxu0 %v874
        %2235 = vmatmul.mubr.bf16.gmra.mxu0 %v873
        %v2236 = vpop.f32.mrf.mxu0
        %v2237 = vadd.f32 %v2194, %v2236
        %v2238 = vpop.f32.mrf.mxu0
        %v2239 = vadd.f32 %v2196, %v2238
        %v2240 = vpop.f32.mrf.mxu0
        %v2241 = vadd.f32 %v2198, %v2240
        %v2242 = vpop.f32.mrf.mxu0
        %v2243 = vadd.f32 %v2200, %v2242
        %2244 = vdwg.mxu0
        %2245 = vmatprep.subr.bf16.mxu0 %v1706
        %2246 = vmatpush1.bf16.msra.mxu0 %v1705
        %2247 = vmatprep.subr.bf16.mxu0 %v1698
        %2248 = vmatpush1.bf16.msra.mxu0 %v1697
        %2249 = vmatprep.subr.bf16.mxu0 %v1690
        %2250 = vmatpush1.bf16.msra.mxu0 %v1689
        %2251 = vmatprep.subr.bf16.mxu0 %v1682
        %2252 = vmatpush1.bf16.msra.mxu0 %v1681
        %2253 = vmatprep.subr.bf16.mxu0 %v1674
        %2254 = vmatpush1.bf16.msra.mxu0 %v1673
        %2255 = vmatprep.subr.bf16.mxu0 %v1666
        %2256 = vmatpush1.bf16.msra.mxu0 %v1665
        %2257 = vmatprep.subr.bf16.mxu0 %v1658
        %2258 = vmatpush1.bf16.msra.mxu0 %v1657
        %2259 = vmatprep.subr.bf16.mxu0 %v1650
        %2260 = vmatpush1.bf16.msra.mxu0 %v1649
        %2261 = vmatprep.subr.bf16.mxu0 %v1770
        %2262 = vmatpush2.bf16.msra.mxu0 %v1769
        %2263 = vmatprep.subr.bf16.mxu0 %v1762
        %2264 = vmatpush2.bf16.msra.mxu0 %v1761
        %2265 = vmatprep.subr.bf16.mxu0 %v1754
        %2266 = vmatpush2.bf16.msra.mxu0 %v1753
        %2267 = vmatprep.subr.bf16.mxu0 %v1746
        %2268 = vmatpush2.bf16.msra.mxu0 %v1745
        %2269 = vmatprep.subr.bf16.mxu0 %v1738
        %2270 = vmatpush2.bf16.msra.mxu0 %v1737
        %2271 = vmatprep.subr.bf16.mxu0 %v1730
        %2272 = vmatpush2.bf16.msra.mxu0 %v1729
        %2273 = vmatprep.subr.bf16.mxu0 %v1722
        %2274 = vmatpush2.bf16.msra.mxu0 %v1721
        %2275 = vmatprep.subr.bf16.mxu0 %v1714
        %2276 = vmatpush2.bf16.msra.mxu0 %v1713
        %2277 = vmatprep.mubr.bf16.mxu0 %v872
        %2278 = vmatmul.mubr.bf16.gmra.mxu0 %v871
        %v2279 = vpop.f32.mrf.mxu0
        %v2280 = vadd.f32 0.0, %v2279
        %v2281 = vpop.f32.mrf.mxu0
        %v2282 = vadd.f32 0.0, %v2281
        %v2283 = vpop.f32.mrf.mxu0
        %v2284 = vadd.f32 0.0, %v2283
        %v2285 = vpop.f32.mrf.mxu0
        %v2286 = vadd.f32 0.0, %v2285
        %2287 = vdwg.mxu0
        %2288 = vmatprep.subr.bf16.mxu0 %v1834
        %2289 = vmatpush1.bf16.msra.mxu0 %v1833
        %2290 = vmatprep.subr.bf16.mxu0 %v1826
        %2291 = vmatpush1.bf16.msra.mxu0 %v1825
        %2292 = vmatprep.subr.bf16.mxu0 %v1818
        %2293 = vmatpush1.bf16.msra.mxu0 %v1817
        %2294 = vmatprep.subr.bf16.mxu0 %v1810
        %2295 = vmatpush1.bf16.msra.mxu0 %v1809
        %2296 = vmatprep.subr.bf16.mxu0 %v1802
        %2297 = vmatpush1.bf16.msra.mxu0 %v1801
        %2298 = vmatprep.subr.bf16.mxu0 %v1794
        %2299 = vmatpush1.bf16.msra.mxu0 %v1793
        %2300 = vmatprep.subr.bf16.mxu0 %v1786
        %2301 = vmatpush1.bf16.msra.mxu0 %v1785
        %2302 = vmatprep.subr.bf16.mxu0 %v1778
        %2303 = vmatpush1.bf16.msra.mxu0 %v1777
        %2304 = vmatprep.subr.bf16.mxu0 %v1898
        %2305 = vmatpush2.bf16.msra.mxu0 %v1897
        %2306 = vmatprep.subr.bf16.mxu0 %v1890
        %2307 = vmatpush2.bf16.msra.mxu0 %v1889
        %2308 = vmatprep.subr.bf16.mxu0 %v1882
        %2309 = vmatpush2.bf16.msra.mxu0 %v1881
        %2310 = vmatprep.subr.bf16.mxu0 %v1874
        %2311 = vmatpush2.bf16.msra.mxu0 %v1873
        %2312 = vmatprep.subr.bf16.mxu0 %v1866
        %2313 = vmatpush2.bf16.msra.mxu0 %v1865
        %2314 = vmatprep.subr.bf16.mxu0 %v1858
        %2315 = vmatpush2.bf16.msra.mxu0 %v1857
        %2316 = vmatprep.subr.bf16.mxu0 %v1850
        %2317 = vmatpush2.bf16.msra.mxu0 %v1849
        %2318 = vmatprep.subr.bf16.mxu0 %v1842
        %2319 = vmatpush2.bf16.msra.mxu0 %v1841
        %2320 = vmatprep.mubr.bf16.mxu0 %v874
        %2321 = vmatmul.mubr.bf16.gmra.mxu0 %v873
        %v2322 = vpop.f32.mrf.mxu0
        %v2323 = vadd.f32 %v2280, %v2322
        %v2324 = vpop.f32.mrf.mxu0
        %v2325 = vadd.f32 %v2282, %v2324
        %v2326 = vpop.f32.mrf.mxu0
        %v2327 = vadd.f32 %v2284, %v2326
        %v2328 = vpop.f32.mrf.mxu0
        %v2329 = vadd.f32 %v2286, %v2328
        %2330 = vdwg.mxu0
        %2331 = vmatprep.subr.bf16.mxu0 %v1708
        %2332 = vmatpush1.bf16.msra.mxu0 %v1707
        %2333 = vmatprep.subr.bf16.mxu0 %v1700
        %2334 = vmatpush1.bf16.msra.mxu0 %v1699
        %2335 = vmatprep.subr.bf16.mxu0 %v1692
        %2336 = vmatpush1.bf16.msra.mxu0 %v1691
        %2337 = vmatprep.subr.bf16.mxu0 %v1684
        %2338 = vmatpush1.bf16.msra.mxu0 %v1683
        %2339 = vmatprep.subr.bf16.mxu0 %v1676
        %2340 = vmatpush1.bf16.msra.mxu0 %v1675
        %2341 = vmatprep.subr.bf16.mxu0 %v1668
        %2342 = vmatpush1.bf16.msra.mxu0 %v1667
        %2343 = vmatprep.subr.bf16.mxu0 %v1660
        %2344 = vmatpush1.bf16.msra.mxu0 %v1659
        %2345 = vmatprep.subr.bf16.mxu0 %v1652
        %2346 = vmatpush1.bf16.msra.mxu0 %v1651
        %2347 = vmatprep.subr.bf16.mxu0 %v1772
        %2348 = vmatpush2.bf16.msra.mxu0 %v1771
        %2349 = vmatprep.subr.bf16.mxu0 %v1764
        %2350 = vmatpush2.bf16.msra.mxu0 %v1763
        %2351 = vmatprep.subr.bf16.mxu0 %v1756
        %2352 = vmatpush2.bf16.msra.mxu0 %v1755
        %2353 = vmatprep.subr.bf16.mxu0 %v1748
        %2354 = vmatpush2.bf16.msra.mxu0 %v1747
        %2355 = vmatprep.subr.bf16.mxu0 %v1740
        %2356 = vmatpush2.bf16.msra.mxu0 %v1739
        %2357 = vmatprep.subr.bf16.mxu0 %v1732
        %2358 = vmatpush2.bf16.msra.mxu0 %v1731
        %2359 = vmatprep.subr.bf16.mxu0 %v1724
        %2360 = vmatpush2.bf16.msra.mxu0 %v1723
        %2361 = vmatprep.subr.bf16.mxu0 %v1716
        %2362 = vmatpush2.bf16.msra.mxu0 %v1715
        %2363 = vmatprep.mubr.bf16.mxu0 %v872
        %2364 = vmatmul.mubr.bf16.gmra.mxu0 %v871
        %v2365 = vpop.f32.mrf.mxu0
        %v2366 = vadd.f32 0.0, %v2365
        %v2367 = vpop.f32.mrf.mxu0
        %v2368 = vadd.f32 0.0, %v2367
        %v2369 = vpop.f32.mrf.mxu0
        %v2370 = vadd.f32 0.0, %v2369
        %v2371 = vpop.f32.mrf.mxu0
        %v2372 = vadd.f32 0.0, %v2371
        %2373 = vdwg.mxu0
        %2374 = vmatprep.subr.bf16.mxu0 %v1836
        %2375 = vmatpush1.bf16.msra.mxu0 %v1835
        %2376 = vmatprep.subr.bf16.mxu0 %v1828
        %2377 = vmatpush1.bf16.msra.mxu0 %v1827
        %2378 = vmatprep.subr.bf16.mxu0 %v1820
        %2379 = vmatpush1.bf16.msra.mxu0 %v1819
        %2380 = vmatprep.subr.bf16.mxu0 %v1812
        %2381 = vmatpush1.bf16.msra.mxu0 %v1811
        %2382 = vmatprep.subr.bf16.mxu0 %v1804
        %2383 = vmatpush1.bf16.msra.mxu0 %v1803
        %2384 = vmatprep.subr.bf16.mxu0 %v1796
        %2385 = vmatpush1.bf16.msra.mxu0 %v1795
        %2386 = vmatprep.subr.bf16.mxu0 %v1788
        %2387 = vmatpush1.bf16.msra.mxu0 %v1787
        %2388 = vmatprep.subr.bf16.mxu0 %v1780
        %2389 = vmatpush1.bf16.msra.mxu0 %v1779
        %2390 = vmatprep.subr.bf16.mxu0 %v1900
        %2391 = vmatpush2.bf16.msra.mxu0 %v1899
        %2392 = vmatprep.subr.bf16.mxu0 %v1892
        %2393 = vmatpush2.bf16.msra.mxu0 %v1891
        %2394 = vmatprep.subr.bf16.mxu0 %v1884
        %2395 = vmatpush2.bf16.msra.mxu0 %v1883
        %2396 = vmatprep.subr.bf16.mxu0 %v1876
        %2397 = vmatpush2.bf16.msra.mxu0 %v1875
        %2398 = vmatprep.subr.bf16.mxu0 %v1868
        %2399 = vmatpush2.bf16.msra.mxu0 %v1867
        %2400 = vmatprep.subr.bf16.mxu0 %v1860
        %2401 = vmatpush2.bf16.msra.mxu0 %v1859
        %2402 = vmatprep.subr.bf16.mxu0 %v1852
        %2403 = vmatpush2.bf16.msra.mxu0 %v1851
        %2404 = vmatprep.subr.bf16.mxu0 %v1844
        %2405 = vmatpush2.bf16.msra.mxu0 %v1843
        %2406 = vmatprep.mubr.bf16.mxu0 %v874
        %2407 = vmatmul.mubr.bf16.gmra.mxu0 %v873
        %v2408 = vpop.f32.mrf.mxu0
        %v2409 = vadd.f32 %v2366, %v2408
        %v2410 = vpop.f32.mrf.mxu0
        %v2411 = vadd.f32 %v2368, %v2410
        %v2412 = vpop.f32.mrf.mxu0
        %v2413 = vadd.f32 %v2370, %v2412
        %v2414 = vpop.f32.mrf.mxu0
        %v2415 = vadd.f32 %v2372, %v2414
        %2416 = vdwg.mxu0
        %2417 = vmatprep.subr.bf16.mxu0 %v1710
        %2418 = vmatpush1.bf16.msra.mxu0 %v1709
        %2419 = vmatprep.subr.bf16.mxu0 %v1702
        %2420 = vmatpush1.bf16.msra.mxu0 %v1701
        %2421 = vmatprep.subr.bf16.mxu0 %v1694
        %2422 = vmatpush1.bf16.msra.mxu0 %v1693
        %2423 = vmatprep.subr.bf16.mxu0 %v1686
        %2424 = vmatpush1.bf16.msra.mxu0 %v1685
        %2425 = vmatprep.subr.bf16.mxu0 %v1678
        %2426 = vmatpush1.bf16.msra.mxu0 %v1677
        %2427 = vmatprep.subr.bf16.mxu0 %v1670
        %2428 = vmatpush1.bf16.msra.mxu0 %v1669
        %2429 = vmatprep.subr.bf16.mxu0 %v1662
        %2430 = vmatpush1.bf16.msra.mxu0 %v1661
        %2431 = vmatprep.subr.bf16.mxu0 %v1654
        %2432 = vmatpush1.bf16.msra.mxu0 %v1653
        %2433 = vmatprep.subr.bf16.mxu0 %v1774
        %2434 = vmatpush2.bf16.msra.mxu0 %v1773
        %2435 = vmatprep.subr.bf16.mxu0 %v1766
        %2436 = vmatpush2.bf16.msra.mxu0 %v1765
        %2437 = vmatprep.subr.bf16.mxu0 %v1758
        %2438 = vmatpush2.bf16.msra.mxu0 %v1757
        %2439 = vmatprep.subr.bf16.mxu0 %v1750
        %2440 = vmatpush2.bf16.msra.mxu0 %v1749
        %2441 = vmatprep.subr.bf16.mxu0 %v1742
        %2442 = vmatpush2.bf16.msra.mxu0 %v1741
        %2443 = vmatprep.subr.bf16.mxu0 %v1734
        %2444 = vmatpush2.bf16.msra.mxu0 %v1733
        %2445 = vmatprep.subr.bf16.mxu0 %v1726
        %2446 = vmatpush2.bf16.msra.mxu0 %v1725
        %2447 = vmatprep.subr.bf16.mxu0 %v1718
        %2448 = vmatpush2.bf16.msra.mxu0 %v1717
        %2449 = vmatprep.mubr.bf16.mxu0 %v872
        %2450 = vmatmul.mubr.bf16.gmra.mxu0 %v871
        %v2451 = vpop.f32.mrf.mxu0
        %v2452 = vadd.f32 0.0, %v2451
        %v2453 = vpop.f32.mrf.mxu0
        %v2454 = vadd.f32 0.0, %v2453
        %v2455 = vpop.f32.mrf.mxu0
        %v2456 = vadd.f32 0.0, %v2455
        %v2457 = vpop.f32.mrf.mxu0
        %v2458 = vadd.f32 0.0, %v2457
        %2459 = vdwg.mxu0
        %2460 = vmatprep.subr.bf16.mxu0 %v1838
        %2461 = vmatpush1.bf16.msra.mxu0 %v1837
        %2462 = vmatprep.subr.bf16.mxu0 %v1830
        %2463 = vmatpush1.bf16.msra.mxu0 %v1829
        %2464 = vmatprep.subr.bf16.mxu0 %v1822
        %2465 = vmatpush1.bf16.msra.mxu0 %v1821
        %2466 = vmatprep.subr.bf16.mxu0 %v1814
        %2467 = vmatpush1.bf16.msra.mxu0 %v1813
        %2468 = vmatprep.subr.bf16.mxu0 %v1806
        %2469 = vmatpush1.bf16.msra.mxu0 %v1805
        %2470 = vmatprep.subr.bf16.mxu0 %v1798
        %2471 = vmatpush1.bf16.msra.mxu0 %v1797
        %2472 = vmatprep.subr.bf16.mxu0 %v1790
        %2473 = vmatpush1.bf16.msra.mxu0 %v1789
        %2474 = vmatprep.subr.bf16.mxu0 %v1782
        %2475 = vmatpush1.bf16.msra.mxu0 %v1781
        %2476 = vmatprep.subr.bf16.mxu0 %v1902
        %2477 = vmatpush2.bf16.msra.mxu0 %v1901
        %2478 = vmatprep.subr.bf16.mxu0 %v1894
        %2479 = vmatpush2.bf16.msra.mxu0 %v1893
        %2480 = vmatprep.subr.bf16.mxu0 %v1886
        %2481 = vmatpush2.bf16.msra.mxu0 %v1885
        %2482 = vmatprep.subr.bf16.mxu0 %v1878
        %2483 = vmatpush2.bf16.msra.mxu0 %v1877
        %2484 = vmatprep.subr.bf16.mxu0 %v1870
        %2485 = vmatpush2.bf16.msra.mxu0 %v1869
        %2486 = vmatprep.subr.bf16.mxu0 %v1862
        %2487 = vmatpush2.bf16.msra.mxu0 %v1861
        %2488 = vmatprep.subr.bf16.mxu0 %v1854
        %2489 = vmatpush2.bf16.msra.mxu0 %v1853
        %2490 = vmatprep.subr.bf16.mxu0 %v1846
        %2491 = vmatpush2.bf16.msra.mxu0 %v1845
        %2492 = vmatprep.mubr.bf16.mxu0 %v874
        %2493 = vmatmul.mubr.bf16.gmra.mxu0 %v873
        %v2494 = vpop.f32.mrf.mxu0
        %v2495 = vadd.f32 %v2452, %v2494
        %v2496 = vpop.f32.mrf.mxu0
        %v2497 = vadd.f32 %v2454, %v2496
        %v2498 = vpop.f32.mrf.mxu0
        %v2499 = vadd.f32 %v2456, %v2498
        %v2500 = vpop.f32.mrf.mxu0
        %v2501 = vadd.f32 %v2458, %v2500
        %2502 = vdwg.mxu0
        %v2503 = vadd.f32 %v580, %v2237
        %v2504 = vadd.f32 %v581, %v2239
        %v2505 = vadd.f32 %v582, %v2323
        %v2506 = vadd.f32 %v583, %v2325
        %v2507 = vadd.f32 %v584, %v2409
        %v2508 = vadd.f32 %v585, %v2411
        %v2509 = vadd.f32 %v586, %v2495
        %v2510 = vadd.f32 %v587, %v2497
        %v2511 = vadd.f32 %v588, %v2241
        %v2512 = vadd.f32 %v589, %v2243
        %v2513 = vadd.f32 %v590, %v2327
        %v2514 = vadd.f32 %v591, %v2329
        %v2515 = vadd.f32 %v592, %v2413
        %v2516 = vadd.f32 %v593, %v2415
        %v2517 = vadd.f32 %v594, %v2499
        %v2518 = vadd.f32 %v595, %v2501
        %2519 = vst [vmem:[#allocation3] sm:$0xff] %v2503
        %2520 = vst [vmem:[#allocation3 + $0x8] sm:$0xff] %v2504
        %2521 = vst [vmem:[#allocation3 + $0x10] sm:$0xff] %v2505
        %2522 = vst [vmem:[#allocation3 + $0x18] sm:$0xff] %v2506
        %2523 = vst [vmem:[#allocation3 + $0x20] sm:$0xff] %v2507
        %2524 = vst [vmem:[#allocation3 + $0x28] sm:$0xff] %v2508
        %2525 = vst [vmem:[#allocation3 + $0x30] sm:$0xff] %v2509
        %2526 = vst [vmem:[#allocation3 + $0x38] sm:$0xff] %v2510
        %2527 = vst [vmem:[#allocation3 + $0x40] sm:$0xff] %v2511
        %2528 = vst [vmem:[#allocation3 + $0x48] sm:$0xff] %v2512
        %2529 = vst [vmem:[#allocation3 + $0x50] sm:$0xff] %v2513
        %2530 = vst [vmem:[#allocation3 + $0x58] sm:$0xff] %v2514
        %2531 = vst [vmem:[#allocation3 + $0x60] sm:$0xff] %v2515
        %2532 = vst [vmem:[#allocation3 + $0x68] sm:$0xff] %v2516
        %2533 = vst [vmem:[#allocation3 + $0x70] sm:$0xff] %v2517
        %2534 = vst [vmem:[#allocation3 + $0x78] sm:$0xff] %v2518
        %p2535 = scmp.eq.s32.totalorder %s29, 3
        // Predicated region
        $region81: #{model_forward.1} parent=47 // pred_check
          %p2536 = pneg %p2535
        $region82: #{model_forward.1} parent=47 // pred_check_branch
          %2538 = sbr.rel (%p2536) target = $region84
        $region83: #{model_forward.1} parent=47 // pred_region
          %v2539 = vld [vmem:[#allocation3] sm:$0xff]
          %v2540 = vld [vmem:[#allocation3 + $0x8] sm:$0xff]
          %v2541 = vld [vmem:[#allocation3 + $0x10] sm:$0xff]
          %v2542 = vld [vmem:[#allocation3 + $0x18] sm:$0xff]
          %v2543 = vld [vmem:[#allocation3 + $0x20] sm:$0xff]
          %v2544 = vld [vmem:[#allocation3 + $0x28] sm:$0xff]
          %v2545 = vld [vmem:[#allocation3 + $0x30] sm:$0xff]
          %v2546 = vld [vmem:[#allocation3 + $0x38] sm:$0xff]
          %v2547 = vld [vmem:[#allocation3 + $0x40] sm:$0xff]
          %v2548 = vld [vmem:[#allocation3 + $0x48] sm:$0xff]
          %v2549 = vld [vmem:[#allocation3 + $0x50] sm:$0xff]
          %v2550 = vld [vmem:[#allocation3 + $0x58] sm:$0xff]
          %v2551 = vld [vmem:[#allocation3 + $0x60] sm:$0xff]
          %v2552 = vld [vmem:[#allocation3 + $0x68] sm:$0xff]
          %v2553 = vld [vmem:[#allocation3 + $0x70] sm:$0xff]
          %v2554 = vld [vmem:[#allocation3 + $0x78] sm:$0xff]
          %v2555 = vld [vmem:[#allocation8] sm:$0xff]
          %v2557 = vlaneseq
          %v2558 = vshrl.u32 %v2557, 7
          %v2559 = vsub.s32 0, %v2558
          %v2560 = vrot.slane %v2555, %v2559
          %v2561 = vlaneseq
          %v2562 = vshrl.u32 %v2561, 7
          %v2563 = vsub.s32 1, %v2562
          %v2564 = vrot.slane %v2555, %v2563
          %v2565 = vlaneseq
          %v2566 = vshrl.u32 %v2565, 7
          %v2567 = vsub.s32 2, %v2566
          %v2568 = vrot.slane %v2555, %v2567
          %v2569 = vlaneseq
          %v2570 = vshrl.u32 %v2569, 7
          %v2571 = vsub.s32 3, %v2570
          %v2572 = vrot.slane %v2555, %v2571
          %v2573 = vlaneseq
          %v2574 = vshrl.u32 %v2573, 7
          %v2575 = vsub.s32 4, %v2574
          %v2576 = vrot.slane %v2555, %v2575
          %v2577 = vlaneseq
          %v2578 = vshrl.u32 %v2577, 7
          %v2579 = vsub.s32 5, %v2578
          %v2580 = vrot.slane %v2555, %v2579
          %v2581 = vlaneseq
          %v2582 = vshrl.u32 %v2581, 7
          %v2583 = vsub.s32 6, %v2582
          %v2584 = vrot.slane %v2555, %v2583
          %v2585 = vlaneseq
          %v2586 = vshrl.u32 %v2585, 7
          %v2587 = vsub.s32 7, %v2586
          %v2588 = vrot.slane %v2555, %v2587
          %v2597 = vadd.f32 %v2539, %v2560
          %v2598 = vadd.f32 %v2540, %v2564
          %v2599 = vadd.f32 %v2541, %v2568
          %v2600 = vadd.f32 %v2542, %v2572
          %v2601 = vadd.f32 %v2543, %v2576
          %v2602 = vadd.f32 %v2544, %v2580
          %v2603 = vadd.f32 %v2545, %v2584
          %v2604 = vadd.f32 %v2546, %v2588
          %v2605 = vadd.f32 %v2547, %v2560
          %v2606 = vadd.f32 %v2548, %v2564
          %v2607 = vadd.f32 %v2549, %v2568
          %v2608 = vadd.f32 %v2550, %v2572
          %v2609 = vadd.f32 %v2551, %v2576
          %v2610 = vadd.f32 %v2552, %v2580
          %v2611 = vadd.f32 %v2553, %v2584
          %v2612 = vadd.f32 %v2554, %v2588
          %v2613 = vxor.u32 %v2597, 2147483648
          %v2614 = vxor.u32 %v2598, 2147483648
          %v2615 = vxor.u32 %v2599, 2147483648
          %v2616 = vxor.u32 %v2600, 2147483648
          %v2617 = vxor.u32 %v2601, 2147483648
          %v2618 = vxor.u32 %v2602, 2147483648
          %v2619 = vxor.u32 %v2603, 2147483648
          %v2620 = vxor.u32 %v2604, 2147483648
          %v2621 = vxor.u32 %v2605, 2147483648
          %v2622 = vxor.u32 %v2606, 2147483648
          %v2623 = vxor.u32 %v2607, 2147483648
          %v2624 = vxor.u32 %v2608, 2147483648
          %v2625 = vxor.u32 %v2609, 2147483648
          %v2626 = vxor.u32 %v2610, 2147483648
          %v2627 = vxor.u32 %v2611, 2147483648
          %v2628 = vxor.u32 %v2612, 2147483648
          %v2629 = vmul.f32 %v2613, 1.442695
          %v2630 = vpow.pop %v2629
          %v2631 = vmul.f32 %v2614, 1.442695
          %v2632 = vpow.pop %v2631
          %v2633 = vmul.f32 %v2615, 1.442695
          %v2634 = vpow.pop %v2633
          %v2635 = vmul.f32 %v2616, 1.442695
          %v2636 = vpow.pop %v2635
          %v2637 = vmul.f32 %v2617, 1.442695
          %v2638 = vpow.pop %v2637
          %v2639 = vmul.f32 %v2618, 1.442695
          %v2640 = vpow.pop %v2639
          %v2641 = vmul.f32 %v2619, 1.442695
          %v2642 = vpow.pop %v2641
          %v2643 = vmul.f32 %v2620, 1.442695
          %v2644 = vpow.pop %v2643
          %v2645 = vmul.f32 %v2621, 1.442695
          %v2646 = vpow.pop %v2645
          %v2647 = vmul.f32 %v2622, 1.442695
          %v2648 = vpow.pop %v2647
          %v2649 = vmul.f32 %v2623, 1.442695
          %v2650 = vpow.pop %v2649
          %v2651 = vmul.f32 %v2624, 1.442695
          %v2652 = vpow.pop %v2651
          %v2653 = vmul.f32 %v2625, 1.442695
          %v2654 = vpow.pop %v2653
          %v2655 = vmul.f32 %v2626, 1.442695
          %v2656 = vpow.pop %v2655
          %v2657 = vmul.f32 %v2627, 1.442695
          %v2658 = vpow.pop %v2657
          %v2659 = vmul.f32 %v2628, 1.442695
          %v2660 = vpow.pop %v2659
          %v2661 = vadd.f32 %v2630, 1.0
          %v2662 = vadd.f32 %v2632, 1.0
          %v2663 = vadd.f32 %v2634, 1.0
          %v2664 = vadd.f32 %v2636, 1.0
          %v2665 = vadd.f32 %v2638, 1.0
          %v2666 = vadd.f32 %v2640, 1.0
          %v2667 = vadd.f32 %v2642, 1.0
          %v2668 = vadd.f32 %v2644, 1.0
          %v2669 = vadd.f32 %v2646, 1.0
          %v2670 = vadd.f32 %v2648, 1.0
          %v2671 = vadd.f32 %v2650, 1.0
          %v2672 = vadd.f32 %v2652, 1.0
          %v2673 = vadd.f32 %v2654, 1.0
          %v2674 = vadd.f32 %v2656, 1.0
          %v2675 = vadd.f32 %v2658, 1.0
          %v2676 = vadd.f32 %v2660, 1.0
          %v2677 = vrcp.pop %v2661
          %v2678 = vmul.f32 1.0, %v2677
          %v2679 = vrcp.pop %v2662
          %v2680 = vmul.f32 1.0, %v2679
          %v2681 = vrcp.pop %v2663
          %v2682 = vmul.f32 1.0, %v2681
          %v2683 = vrcp.pop %v2664
          %v2684 = vmul.f32 1.0, %v2683
          %v2685 = vrcp.pop %v2665
          %v2686 = vmul.f32 1.0, %v2685
          %v2687 = vrcp.pop %v2666
          %v2688 = vmul.f32 1.0, %v2687
          %v2689 = vrcp.pop %v2667
          %v2690 = vmul.f32 1.0, %v2689
          %v2691 = vrcp.pop %v2668
          %v2692 = vmul.f32 1.0, %v2691
          %v2693 = vrcp.pop %v2669
          %v2694 = vmul.f32 1.0, %v2693
          %v2695 = vrcp.pop %v2670
          %v2696 = vmul.f32 1.0, %v2695
          %v2697 = vrcp.pop %v2671
          %v2698 = vmul.f32 1.0, %v2697
          %v2699 = vrcp.pop %v2672
          %v2700 = vmul.f32 1.0, %v2699
          %v2701 = vrcp.pop %v2673
          %v2702 = vmul.f32 1.0, %v2701
          %v2703 = vrcp.pop %v2674
          %v2704 = vmul.f32 1.0, %v2703
          %v2705 = vrcp.pop %v2675
          %v2706 = vmul.f32 1.0, %v2705
          %v2707 = vrcp.pop %v2676
          %v2708 = vmul.f32 1.0, %v2707
          %v2709 = vmul.f32 %v2597, %v2678
          %v2710 = vmul.f32 %v2598, %v2680
          %v2711 = vmul.f32 %v2599, %v2682
          %v2712 = vmul.f32 %v2600, %v2684
          %v2713 = vmul.f32 %v2601, %v2686
          %v2714 = vmul.f32 %v2602, %v2688
          %v2715 = vmul.f32 %v2603, %v2690
          %v2716 = vmul.f32 %v2604, %v2692
          %v2717 = vmul.f32 %v2605, %v2694
          %v2718 = vmul.f32 %v2606, %v2696
          %v2719 = vmul.f32 %v2607, %v2698
          %v2720 = vmul.f32 %v2608, %v2700
          %v2721 = vmul.f32 %v2609, %v2702
          %v2722 = vmul.f32 %v2610, %v2704
          %v2723 = vmul.f32 %v2611, %v2706
          %v2724 = vmul.f32 %v2612, %v2708
          %v2725 = vpack.c.bf16 %v2717, %v2709
          %v2726 = vpack.c.bf16 %v2718, %v2710
          %v2727 = vpack.c.bf16 %v2719, %v2711
          %v2728 = vpack.c.bf16 %v2720, %v2712
          %v2729 = vpack.c.bf16 %v2721, %v2713
          %v2730 = vpack.c.bf16 %v2722, %v2714
          %v2731 = vpack.c.bf16 %v2723, %v2715
          %v2732 = vpack.c.bf16 %v2724, %v2716
          %v2733 = vld [vmem:[#allocation9] sm:$0xff]
          %v2734 = vld [vmem:[#allocation9 + $0x8] sm:$0xff]
          %v2735 = vld [vmem:[#allocation9 + $0x10] sm:$0xff]
          %v2736 = vld [vmem:[#allocation9 + $0x18] sm:$0xff]
          %v2737 = vld [vmem:[#allocation9 + $0x20] sm:$0xff]
          %v2738 = vld [vmem:[#allocation9 + $0x28] sm:$0xff]
          %v2739 = vld [vmem:[#allocation9 + $0x30] sm:$0xff]
          %v2740 = vld [vmem:[#allocation9 + $0x38] sm:$0xff]
          %v2741 = vld [vmem:[#allocation9 + $0x40] sm:$0xff]
          %v2742 = vld [vmem:[#allocation9 + $0x48] sm:$0xff]
          %v2743 = vld [vmem:[#allocation9 + $0x50] sm:$0xff]
          %v2744 = vld [vmem:[#allocation9 + $0x58] sm:$0xff]
          %v2745 = vld [vmem:[#allocation9 + $0x60] sm:$0xff]
          %v2746 = vld [vmem:[#allocation9 + $0x68] sm:$0xff]
          %v2747 = vld [vmem:[#allocation9 + $0x70] sm:$0xff]
          %v2748 = vld [vmem:[#allocation9 + $0x78] sm:$0xff]
          %v2749 = vld [vmem:[#allocation9 + $0x80] sm:$0xff]
          %v2750 = vld [vmem:[#allocation9 + $0x88] sm:$0xff]
          %v2751 = vld [vmem:[#allocation9 + $0x90] sm:$0xff]
          %v2752 = vld [vmem:[#allocation9 + $0x98] sm:$0xff]
          %v2753 = vld [vmem:[#allocation9 + $0xa0] sm:$0xff]
          %v2754 = vld [vmem:[#allocation9 + $0xa8] sm:$0xff]
          %v2755 = vld [vmem:[#allocation9 + $0xb0] sm:$0xff]
          %v2756 = vld [vmem:[#allocation9 + $0xb8] sm:$0xff]
          %v2757 = vld [vmem:[#allocation9 + $0xc0] sm:$0xff]
          %v2758 = vld [vmem:[#allocation9 + $0xc8] sm:$0xff]
          %v2759 = vld [vmem:[#allocation9 + $0xd0] sm:$0xff]
          %v2760 = vld [vmem:[#allocation9 + $0xd8] sm:$0xff]
          %v2761 = vld [vmem:[#allocation9 + $0xe0] sm:$0xff]
          %v2762 = vld [vmem:[#allocation9 + $0xe8] sm:$0xff]
          %v2763 = vld [vmem:[#allocation9 + $0xf0] sm:$0xff]
          %v2764 = vld [vmem:[#allocation9 + $0xf8] sm:$0xff]
          %v2765 = vld [vmem:[#allocation9 + $0x100] sm:$0xff]
          %v2766 = vld [vmem:[#allocation9 + $0x108] sm:$0xff]
          %v2767 = vld [vmem:[#allocation9 + $0x110] sm:$0xff]
          %v2768 = vld [vmem:[#allocation9 + $0x118] sm:$0xff]
          %v2769 = vld [vmem:[#allocation9 + $0x120] sm:$0xff]
          %v2770 = vld [vmem:[#allocation9 + $0x128] sm:$0xff]
          %v2771 = vld [vmem:[#allocation9 + $0x130] sm:$0xff]
          %v2772 = vld [vmem:[#allocation9 + $0x138] sm:$0xff]
          %v2773 = vld [vmem:[#allocation9 + $0x140] sm:$0xff]
          %v2774 = vld [vmem:[#allocation9 + $0x148] sm:$0xff]
          %v2775 = vld [vmem:[#allocation9 + $0x150] sm:$0xff]
          %v2776 = vld [vmem:[#allocation9 + $0x158] sm:$0xff]
          %v2777 = vld [vmem:[#allocation9 + $0x160] sm:$0xff]
          %v2778 = vld [vmem:[#allocation9 + $0x168] sm:$0xff]
          %v2779 = vld [vmem:[#allocation9 + $0x170] sm:$0xff]
          %v2780 = vld [vmem:[#allocation9 + $0x178] sm:$0xff]
          %v2781 = vld [vmem:[#allocation9 + $0x180] sm:$0xff]
          %v2782 = vld [vmem:[#allocation9 + $0x188] sm:$0xff]
          %v2783 = vld [vmem:[#allocation9 + $0x190] sm:$0xff]
          %v2784 = vld [vmem:[#allocation9 + $0x198] sm:$0xff]
          %v2785 = vld [vmem:[#allocation9 + $0x1a0] sm:$0xff]
          %v2786 = vld [vmem:[#allocation9 + $0x1a8] sm:$0xff]
          %v2787 = vld [vmem:[#allocation9 + $0x1b0] sm:$0xff]
          %v2788 = vld [vmem:[#allocation9 + $0x1b8] sm:$0xff]
          %v2789 = vld [vmem:[#allocation9 + $0x1c0] sm:$0xff]
          %v2790 = vld [vmem:[#allocation9 + $0x1c8] sm:$0xff]
          %v2791 = vld [vmem:[#allocation9 + $0x1d0] sm:$0xff]
          %v2792 = vld [vmem:[#allocation9 + $0x1d8] sm:$0xff]
          %v2793 = vld [vmem:[#allocation9 + $0x1e0] sm:$0xff]
          %v2794 = vld [vmem:[#allocation9 + $0x1e8] sm:$0xff]
          %v2795 = vld [vmem:[#allocation9 + $0x1f0] sm:$0xff]
          %v2796 = vld [vmem:[#allocation9 + $0x1f8] sm:$0xff]
          %v2797 = vld [vmem:[#allocation9 + $0x200] sm:$0xff]
          %v2798 = vld [vmem:[#allocation9 + $0x208] sm:$0xff]
          %v2799 = vld [vmem:[#allocation9 + $0x210] sm:$0xff]
          %v2800 = vld [vmem:[#allocation9 + $0x218] sm:$0xff]
          %v2801 = vld [vmem:[#allocation9 + $0x220] sm:$0xff]
          %v2802 = vld [vmem:[#allocation9 + $0x228] sm:$0xff]
          %v2803 = vld [vmem:[#allocation9 + $0x230] sm:$0xff]
          %v2804 = vld [vmem:[#allocation9 + $0x238] sm:$0xff]
          %v2805 = vld [vmem:[#allocation9 + $0x240] sm:$0xff]
          %v2806 = vld [vmem:[#allocation9 + $0x248] sm:$0xff]
          %v2807 = vld [vmem:[#allocation9 + $0x250] sm:$0xff]
          %v2808 = vld [vmem:[#allocation9 + $0x258] sm:$0xff]
          %v2809 = vld [vmem:[#allocation9 + $0x260] sm:$0xff]
          %v2810 = vld [vmem:[#allocation9 + $0x268] sm:$0xff]
          %v2811 = vld [vmem:[#allocation9 + $0x270] sm:$0xff]
          %v2812 = vld [vmem:[#allocation9 + $0x278] sm:$0xff]
          %v2813 = vld [vmem:[#allocation9 + $0x280] sm:$0xff]
          %v2814 = vld [vmem:[#allocation9 + $0x288] sm:$0xff]
          %v2815 = vld [vmem:[#allocation9 + $0x290] sm:$0xff]
          %v2816 = vld [vmem:[#allocation9 + $0x298] sm:$0xff]
          %v2817 = vld [vmem:[#allocation9 + $0x2a0] sm:$0xff]
          %v2818 = vld [vmem:[#allocation9 + $0x2a8] sm:$0xff]
          %v2819 = vld [vmem:[#allocation9 + $0x2b0] sm:$0xff]
          %v2820 = vld [vmem:[#allocation9 + $0x2b8] sm:$0xff]
          %v2821 = vld [vmem:[#allocation9 + $0x2c0] sm:$0xff]
          %v2822 = vld [vmem:[#allocation9 + $0x2c8] sm:$0xff]
          %v2823 = vld [vmem:[#allocation9 + $0x2d0] sm:$0xff]
          %v2824 = vld [vmem:[#allocation9 + $0x2d8] sm:$0xff]
          %v2825 = vld [vmem:[#allocation9 + $0x2e0] sm:$0xff]
          %v2826 = vld [vmem:[#allocation9 + $0x2e8] sm:$0xff]
          %v2827 = vld [vmem:[#allocation9 + $0x2f0] sm:$0xff]
          %v2828 = vld [vmem:[#allocation9 + $0x2f8] sm:$0xff]
          %v2829 = vld [vmem:[#allocation9 + $0x300] sm:$0xff]
          %v2830 = vld [vmem:[#allocation9 + $0x308] sm:$0xff]
          %v2831 = vld [vmem:[#allocation9 + $0x310] sm:$0xff]
          %v2832 = vld [vmem:[#allocation9 + $0x318] sm:$0xff]
          %v2833 = vld [vmem:[#allocation9 + $0x320] sm:$0xff]
          %v2834 = vld [vmem:[#allocation9 + $0x328] sm:$0xff]
          %v2835 = vld [vmem:[#allocation9 + $0x330] sm:$0xff]
          %v2836 = vld [vmem:[#allocation9 + $0x338] sm:$0xff]
          %v2837 = vld [vmem:[#allocation9 + $0x340] sm:$0xff]
          %v2838 = vld [vmem:[#allocation9 + $0x348] sm:$0xff]
          %v2839 = vld [vmem:[#allocation9 + $0x350] sm:$0xff]
          %v2840 = vld [vmem:[#allocation9 + $0x358] sm:$0xff]
          %v2841 = vld [vmem:[#allocation9 + $0x360] sm:$0xff]
          %v2842 = vld [vmem:[#allocation9 + $0x368] sm:$0xff]
          %v2843 = vld [vmem:[#allocation9 + $0x370] sm:$0xff]
          %v2844 = vld [vmem:[#allocation9 + $0x378] sm:$0xff]
          %v2845 = vld [vmem:[#allocation9 + $0x380] sm:$0xff]
          %v2846 = vld [vmem:[#allocation9 + $0x388] sm:$0xff]
          %v2847 = vld [vmem:[#allocation9 + $0x390] sm:$0xff]
          %v2848 = vld [vmem:[#allocation9 + $0x398] sm:$0xff]
          %v2849 = vld [vmem:[#allocation9 + $0x3a0] sm:$0xff]
          %v2850 = vld [vmem:[#allocation9 + $0x3a8] sm:$0xff]
          %v2851 = vld [vmem:[#allocation9 + $0x3b0] sm:$0xff]
          %v2852 = vld [vmem:[#allocation9 + $0x3b8] sm:$0xff]
          %v2853 = vld [vmem:[#allocation9 + $0x3c0] sm:$0xff]
          %v2854 = vld [vmem:[#allocation9 + $0x3c8] sm:$0xff]
          %v2855 = vld [vmem:[#allocation9 + $0x3d0] sm:$0xff]
          %v2856 = vld [vmem:[#allocation9 + $0x3d8] sm:$0xff]
          %v2857 = vld [vmem:[#allocation9 + $0x3e0] sm:$0xff]
          %v2858 = vld [vmem:[#allocation9 + $0x3e8] sm:$0xff]
          %v2859 = vld [vmem:[#allocation9 + $0x3f0] sm:$0xff]
          %v2860 = vld [vmem:[#allocation9 + $0x3f8] sm:$0xff]
          %v2861 = vld [vmem:[#allocation9 + $0x400] sm:$0xff]
          %v2862 = vld [vmem:[#allocation9 + $0x408] sm:$0xff]
          %v2863 = vld [vmem:[#allocation9 + $0x410] sm:$0xff]
          %v2864 = vld [vmem:[#allocation9 + $0x418] sm:$0xff]
          %v2865 = vld [vmem:[#allocation9 + $0x420] sm:$0xff]
          %v2866 = vld [vmem:[#allocation9 + $0x428] sm:$0xff]
          %v2867 = vld [vmem:[#allocation9 + $0x430] sm:$0xff]
          %v2868 = vld [vmem:[#allocation9 + $0x438] sm:$0xff]
          %v2869 = vld [vmem:[#allocation9 + $0x440] sm:$0xff]
          %v2870 = vld [vmem:[#allocation9 + $0x448] sm:$0xff]
          %v2871 = vld [vmem:[#allocation9 + $0x450] sm:$0xff]
          %v2872 = vld [vmem:[#allocation9 + $0x458] sm:$0xff]
          %v2873 = vld [vmem:[#allocation9 + $0x460] sm:$0xff]
          %v2874 = vld [vmem:[#allocation9 + $0x468] sm:$0xff]
          %v2875 = vld [vmem:[#allocation9 + $0x470] sm:$0xff]
          %v2876 = vld [vmem:[#allocation9 + $0x478] sm:$0xff]
          %v2877 = vld [vmem:[#allocation9 + $0x480] sm:$0xff]
          %v2878 = vld [vmem:[#allocation9 + $0x488] sm:$0xff]
          %v2879 = vld [vmem:[#allocation9 + $0x490] sm:$0xff]
          %v2880 = vld [vmem:[#allocation9 + $0x498] sm:$0xff]
          %v2881 = vld [vmem:[#allocation9 + $0x4a0] sm:$0xff]
          %v2882 = vld [vmem:[#allocation9 + $0x4a8] sm:$0xff]
          %v2883 = vld [vmem:[#allocation9 + $0x4b0] sm:$0xff]
          %v2884 = vld [vmem:[#allocation9 + $0x4b8] sm:$0xff]
          %v2885 = vld [vmem:[#allocation9 + $0x4c0] sm:$0xff]
          %v2886 = vld [vmem:[#allocation9 + $0x4c8] sm:$0xff]
          %v2887 = vld [vmem:[#allocation9 + $0x4d0] sm:$0xff]
          %v2888 = vld [vmem:[#allocation9 + $0x4d8] sm:$0xff]
          %v2889 = vld [vmem:[#allocation9 + $0x4e0] sm:$0xff]
          %v2890 = vld [vmem:[#allocation9 + $0x4e8] sm:$0xff]
          %v2891 = vld [vmem:[#allocation9 + $0x4f0] sm:$0xff]
          %v2892 = vld [vmem:[#allocation9 + $0x4f8] sm:$0xff]
          %v2893 = vld [vmem:[#allocation9 + $0x500] sm:$0xff]
          %v2894 = vld [vmem:[#allocation9 + $0x508] sm:$0xff]
          %v2895 = vld [vmem:[#allocation9 + $0x510] sm:$0xff]
          %v2896 = vld [vmem:[#allocation9 + $0x518] sm:$0xff]
          %v2897 = vld [vmem:[#allocation9 + $0x520] sm:$0xff]
          %v2898 = vld [vmem:[#allocation9 + $0x528] sm:$0xff]
          %v2899 = vld [vmem:[#allocation9 + $0x530] sm:$0xff]
          %v2900 = vld [vmem:[#allocation9 + $0x538] sm:$0xff]
          %v2901 = vld [vmem:[#allocation9 + $0x540] sm:$0xff]
          %v2902 = vld [vmem:[#allocation9 + $0x548] sm:$0xff]
          %v2903 = vld [vmem:[#allocation9 + $0x550] sm:$0xff]
          %v2904 = vld [vmem:[#allocation9 + $0x558] sm:$0xff]
          %v2905 = vld [vmem:[#allocation9 + $0x560] sm:$0xff]
          %v2906 = vld [vmem:[#allocation9 + $0x568] sm:$0xff]
          %v2907 = vld [vmem:[#allocation9 + $0x570] sm:$0xff]
          %v2908 = vld [vmem:[#allocation9 + $0x578] sm:$0xff]
          %v2909 = vld [vmem:[#allocation9 + $0x580] sm:$0xff]
          %v2910 = vld [vmem:[#allocation9 + $0x588] sm:$0xff]
          %v2911 = vld [vmem:[#allocation9 + $0x590] sm:$0xff]
          %v2912 = vld [vmem:[#allocation9 + $0x598] sm:$0xff]
          %v2913 = vld [vmem:[#allocation9 + $0x5a0] sm:$0xff]
          %v2914 = vld [vmem:[#allocation9 + $0x5a8] sm:$0xff]
          %v2915 = vld [vmem:[#allocation9 + $0x5b0] sm:$0xff]
          %v2916 = vld [vmem:[#allocation9 + $0x5b8] sm:$0xff]
          %v2917 = vld [vmem:[#allocation9 + $0x5c0] sm:$0xff]
          %v2918 = vld [vmem:[#allocation9 + $0x5c8] sm:$0xff]
          %v2919 = vld [vmem:[#allocation9 + $0x5d0] sm:$0xff]
          %v2920 = vld [vmem:[#allocation9 + $0x5d8] sm:$0xff]
          %v2921 = vld [vmem:[#allocation9 + $0x5e0] sm:$0xff]
          %v2922 = vld [vmem:[#allocation9 + $0x5e8] sm:$0xff]
          %v2923 = vld [vmem:[#allocation9 + $0x5f0] sm:$0xff]
          %v2924 = vld [vmem:[#allocation9 + $0x5f8] sm:$0xff]
          %v2925 = vld [vmem:[#allocation9 + $0x600] sm:$0xff]
          %v2926 = vld [vmem:[#allocation9 + $0x608] sm:$0xff]
          %v2927 = vld [vmem:[#allocation9 + $0x610] sm:$0xff]
          %v2928 = vld [vmem:[#allocation9 + $0x618] sm:$0xff]
          %v2929 = vld [vmem:[#allocation9 + $0x620] sm:$0xff]
          %v2930 = vld [vmem:[#allocation9 + $0x628] sm:$0xff]
          %v2931 = vld [vmem:[#allocation9 + $0x630] sm:$0xff]
          %v2932 = vld [vmem:[#allocation9 + $0x638] sm:$0xff]
          %v2933 = vld [vmem:[#allocation9 + $0x640] sm:$0xff]
          %v2934 = vld [vmem:[#allocation9 + $0x648] sm:$0xff]
          %v2935 = vld [vmem:[#allocation9 + $0x650] sm:$0xff]
          %v2936 = vld [vmem:[#allocation9 + $0x658] sm:$0xff]
          %v2937 = vld [vmem:[#allocation9 + $0x660] sm:$0xff]
          %v2938 = vld [vmem:[#allocation9 + $0x668] sm:$0xff]
          %v2939 = vld [vmem:[#allocation9 + $0x670] sm:$0xff]
          %v2940 = vld [vmem:[#allocation9 + $0x678] sm:$0xff]
          %v2941 = vld [vmem:[#allocation9 + $0x680] sm:$0xff]
          %v2942 = vld [vmem:[#allocation9 + $0x688] sm:$0xff]
          %v2943 = vld [vmem:[#allocation9 + $0x690] sm:$0xff]
          %v2944 = vld [vmem:[#allocation9 + $0x698] sm:$0xff]
          %v2945 = vld [vmem:[#allocation9 + $0x6a0] sm:$0xff]
          %v2946 = vld [vmem:[#allocation9 + $0x6a8] sm:$0xff]
          %v2947 = vld [vmem:[#allocation9 + $0x6b0] sm:$0xff]
          %v2948 = vld [vmem:[#allocation9 + $0x6b8] sm:$0xff]
          %v2949 = vld [vmem:[#allocation9 + $0x6c0] sm:$0xff]
          %v2950 = vld [vmem:[#allocation9 + $0x6c8] sm:$0xff]
          %v2951 = vld [vmem:[#allocation9 + $0x6d0] sm:$0xff]
          %v2952 = vld [vmem:[#allocation9 + $0x6d8] sm:$0xff]
          %v2953 = vld [vmem:[#allocation9 + $0x6e0] sm:$0xff]
          %v2954 = vld [vmem:[#allocation9 + $0x6e8] sm:$0xff]
          %v2955 = vld [vmem:[#allocation9 + $0x6f0] sm:$0xff]
          %v2956 = vld [vmem:[#allocation9 + $0x6f8] sm:$0xff]
          %v2957 = vld [vmem:[#allocation9 + $0x700] sm:$0xff]
          %v2958 = vld [vmem:[#allocation9 + $0x708] sm:$0xff]
          %v2959 = vld [vmem:[#allocation9 + $0x710] sm:$0xff]
          %v2960 = vld [vmem:[#allocation9 + $0x718] sm:$0xff]
          %v2961 = vld [vmem:[#allocation9 + $0x720] sm:$0xff]
          %v2962 = vld [vmem:[#allocation9 + $0x728] sm:$0xff]
          %v2963 = vld [vmem:[#allocation9 + $0x730] sm:$0xff]
          %v2964 = vld [vmem:[#allocation9 + $0x738] sm:$0xff]
          %v2965 = vld [vmem:[#allocation9 + $0x740] sm:$0xff]
          %v2966 = vld [vmem:[#allocation9 + $0x748] sm:$0xff]
          %v2967 = vld [vmem:[#allocation9 + $0x750] sm:$0xff]
          %v2968 = vld [vmem:[#allocation9 + $0x758] sm:$0xff]
          %v2969 = vld [vmem:[#allocation9 + $0x760] sm:$0xff]
          %v2970 = vld [vmem:[#allocation9 + $0x768] sm:$0xff]
          %v2971 = vld [vmem:[#allocation9 + $0x770] sm:$0xff]
          %v2972 = vld [vmem:[#allocation9 + $0x778] sm:$0xff]
          %v2973 = vld [vmem:[#allocation9 + $0x780] sm:$0xff]
          %v2974 = vld [vmem:[#allocation9 + $0x788] sm:$0xff]
          %v2975 = vld [vmem:[#allocation9 + $0x790] sm:$0xff]
          %v2976 = vld [vmem:[#allocation9 + $0x798] sm:$0xff]
          %v2977 = vld [vmem:[#allocation9 + $0x7a0] sm:$0xff]
          %v2978 = vld [vmem:[#allocation9 + $0x7a8] sm:$0xff]
          %v2979 = vld [vmem:[#allocation9 + $0x7b0] sm:$0xff]
          %v2980 = vld [vmem:[#allocation9 + $0x7b8] sm:$0xff]
          %v2981 = vld [vmem:[#allocation9 + $0x7c0] sm:$0xff]
          %v2982 = vld [vmem:[#allocation9 + $0x7c8] sm:$0xff]
          %v2983 = vld [vmem:[#allocation9 + $0x7d0] sm:$0xff]
          %v2984 = vld [vmem:[#allocation9 + $0x7d8] sm:$0xff]
          %v2985 = vld [vmem:[#allocation9 + $0x7e0] sm:$0xff]
          %v2986 = vld [vmem:[#allocation9 + $0x7e8] sm:$0xff]
          %v2987 = vld [vmem:[#allocation9 + $0x7f0] sm:$0xff]
          %v2988 = vld [vmem:[#allocation9 + $0x7f8] sm:$0xff]
          %v2989 = vld [vmem:[#allocation9 + $0x800] sm:$0xff]
          %v2990 = vld [vmem:[#allocation9 + $0x808] sm:$0xff]
          %v2991 = vld [vmem:[#allocation9 + $0x810] sm:$0xff]
          %v2992 = vld [vmem:[#allocation9 + $0x818] sm:$0xff]
          %v2993 = vld [vmem:[#allocation9 + $0x820] sm:$0xff]
          %v2994 = vld [vmem:[#allocation9 + $0x828] sm:$0xff]
          %v2995 = vld [vmem:[#allocation9 + $0x830] sm:$0xff]
          %v2996 = vld [vmem:[#allocation9 + $0x838] sm:$0xff]
          %v2997 = vld [vmem:[#allocation9 + $0x840] sm:$0xff]
          %v2998 = vld [vmem:[#allocation9 + $0x848] sm:$0xff]
          %v2999 = vld [vmem:[#allocation9 + $0x850] sm:$0xff]
          %v3000 = vld [vmem:[#allocation9 + $0x858] sm:$0xff]
          %v3001 = vld [vmem:[#allocation9 + $0x860] sm:$0xff]
          %v3002 = vld [vmem:[#allocation9 + $0x868] sm:$0xff]
          %v3003 = vld [vmem:[#allocation9 + $0x870] sm:$0xff]
          %v3004 = vld [vmem:[#allocation9 + $0x878] sm:$0xff]
          %v3005 = vld [vmem:[#allocation9 + $0x880] sm:$0xff]
          %v3006 = vld [vmem:[#allocation9 + $0x888] sm:$0xff]
          %v3007 = vld [vmem:[#allocation9 + $0x890] sm:$0xff]
          %v3008 = vld [vmem:[#allocation9 + $0x898] sm:$0xff]
          %v3009 = vld [vmem:[#allocation9 + $0x8a0] sm:$0xff]
          %v3010 = vld [vmem:[#allocation9 + $0x8a8] sm:$0xff]
          %v3011 = vld [vmem:[#allocation9 + $0x8b0] sm:$0xff]
          %v3012 = vld [vmem:[#allocation9 + $0x8b8] sm:$0xff]
          %v3013 = vld [vmem:[#allocation9 + $0x8c0] sm:$0xff]
          %v3014 = vld [vmem:[#allocation9 + $0x8c8] sm:$0xff]
          %v3015 = vld [vmem:[#allocation9 + $0x8d0] sm:$0xff]
          %v3016 = vld [vmem:[#allocation9 + $0x8d8] sm:$0xff]
          %v3017 = vld [vmem:[#allocation9 + $0x8e0] sm:$0xff]
          %v3018 = vld [vmem:[#allocation9 + $0x8e8] sm:$0xff]
          %v3019 = vld [vmem:[#allocation9 + $0x8f0] sm:$0xff]
          %v3020 = vld [vmem:[#allocation9 + $0x8f8] sm:$0xff]
          %v3021 = vld [vmem:[#allocation9 + $0x900] sm:$0xff]
          %v3022 = vld [vmem:[#allocation9 + $0x908] sm:$0xff]
          %v3023 = vld [vmem:[#allocation9 + $0x910] sm:$0xff]
          %v3024 = vld [vmem:[#allocation9 + $0x918] sm:$0xff]
          %v3025 = vld [vmem:[#allocation9 + $0x920] sm:$0xff]
          %v3026 = vld [vmem:[#allocation9 + $0x928] sm:$0xff]
          %v3027 = vld [vmem:[#allocation9 + $0x930] sm:$0xff]
          %v3028 = vld [vmem:[#allocation9 + $0x938] sm:$0xff]
          %v3029 = vld [vmem:[#allocation9 + $0x940] sm:$0xff]
          %v3030 = vld [vmem:[#allocation9 + $0x948] sm:$0xff]
          %v3031 = vld [vmem:[#allocation9 + $0x950] sm:$0xff]
          %v3032 = vld [vmem:[#allocation9 + $0x958] sm:$0xff]
          %v3033 = vld [vmem:[#allocation9 + $0x960] sm:$0xff]
          %v3034 = vld [vmem:[#allocation9 + $0x968] sm:$0xff]
          %v3035 = vld [vmem:[#allocation9 + $0x970] sm:$0xff]
          %v3036 = vld [vmem:[#allocation9 + $0x978] sm:$0xff]
          %v3037 = vld [vmem:[#allocation9 + $0x980] sm:$0xff]
          %v3038 = vld [vmem:[#allocation9 + $0x988] sm:$0xff]
          %v3039 = vld [vmem:[#allocation9 + $0x990] sm:$0xff]
          %v3040 = vld [vmem:[#allocation9 + $0x998] sm:$0xff]
          %v3041 = vld [vmem:[#allocation9 + $0x9a0] sm:$0xff]
          %v3042 = vld [vmem:[#allocation9 + $0x9a8] sm:$0xff]
          %v3043 = vld [vmem:[#allocation9 + $0x9b0] sm:$0xff]
          %v3044 = vld [vmem:[#allocation9 + $0x9b8] sm:$0xff]
          %v3045 = vld [vmem:[#allocation9 + $0x9c0] sm:$0xff]
          %v3046 = vld [vmem:[#allocation9 + $0x9c8] sm:$0xff]
          %v3047 = vld [vmem:[#allocation9 + $0x9d0] sm:$0xff]
          %v3048 = vld [vmem:[#allocation9 + $0x9d8] sm:$0xff]
          %v3049 = vld [vmem:[#allocation9 + $0x9e0] sm:$0xff]
          %v3050 = vld [vmem:[#allocation9 + $0x9e8] sm:$0xff]
          %v3051 = vld [vmem:[#allocation9 + $0x9f0] sm:$0xff]
          %v3052 = vld [vmem:[#allocation9 + $0x9f8] sm:$0xff]
          %v3053 = vld [vmem:[#allocation9 + $0xa00] sm:$0xff]
          %v3054 = vld [vmem:[#allocation9 + $0xa08] sm:$0xff]
          %v3055 = vld [vmem:[#allocation9 + $0xa10] sm:$0xff]
          %v3056 = vld [vmem:[#allocation9 + $0xa18] sm:$0xff]
          %v3057 = vld [vmem:[#allocation9 + $0xa20] sm:$0xff]
          %v3058 = vld [vmem:[#allocation9 + $0xa28] sm:$0xff]
          %v3059 = vld [vmem:[#allocation9 + $0xa30] sm:$0xff]
          %v3060 = vld [vmem:[#allocation9 + $0xa38] sm:$0xff]
          %v3061 = vld [vmem:[#allocation9 + $0xa40] sm:$0xff]
          %v3062 = vld [vmem:[#allocation9 + $0xa48] sm:$0xff]
          %v3063 = vld [vmem:[#allocation9 + $0xa50] sm:$0xff]
          %v3064 = vld [vmem:[#allocation9 + $0xa58] sm:$0xff]
          %v3065 = vld [vmem:[#allocation9 + $0xa60] sm:$0xff]
          %v3066 = vld [vmem:[#allocation9 + $0xa68] sm:$0xff]
          %v3067 = vld [vmem:[#allocation9 + $0xa70] sm:$0xff]
          %v3068 = vld [vmem:[#allocation9 + $0xa78] sm:$0xff]
          %v3069 = vld [vmem:[#allocation9 + $0xa80] sm:$0xff]
          %v3070 = vld [vmem:[#allocation9 + $0xa88] sm:$0xff]
          %v3071 = vld [vmem:[#allocation9 + $0xa90] sm:$0xff]
          %v3072 = vld [vmem:[#allocation9 + $0xa98] sm:$0xff]
          %v3073 = vld [vmem:[#allocation9 + $0xaa0] sm:$0xff]
          %v3074 = vld [vmem:[#allocation9 + $0xaa8] sm:$0xff]
          %v3075 = vld [vmem:[#allocation9 + $0xab0] sm:$0xff]
          %v3076 = vld [vmem:[#allocation9 + $0xab8] sm:$0xff]
          %v3077 = vld [vmem:[#allocation9 + $0xac0] sm:$0xff]
          %v3078 = vld [vmem:[#allocation9 + $0xac8] sm:$0xff]
          %v3079 = vld [vmem:[#allocation9 + $0xad0] sm:$0xff]
          %v3080 = vld [vmem:[#allocation9 + $0xad8] sm:$0xff]
          %v3081 = vld [vmem:[#allocation9 + $0xae0] sm:$0xff]
          %v3082 = vld [vmem:[#allocation9 + $0xae8] sm:$0xff]
          %v3083 = vld [vmem:[#allocation9 + $0xaf0] sm:$0xff]
          %v3084 = vld [vmem:[#allocation9 + $0xaf8] sm:$0xff]
          %v3085 = vld [vmem:[#allocation9 + $0xb00] sm:$0xff]
          %v3086 = vld [vmem:[#allocation9 + $0xb08] sm:$0xff]
          %v3087 = vld [vmem:[#allocation9 + $0xb10] sm:$0xff]
          %v3088 = vld [vmem:[#allocation9 + $0xb18] sm:$0xff]
          %v3089 = vld [vmem:[#allocation9 + $0xb20] sm:$0xff]
          %v3090 = vld [vmem:[#allocation9 + $0xb28] sm:$0xff]
          %v3091 = vld [vmem:[#allocation9 + $0xb30] sm:$0xff]
          %v3092 = vld [vmem:[#allocation9 + $0xb38] sm:$0xff]
          %v3093 = vld [vmem:[#allocation9 + $0xb40] sm:$0xff]
          %v3094 = vld [vmem:[#allocation9 + $0xb48] sm:$0xff]
          %v3095 = vld [vmem:[#allocation9 + $0xb50] sm:$0xff]
          %v3096 = vld [vmem:[#allocation9 + $0xb58] sm:$0xff]
          %v3097 = vld [vmem:[#allocation9 + $0xb60] sm:$0xff]
          %v3098 = vld [vmem:[#allocation9 + $0xb68] sm:$0xff]
          %v3099 = vld [vmem:[#allocation9 + $0xb70] sm:$0xff]
          %v3100 = vld [vmem:[#allocation9 + $0xb78] sm:$0xff]
          %v3101 = vld [vmem:[#allocation9 + $0xb80] sm:$0xff]
          %v3102 = vld [vmem:[#allocation9 + $0xb88] sm:$0xff]
          %v3103 = vld [vmem:[#allocation9 + $0xb90] sm:$0xff]
          %v3104 = vld [vmem:[#allocation9 + $0xb98] sm:$0xff]
          %v3105 = vld [vmem:[#allocation9 + $0xba0] sm:$0xff]
          %v3106 = vld [vmem:[#allocation9 + $0xba8] sm:$0xff]
          %v3107 = vld [vmem:[#allocation9 + $0xbb0] sm:$0xff]
          %v3108 = vld [vmem:[#allocation9 + $0xbb8] sm:$0xff]
          %v3109 = vld [vmem:[#allocation9 + $0xbc0] sm:$0xff]
          %v3110 = vld [vmem:[#allocation9 + $0xbc8] sm:$0xff]
          %v3111 = vld [vmem:[#allocation9 + $0xbd0] sm:$0xff]
          %v3112 = vld [vmem:[#allocation9 + $0xbd8] sm:$0xff]
          %v3113 = vld [vmem:[#allocation9 + $0xbe0] sm:$0xff]
          %v3114 = vld [vmem:[#allocation9 + $0xbe8] sm:$0xff]
          %v3115 = vld [vmem:[#allocation9 + $0xbf0] sm:$0xff]
          %v3116 = vld [vmem:[#allocation9 + $0xbf8] sm:$0xff]
          %v3117 = vld [vmem:[#allocation9 + $0xc00] sm:$0xff]
          %v3118 = vld [vmem:[#allocation9 + $0xc08] sm:$0xff]
          %v3119 = vld [vmem:[#allocation9 + $0xc10] sm:$0xff]
          %v3120 = vld [vmem:[#allocation9 + $0xc18] sm:$0xff]
          %v3121 = vld [vmem:[#allocation9 + $0xc20] sm:$0xff]
          %v3122 = vld [vmem:[#allocation9 + $0xc28] sm:$0xff]
          %v3123 = vld [vmem:[#allocation9 + $0xc30] sm:$0xff]
          %v3124 = vld [vmem:[#allocation9 + $0xc38] sm:$0xff]
          %v3125 = vld [vmem:[#allocation9 + $0xc40] sm:$0xff]
          %v3126 = vld [vmem:[#allocation9 + $0xc48] sm:$0xff]
          %v3127 = vld [vmem:[#allocation9 + $0xc50] sm:$0xff]
          %v3128 = vld [vmem:[#allocation9 + $0xc58] sm:$0xff]
          %v3129 = vld [vmem:[#allocation9 + $0xc60] sm:$0xff]
          %v3130 = vld [vmem:[#allocation9 + $0xc68] sm:$0xff]
          %v3131 = vld [vmem:[#allocation9 + $0xc70] sm:$0xff]
          %v3132 = vld [vmem:[#allocation9 + $0xc78] sm:$0xff]
          %v3133 = vld [vmem:[#allocation9 + $0xc80] sm:$0xff]
          %v3134 = vld [vmem:[#allocation9 + $0xc88] sm:$0xff]
          %v3135 = vld [vmem:[#allocation9 + $0xc90] sm:$0xff]
          %v3136 = vld [vmem:[#allocation9 + $0xc98] sm:$0xff]
          %v3137 = vld [vmem:[#allocation9 + $0xca0] sm:$0xff]
          %v3138 = vld [vmem:[#allocation9 + $0xca8] sm:$0xff]
          %v3139 = vld [vmem:[#allocation9 + $0xcb0] sm:$0xff]
          %v3140 = vld [vmem:[#allocation9 + $0xcb8] sm:$0xff]
          %v3141 = vld [vmem:[#allocation9 + $0xcc0] sm:$0xff]
          %v3142 = vld [vmem:[#allocation9 + $0xcc8] sm:$0xff]
          %v3143 = vld [vmem:[#allocation9 + $0xcd0] sm:$0xff]
          %v3144 = vld [vmem:[#allocation9 + $0xcd8] sm:$0xff]
          %v3145 = vld [vmem:[#allocation9 + $0xce0] sm:$0xff]
          %v3146 = vld [vmem:[#allocation9 + $0xce8] sm:$0xff]
          %v3147 = vld [vmem:[#allocation9 + $0xcf0] sm:$0xff]
          %v3148 = vld [vmem:[#allocation9 + $0xcf8] sm:$0xff]
          %v3149 = vld [vmem:[#allocation9 + $0xd00] sm:$0xff]
          %v3150 = vld [vmem:[#allocation9 + $0xd08] sm:$0xff]
          %v3151 = vld [vmem:[#allocation9 + $0xd10] sm:$0xff]
          %v3152 = vld [vmem:[#allocation9 + $0xd18] sm:$0xff]
          %v3153 = vld [vmem:[#allocation9 + $0xd20] sm:$0xff]
          %v3154 = vld [vmem:[#allocation9 + $0xd28] sm:$0xff]
          %v3155 = vld [vmem:[#allocation9 + $0xd30] sm:$0xff]
          %v3156 = vld [vmem:[#allocation9 + $0xd38] sm:$0xff]
          %v3157 = vld [vmem:[#allocation9 + $0xd40] sm:$0xff]
          %v3158 = vld [vmem:[#allocation9 + $0xd48] sm:$0xff]
          %v3159 = vld [vmem:[#allocation9 + $0xd50] sm:$0xff]
          %v3160 = vld [vmem:[#allocation9 + $0xd58] sm:$0xff]
          %v3161 = vld [vmem:[#allocation9 + $0xd60] sm:$0xff]
          %v3162 = vld [vmem:[#allocation9 + $0xd68] sm:$0xff]
          %v3163 = vld [vmem:[#allocation9 + $0xd70] sm:$0xff]
          %v3164 = vld [vmem:[#allocation9 + $0xd78] sm:$0xff]
          %v3165 = vld [vmem:[#allocation9 + $0xd80] sm:$0xff]
          %v3166 = vld [vmem:[#allocation9 + $0xd88] sm:$0xff]
          %v3167 = vld [vmem:[#allocation9 + $0xd90] sm:$0xff]
          %v3168 = vld [vmem:[#allocation9 + $0xd98] sm:$0xff]
          %v3169 = vld [vmem:[#allocation9 + $0xda0] sm:$0xff]
          %v3170 = vld [vmem:[#allocation9 + $0xda8] sm:$0xff]
          %v3171 = vld [vmem:[#allocation9 + $0xdb0] sm:$0xff]
          %v3172 = vld [vmem:[#allocation9 + $0xdb8] sm:$0xff]
          %v3173 = vld [vmem:[#allocation9 + $0xdc0] sm:$0xff]
          %v3174 = vld [vmem:[#allocation9 + $0xdc8] sm:$0xff]
          %v3175 = vld [vmem:[#allocation9 + $0xdd0] sm:$0xff]
          %v3176 = vld [vmem:[#allocation9 + $0xdd8] sm:$0xff]
          %v3177 = vld [vmem:[#allocation9 + $0xde0] sm:$0xff]
          %v3178 = vld [vmem:[#allocation9 + $0xde8] sm:$0xff]
          %v3179 = vld [vmem:[#allocation9 + $0xdf0] sm:$0xff]
          %v3180 = vld [vmem:[#allocation9 + $0xdf8] sm:$0xff]
          %v3181 = vld [vmem:[#allocation9 + $0xe00] sm:$0xff]
          %v3182 = vld [vmem:[#allocation9 + $0xe08] sm:$0xff]
          %v3183 = vld [vmem:[#allocation9 + $0xe10] sm:$0xff]
          %v3184 = vld [vmem:[#allocation9 + $0xe18] sm:$0xff]
          %v3185 = vld [vmem:[#allocation9 + $0xe20] sm:$0xff]
          %v3186 = vld [vmem:[#allocation9 + $0xe28] sm:$0xff]
          %v3187 = vld [vmem:[#allocation9 + $0xe30] sm:$0xff]
          %v3188 = vld [vmem:[#allocation9 + $0xe38] sm:$0xff]
          %v3189 = vld [vmem:[#allocation9 + $0xe40] sm:$0xff]
          %v3190 = vld [vmem:[#allocation9 + $0xe48] sm:$0xff]
          %v3191 = vld [vmem:[#allocation9 + $0xe50] sm:$0xff]
          %v3192 = vld [vmem:[#allocation9 + $0xe58] sm:$0xff]
          %v3193 = vld [vmem:[#allocation9 + $0xe60] sm:$0xff]
          %v3194 = vld [vmem:[#allocation9 + $0xe68] sm:$0xff]
          %v3195 = vld [vmem:[#allocation9 + $0xe70] sm:$0xff]
          %v3196 = vld [vmem:[#allocation9 + $0xe78] sm:$0xff]
          %v3197 = vld [vmem:[#allocation9 + $0xe80] sm:$0xff]
          %v3198 = vld [vmem:[#allocation9 + $0xe88] sm:$0xff]
          %v3199 = vld [vmem:[#allocation9 + $0xe90] sm:$0xff]
          %v3200 = vld [vmem:[#allocation9 + $0xe98] sm:$0xff]
          %v3201 = vld [vmem:[#allocation9 + $0xea0] sm:$0xff]
          %v3202 = vld [vmem:[#allocation9 + $0xea8] sm:$0xff]
          %v3203 = vld [vmem:[#allocation9 + $0xeb0] sm:$0xff]
          %v3204 = vld [vmem:[#allocation9 + $0xeb8] sm:$0xff]
          %v3205 = vld [vmem:[#allocation9 + $0xec0] sm:$0xff]
          %v3206 = vld [vmem:[#allocation9 + $0xec8] sm:$0xff]
          %v3207 = vld [vmem:[#allocation9 + $0xed0] sm:$0xff]
          %v3208 = vld [vmem:[#allocation9 + $0xed8] sm:$0xff]
          %v3209 = vld [vmem:[#allocation9 + $0xee0] sm:$0xff]
          %v3210 = vld [vmem:[#allocation9 + $0xee8] sm:$0xff]
          %v3211 = vld [vmem:[#allocation9 + $0xef0] sm:$0xff]
          %v3212 = vld [vmem:[#allocation9 + $0xef8] sm:$0xff]
          %v3213 = vld [vmem:[#allocation9 + $0xf00] sm:$0xff]
          %v3214 = vld [vmem:[#allocation9 + $0xf08] sm:$0xff]
          %v3215 = vld [vmem:[#allocation9 + $0xf10] sm:$0xff]
          %v3216 = vld [vmem:[#allocation9 + $0xf18] sm:$0xff]
          %v3217 = vld [vmem:[#allocation9 + $0xf20] sm:$0xff]
          %v3218 = vld [vmem:[#allocation9 + $0xf28] sm:$0xff]
          %v3219 = vld [vmem:[#allocation9 + $0xf30] sm:$0xff]
          %v3220 = vld [vmem:[#allocation9 + $0xf38] sm:$0xff]
          %v3221 = vld [vmem:[#allocation9 + $0xf40] sm:$0xff]
          %v3222 = vld [vmem:[#allocation9 + $0xf48] sm:$0xff]
          %v3223 = vld [vmem:[#allocation9 + $0xf50] sm:$0xff]
          %v3224 = vld [vmem:[#allocation9 + $0xf58] sm:$0xff]
          %v3225 = vld [vmem:[#allocation9 + $0xf60] sm:$0xff]
          %v3226 = vld [vmem:[#allocation9 + $0xf68] sm:$0xff]
          %v3227 = vld [vmem:[#allocation9 + $0xf70] sm:$0xff]
          %v3228 = vld [vmem:[#allocation9 + $0xf78] sm:$0xff]
          %v3229 = vld [vmem:[#allocation9 + $0xf80] sm:$0xff]
          %v3230 = vld [vmem:[#allocation9 + $0xf88] sm:$0xff]
          %v3231 = vld [vmem:[#allocation9 + $0xf90] sm:$0xff]
          %v3232 = vld [vmem:[#allocation9 + $0xf98] sm:$0xff]
          %v3233 = vld [vmem:[#allocation9 + $0xfa0] sm:$0xff]
          %v3234 = vld [vmem:[#allocation9 + $0xfa8] sm:$0xff]
          %v3235 = vld [vmem:[#allocation9 + $0xfb0] sm:$0xff]
          %v3236 = vld [vmem:[#allocation9 + $0xfb8] sm:$0xff]
          %v3237 = vld [vmem:[#allocation9 + $0xfc0] sm:$0xff]
          %v3238 = vld [vmem:[#allocation9 + $0xfc8] sm:$0xff]
          %v3239 = vld [vmem:[#allocation9 + $0xfd0] sm:$0xff]
          %v3240 = vld [vmem:[#allocation9 + $0xfd8] sm:$0xff]
          %v3241 = vld [vmem:[#allocation9 + $0xfe0] sm:$0xff]
          %v3242 = vld [vmem:[#allocation9 + $0xfe8] sm:$0xff]
          %v3243 = vld [vmem:[#allocation9 + $0xff0] sm:$0xff]
          %v3244 = vld [vmem:[#allocation9 + $0xff8] sm:$0xff]
          %v3245 = vld [vmem:[#allocation11] sm:$0xff]
          %v3247 = vlaneseq
          %v3248 = vshrl.u32 %v3247, 7
          %v3249 = vsub.s32 0, %v3248
          %v3250 = vrot.slane %v3245, %v3249
          %v3251 = vlaneseq
          %v3252 = vshrl.u32 %v3251, 7
          %v3253 = vsub.s32 1, %v3252
          %v3254 = vrot.slane %v3245, %v3253
          %v3255 = vlaneseq
          %v3256 = vshrl.u32 %v3255, 7
          %v3257 = vsub.s32 2, %v3256
          %v3258 = vrot.slane %v3245, %v3257
          %v3259 = vlaneseq
          %v3260 = vshrl.u32 %v3259, 7
          %v3261 = vsub.s32 3, %v3260
          %v3262 = vrot.slane %v3245, %v3261
          %v3263 = vlaneseq
          %v3264 = vshrl.u32 %v3263, 7
          %v3265 = vsub.s32 4, %v3264
          %v3266 = vrot.slane %v3245, %v3265
          %v3267 = vlaneseq
          %v3268 = vshrl.u32 %v3267, 7
          %v3269 = vsub.s32 5, %v3268
          %v3270 = vrot.slane %v3245, %v3269
          %v3271 = vlaneseq
          %v3272 = vshrl.u32 %v3271, 7
          %v3273 = vsub.s32 6, %v3272
          %v3274 = vrot.slane %v3245, %v3273
          %v3275 = vlaneseq
          %v3276 = vshrl.u32 %v3275, 7
          %v3277 = vsub.s32 7, %v3276
          %v3278 = vrot.slane %v3245, %v3277
          %v3799 = vunpack.c.l.b16 %v2733
          %v3800 = vunpack.c.h.b16 %v2733
          %v3801 = vunpack.c.l.b16 %v2734
          %v3802 = vunpack.c.h.b16 %v2734
          %v3803 = vunpack.c.l.b16 %v2735
          %v3804 = vunpack.c.h.b16 %v2735
          %v3805 = vunpack.c.l.b16 %v2736
          %v3806 = vunpack.c.h.b16 %v2736
          %v3807 = vunpack.c.l.b16 %v2737
          %v3808 = vunpack.c.h.b16 %v2737
          %v3809 = vunpack.c.l.b16 %v2738
          %v3810 = vunpack.c.h.b16 %v2738
          %v3811 = vunpack.c.l.b16 %v2739
          %v3812 = vunpack.c.h.b16 %v2739
          %v3813 = vunpack.c.l.b16 %v2740
          %v3814 = vunpack.c.h.b16 %v2740
          %v3815 = vunpack.c.l.b16 %v2741
          %v3816 = vunpack.c.h.b16 %v2741
          %v3817 = vunpack.c.l.b16 %v2742
          %v3818 = vunpack.c.h.b16 %v2742
          %v3819 = vunpack.c.l.b16 %v2743
          %v3820 = vunpack.c.h.b16 %v2743
          %v3821 = vunpack.c.l.b16 %v2744
          %v3822 = vunpack.c.h.b16 %v2744
          %v3823 = vunpack.c.l.b16 %v2745
          %v3824 = vunpack.c.h.b16 %v2745
          %v3825 = vunpack.c.l.b16 %v2746
          %v3826 = vunpack.c.h.b16 %v2746
          %v3827 = vunpack.c.l.b16 %v2747
          %v3828 = vunpack.c.h.b16 %v2747
          %v3829 = vunpack.c.l.b16 %v2748
          %v3830 = vunpack.c.h.b16 %v2748
          %v3831 = vunpack.c.l.b16 %v2749
          %v3832 = vunpack.c.h.b16 %v2749
          %v3833 = vunpack.c.l.b16 %v2750
          %v3834 = vunpack.c.h.b16 %v2750
          %v3835 = vunpack.c.l.b16 %v2751
          %v3836 = vunpack.c.h.b16 %v2751
          %v3837 = vunpack.c.l.b16 %v2752
          %v3838 = vunpack.c.h.b16 %v2752
          %v3839 = vunpack.c.l.b16 %v2753
          %v3840 = vunpack.c.h.b16 %v2753
          %v3841 = vunpack.c.l.b16 %v2754
          %v3842 = vunpack.c.h.b16 %v2754
          %v3843 = vunpack.c.l.b16 %v2755
          %v3844 = vunpack.c.h.b16 %v2755
          %v3845 = vunpack.c.l.b16 %v2756
          %v3846 = vunpack.c.h.b16 %v2756
          %v3847 = vunpack.c.l.b16 %v2757
          %v3848 = vunpack.c.h.b16 %v2757
          %v3849 = vunpack.c.l.b16 %v2758
          %v3850 = vunpack.c.h.b16 %v2758
          %v3851 = vunpack.c.l.b16 %v2759
          %v3852 = vunpack.c.h.b16 %v2759
          %v3853 = vunpack.c.l.b16 %v2760
          %v3854 = vunpack.c.h.b16 %v2760
          %v3855 = vunpack.c.l.b16 %v2761
          %v3856 = vunpack.c.h.b16 %v2761
          %v3857 = vunpack.c.l.b16 %v2762
          %v3858 = vunpack.c.h.b16 %v2762
          %v3859 = vunpack.c.l.b16 %v2763
          %v3860 = vunpack.c.h.b16 %v2763
          %v3861 = vunpack.c.l.b16 %v2764
          %v3862 = vunpack.c.h.b16 %v2764
          %v3863 = vunpack.c.l.b16 %v2765
          %v3864 = vunpack.c.h.b16 %v2765
          %v3865 = vunpack.c.l.b16 %v2766
          %v3866 = vunpack.c.h.b16 %v2766
          %v3867 = vunpack.c.l.b16 %v2767
          %v3868 = vunpack.c.h.b16 %v2767
          %v3869 = vunpack.c.l.b16 %v2768
          %v3870 = vunpack.c.h.b16 %v2768
          %v3871 = vunpack.c.l.b16 %v2769
          %v3872 = vunpack.c.h.b16 %v2769
          %v3873 = vunpack.c.l.b16 %v2770
          %v3874 = vunpack.c.h.b16 %v2770
          %v3875 = vunpack.c.l.b16 %v2771
          %v3876 = vunpack.c.h.b16 %v2771
          %v3877 = vunpack.c.l.b16 %v2772
          %v3878 = vunpack.c.h.b16 %v2772
          %v3879 = vunpack.c.l.b16 %v2773
          %v3880 = vunpack.c.h.b16 %v2773
          %v3881 = vunpack.c.l.b16 %v2774
          %v3882 = vunpack.c.h.b16 %v2774
          %v3883 = vunpack.c.l.b16 %v2775
          %v3884 = vunpack.c.h.b16 %v2775
          %v3885 = vunpack.c.l.b16 %v2776
          %v3886 = vunpack.c.h.b16 %v2776
          %v3887 = vunpack.c.l.b16 %v2777
          %v3888 = vunpack.c.h.b16 %v2777
          %v3889 = vunpack.c.l.b16 %v2778
          %v3890 = vunpack.c.h.b16 %v2778
          %v3891 = vunpack.c.l.b16 %v2779
          %v3892 = vunpack.c.h.b16 %v2779
          %v3893 = vunpack.c.l.b16 %v2780
          %v3894 = vunpack.c.h.b16 %v2780
          %v3895 = vunpack.c.l.b16 %v2781
          %v3896 = vunpack.c.h.b16 %v2781
          %v3897 = vunpack.c.l.b16 %v2782
          %v3898 = vunpack.c.h.b16 %v2782
          %v3899 = vunpack.c.l.b16 %v2783
          %v3900 = vunpack.c.h.b16 %v2783
          %v3901 = vunpack.c.l.b16 %v2784
          %v3902 = vunpack.c.h.b16 %v2784
          %v3903 = vunpack.c.l.b16 %v2785
          %v3904 = vunpack.c.h.b16 %v2785
          %v3905 = vunpack.c.l.b16 %v2786
          %v3906 = vunpack.c.h.b16 %v2786
          %v3907 = vunpack.c.l.b16 %v2787
          %v3908 = vunpack.c.h.b16 %v2787
          %v3909 = vunpack.c.l.b16 %v2788
          %v3910 = vunpack.c.h.b16 %v2788
          %v3911 = vunpack.c.l.b16 %v2789
          %v3912 = vunpack.c.h.b16 %v2789
          %v3913 = vunpack.c.l.b16 %v2790
          %v3914 = vunpack.c.h.b16 %v2790
          %v3915 = vunpack.c.l.b16 %v2791
          %v3916 = vunpack.c.h.b16 %v2791
          %v3917 = vunpack.c.l.b16 %v2792
          %v3918 = vunpack.c.h.b16 %v2792
          %v3919 = vunpack.c.l.b16 %v2793
          %v3920 = vunpack.c.h.b16 %v2793
          %v3921 = vunpack.c.l.b16 %v2794
          %v3922 = vunpack.c.h.b16 %v2794
          %v3923 = vunpack.c.l.b16 %v2795
          %v3924 = vunpack.c.h.b16 %v2795
          %v3925 = vunpack.c.l.b16 %v2796
          %v3926 = vunpack.c.h.b16 %v2796
          %v3927 = vunpack.c.l.b16 %v2797
          %v3928 = vunpack.c.h.b16 %v2797
          %v3929 = vunpack.c.l.b16 %v2798
          %v3930 = vunpack.c.h.b16 %v2798
          %v3931 = vunpack.c.l.b16 %v2799
          %v3932 = vunpack.c.h.b16 %v2799
          %v3933 = vunpack.c.l.b16 %v2800
          %v3934 = vunpack.c.h.b16 %v2800
          %v3935 = vunpack.c.l.b16 %v2801
          %v3936 = vunpack.c.h.b16 %v2801
          %v3937 = vunpack.c.l.b16 %v2802
          %v3938 = vunpack.c.h.b16 %v2802
          %v3939 = vunpack.c.l.b16 %v2803
          %v3940 = vunpack.c.h.b16 %v2803
          %v3941 = vunpack.c.l.b16 %v2804
          %v3942 = vunpack.c.h.b16 %v2804
          %v3943 = vunpack.c.l.b16 %v2805
          %v3944 = vunpack.c.h.b16 %v2805
          %v3945 = vunpack.c.l.b16 %v2806
          %v3946 = vunpack.c.h.b16 %v2806
          %v3947 = vunpack.c.l.b16 %v2807
          %v3948 = vunpack.c.h.b16 %v2807
          %v3949 = vunpack.c.l.b16 %v2808
          %v3950 = vunpack.c.h.b16 %v2808
          %v3951 = vunpack.c.l.b16 %v2809
          %v3952 = vunpack.c.h.b16 %v2809
          %v3953 = vunpack.c.l.b16 %v2810
          %v3954 = vunpack.c.h.b16 %v2810
          %v3955 = vunpack.c.l.b16 %v2811
          %v3956 = vunpack.c.h.b16 %v2811
          %v3957 = vunpack.c.l.b16 %v2812
          %v3958 = vunpack.c.h.b16 %v2812
          %v3959 = vunpack.c.l.b16 %v2813
          %v3960 = vunpack.c.h.b16 %v2813
          %v3961 = vunpack.c.l.b16 %v2814
          %v3962 = vunpack.c.h.b16 %v2814
          %v3963 = vunpack.c.l.b16 %v2815
          %v3964 = vunpack.c.h.b16 %v2815
          %v3965 = vunpack.c.l.b16 %v2816
          %v3966 = vunpack.c.h.b16 %v2816
          %v3967 = vunpack.c.l.b16 %v2817
          %v3968 = vunpack.c.h.b16 %v2817
          %v3969 = vunpack.c.l.b16 %v2818
          %v3970 = vunpack.c.h.b16 %v2818
          %v3971 = vunpack.c.l.b16 %v2819
          %v3972 = vunpack.c.h.b16 %v2819
          %v3973 = vunpack.c.l.b16 %v2820
          %v3974 = vunpack.c.h.b16 %v2820
          %v3975 = vunpack.c.l.b16 %v2821
          %v3976 = vunpack.c.h.b16 %v2821
          %v3977 = vunpack.c.l.b16 %v2822
          %v3978 = vunpack.c.h.b16 %v2822
          %v3979 = vunpack.c.l.b16 %v2823
          %v3980 = vunpack.c.h.b16 %v2823
          %v3981 = vunpack.c.l.b16 %v2824
          %v3982 = vunpack.c.h.b16 %v2824
          %v3983 = vunpack.c.l.b16 %v2825
          %v3984 = vunpack.c.h.b16 %v2825
          %v3985 = vunpack.c.l.b16 %v2826
          %v3986 = vunpack.c.h.b16 %v2826
          %v3987 = vunpack.c.l.b16 %v2827
          %v3988 = vunpack.c.h.b16 %v2827
          %v3989 = vunpack.c.l.b16 %v2828
          %v3990 = vunpack.c.h.b16 %v2828
          %v3991 = vunpack.c.l.b16 %v2829
          %v3992 = vunpack.c.h.b16 %v2829
          %v3993 = vunpack.c.l.b16 %v2830
          %v3994 = vunpack.c.h.b16 %v2830
          %v3995 = vunpack.c.l.b16 %v2831
          %v3996 = vunpack.c.h.b16 %v2831
          %v3997 = vunpack.c.l.b16 %v2832
          %v3998 = vunpack.c.h.b16 %v2832
          %v3999 = vunpack.c.l.b16 %v2833
          %v4000 = vunpack.c.h.b16 %v2833
          %v4001 = vunpack.c.l.b16 %v2834
          %v4002 = vunpack.c.h.b16 %v2834
          %v4003 = vunpack.c.l.b16 %v2835
          %v4004 = vunpack.c.h.b16 %v2835
          %v4005 = vunpack.c.l.b16 %v2836
          %v4006 = vunpack.c.h.b16 %v2836
          %v4007 = vunpack.c.l.b16 %v2837
          %v4008 = vunpack.c.h.b16 %v2837
          %v4009 = vunpack.c.l.b16 %v2838
          %v4010 = vunpack.c.h.b16 %v2838
          %v4011 = vunpack.c.l.b16 %v2839
          %v4012 = vunpack.c.h.b16 %v2839
          %v4013 = vunpack.c.l.b16 %v2840
          %v4014 = vunpack.c.h.b16 %v2840
          %v4015 = vunpack.c.l.b16 %v2841
          %v4016 = vunpack.c.h.b16 %v2841
          %v4017 = vunpack.c.l.b16 %v2842
          %v4018 = vunpack.c.h.b16 %v2842
          %v4019 = vunpack.c.l.b16 %v2843
          %v4020 = vunpack.c.h.b16 %v2843
          %v4021 = vunpack.c.l.b16 %v2844
          %v4022 = vunpack.c.h.b16 %v2844
          %v4023 = vunpack.c.l.b16 %v2845
          %v4024 = vunpack.c.h.b16 %v2845
          %v4025 = vunpack.c.l.b16 %v2846
          %v4026 = vunpack.c.h.b16 %v2846
          %v4027 = vunpack.c.l.b16 %v2847
          %v4028 = vunpack.c.h.b16 %v2847
          %v4029 = vunpack.c.l.b16 %v2848
          %v4030 = vunpack.c.h.b16 %v2848
          %v4031 = vunpack.c.l.b16 %v2849
          %v4032 = vunpack.c.h.b16 %v2849
          %v4033 = vunpack.c.l.b16 %v2850
          %v4034 = vunpack.c.h.b16 %v2850
          %v4035 = vunpack.c.l.b16 %v2851
          %v4036 = vunpack.c.h.b16 %v2851
          %v4037 = vunpack.c.l.b16 %v2852
          %v4038 = vunpack.c.h.b16 %v2852
          %v4039 = vunpack.c.l.b16 %v2853
          %v4040 = vunpack.c.h.b16 %v2853
          %v4041 = vunpack.c.l.b16 %v2854
          %v4042 = vunpack.c.h.b16 %v2854
          %v4043 = vunpack.c.l.b16 %v2855
          %v4044 = vunpack.c.h.b16 %v2855
          %v4045 = vunpack.c.l.b16 %v2856
          %v4046 = vunpack.c.h.b16 %v2856
          %v4047 = vunpack.c.l.b16 %v2857
          %v4048 = vunpack.c.h.b16 %v2857
          %v4049 = vunpack.c.l.b16 %v2858
          %v4050 = vunpack.c.h.b16 %v2858
          %v4051 = vunpack.c.l.b16 %v2859
          %v4052 = vunpack.c.h.b16 %v2859
          %v4053 = vunpack.c.l.b16 %v2860
          %v4054 = vunpack.c.h.b16 %v2860
          %v4055 = vunpack.c.l.b16 %v2861
          %v4056 = vunpack.c.h.b16 %v2861
          %v4057 = vunpack.c.l.b16 %v2862
          %v4058 = vunpack.c.h.b16 %v2862
          %v4059 = vunpack.c.l.b16 %v2863
          %v4060 = vunpack.c.h.b16 %v2863
          %v4061 = vunpack.c.l.b16 %v2864
          %v4062 = vunpack.c.h.b16 %v2864
          %v4063 = vunpack.c.l.b16 %v2865
          %v4064 = vunpack.c.h.b16 %v2865
          %v4065 = vunpack.c.l.b16 %v2866
          %v4066 = vunpack.c.h.b16 %v2866
          %v4067 = vunpack.c.l.b16 %v2867
          %v4068 = vunpack.c.h.b16 %v2867
          %v4069 = vunpack.c.l.b16 %v2868
          %v4070 = vunpack.c.h.b16 %v2868
          %v4071 = vunpack.c.l.b16 %v2869
          %v4072 = vunpack.c.h.b16 %v2869
          %v4073 = vunpack.c.l.b16 %v2870
          %v4074 = vunpack.c.h.b16 %v2870
          %v4075 = vunpack.c.l.b16 %v2871
          %v4076 = vunpack.c.h.b16 %v2871
          %v4077 = vunpack.c.l.b16 %v2872
          %v4078 = vunpack.c.h.b16 %v2872
          %v4079 = vunpack.c.l.b16 %v2873
          %v4080 = vunpack.c.h.b16 %v2873
          %v4081 = vunpack.c.l.b16 %v2874
          %v4082 = vunpack.c.h.b16 %v2874
          %v4083 = vunpack.c.l.b16 %v2875
          %v4084 = vunpack.c.h.b16 %v2875
          %v4085 = vunpack.c.l.b16 %v2876
          %v4086 = vunpack.c.h.b16 %v2876
          %v4087 = vunpack.c.l.b16 %v2877
          %v4088 = vunpack.c.h.b16 %v2877
          %v4089 = vunpack.c.l.b16 %v2878
          %v4090 = vunpack.c.h.b16 %v2878
          %v4091 = vunpack.c.l.b16 %v2879
          %v4092 = vunpack.c.h.b16 %v2879
          %v4093 = vunpack.c.l.b16 %v2880
          %v4094 = vunpack.c.h.b16 %v2880
          %v4095 = vunpack.c.l.b16 %v2881
          %v4096 = vunpack.c.h.b16 %v2881
          %v4097 = vunpack.c.l.b16 %v2882
          %v4098 = vunpack.c.h.b16 %v2882
          %v4099 = vunpack.c.l.b16 %v2883
          %v4100 = vunpack.c.h.b16 %v2883
          %v4101 = vunpack.c.l.b16 %v2884
          %v4102 = vunpack.c.h.b16 %v2884
          %v4103 = vunpack.c.l.b16 %v2885
          %v4104 = vunpack.c.h.b16 %v2885
          %v4105 = vunpack.c.l.b16 %v2886
          %v4106 = vunpack.c.h.b16 %v2886
          %v4107 = vunpack.c.l.b16 %v2887
          %v4108 = vunpack.c.h.b16 %v2887
          %v4109 = vunpack.c.l.b16 %v2888
          %v4110 = vunpack.c.h.b16 %v2888
          %v4111 = vunpack.c.l.b16 %v2889
          %v4112 = vunpack.c.h.b16 %v2889
          %v4113 = vunpack.c.l.b16 %v2890
          %v4114 = vunpack.c.h.b16 %v2890
          %v4115 = vunpack.c.l.b16 %v2891
          %v4116 = vunpack.c.h.b16 %v2891
          %v4117 = vunpack.c.l.b16 %v2892
          %v4118 = vunpack.c.h.b16 %v2892
          %v4119 = vunpack.c.l.b16 %v2893
          %v4120 = vunpack.c.h.b16 %v2893
          %v4121 = vunpack.c.l.b16 %v2894
          %v4122 = vunpack.c.h.b16 %v2894
          %v4123 = vunpack.c.l.b16 %v2895
          %v4124 = vunpack.c.h.b16 %v2895
          %v4125 = vunpack.c.l.b16 %v2896
          %v4126 = vunpack.c.h.b16 %v2896
          %v4127 = vunpack.c.l.b16 %v2897
          %v4128 = vunpack.c.h.b16 %v2897
          %v4129 = vunpack.c.l.b16 %v2898
          %v4130 = vunpack.c.h.b16 %v2898
          %v4131 = vunpack.c.l.b16 %v2899
          %v4132 = vunpack.c.h.b16 %v2899
          %v4133 = vunpack.c.l.b16 %v2900
          %v4134 = vunpack.c.h.b16 %v2900
          %v4135 = vunpack.c.l.b16 %v2901
          %v4136 = vunpack.c.h.b16 %v2901
          %v4137 = vunpack.c.l.b16 %v2902
          %v4138 = vunpack.c.h.b16 %v2902
          %v4139 = vunpack.c.l.b16 %v2903
          %v4140 = vunpack.c.h.b16 %v2903
          %v4141 = vunpack.c.l.b16 %v2904
          %v4142 = vunpack.c.h.b16 %v2904
          %v4143 = vunpack.c.l.b16 %v2905
          %v4144 = vunpack.c.h.b16 %v2905
          %v4145 = vunpack.c.l.b16 %v2906
          %v4146 = vunpack.c.h.b16 %v2906
          %v4147 = vunpack.c.l.b16 %v2907
          %v4148 = vunpack.c.h.b16 %v2907
          %v4149 = vunpack.c.l.b16 %v2908
          %v4150 = vunpack.c.h.b16 %v2908
          %v4151 = vunpack.c.l.b16 %v2909
          %v4152 = vunpack.c.h.b16 %v2909
          %v4153 = vunpack.c.l.b16 %v2910
          %v4154 = vunpack.c.h.b16 %v2910
          %v4155 = vunpack.c.l.b16 %v2911
          %v4156 = vunpack.c.h.b16 %v2911
          %v4157 = vunpack.c.l.b16 %v2912
          %v4158 = vunpack.c.h.b16 %v2912
          %v4159 = vunpack.c.l.b16 %v2913
          %v4160 = vunpack.c.h.b16 %v2913
          %v4161 = vunpack.c.l.b16 %v2914
          %v4162 = vunpack.c.h.b16 %v2914
          %v4163 = vunpack.c.l.b16 %v2915
          %v4164 = vunpack.c.h.b16 %v2915
          %v4165 = vunpack.c.l.b16 %v2916
          %v4166 = vunpack.c.h.b16 %v2916
          %v4167 = vunpack.c.l.b16 %v2917
          %v4168 = vunpack.c.h.b16 %v2917
          %v4169 = vunpack.c.l.b16 %v2918
          %v4170 = vunpack.c.h.b16 %v2918
          %v4171 = vunpack.c.l.b16 %v2919
          %v4172 = vunpack.c.h.b16 %v2919
          %v4173 = vunpack.c.l.b16 %v2920
          %v4174 = vunpack.c.h.b16 %v2920
          %v4175 = vunpack.c.l.b16 %v2921
          %v4176 = vunpack.c.h.b16 %v2921
          %v4177 = vunpack.c.l.b16 %v2922
          %v4178 = vunpack.c.h.b16 %v2922
          %v4179 = vunpack.c.l.b16 %v2923
          %v4180 = vunpack.c.h.b16 %v2923
          %v4181 = vunpack.c.l.b16 %v2924
          %v4182 = vunpack.c.h.b16 %v2924
          %v4183 = vunpack.c.l.b16 %v2925
          %v4184 = vunpack.c.h.b16 %v2925
          %v4185 = vunpack.c.l.b16 %v2926
          %v4186 = vunpack.c.h.b16 %v2926
          %v4187 = vunpack.c.l.b16 %v2927
          %v4188 = vunpack.c.h.b16 %v2927
          %v4189 = vunpack.c.l.b16 %v2928
          %v4190 = vunpack.c.h.b16 %v2928
          %v4191 = vunpack.c.l.b16 %v2929
          %v4192 = vunpack.c.h.b16 %v2929
          %v4193 = vunpack.c.l.b16 %v2930
          %v4194 = vunpack.c.h.b16 %v2930
          %v4195 = vunpack.c.l.b16 %v2931
          %v4196 = vunpack.c.h.b16 %v2931
          %v4197 = vunpack.c.l.b16 %v2932
          %v4198 = vunpack.c.h.b16 %v2932
          %v4199 = vunpack.c.l.b16 %v2933
          %v4200 = vunpack.c.h.b16 %v2933
          %v4201 = vunpack.c.l.b16 %v2934
          %v4202 = vunpack.c.h.b16 %v2934
          %v4203 = vunpack.c.l.b16 %v2935
          %v4204 = vunpack.c.h.b16 %v2935
          %v4205 = vunpack.c.l.b16 %v2936
          %v4206 = vunpack.c.h.b16 %v2936
          %v4207 = vunpack.c.l.b16 %v2937
          %v4208 = vunpack.c.h.b16 %v2937
          %v4209 = vunpack.c.l.b16 %v2938
          %v4210 = vunpack.c.h.b16 %v2938
          %v4211 = vunpack.c.l.b16 %v2939
          %v4212 = vunpack.c.h.b16 %v2939
          %v4213 = vunpack.c.l.b16 %v2940
          %v4214 = vunpack.c.h.b16 %v2940
          %v4215 = vunpack.c.l.b16 %v2941
          %v4216 = vunpack.c.h.b16 %v2941
          %v4217 = vunpack.c.l.b16 %v2942
          %v4218 = vunpack.c.h.b16 %v2942
          %v4219 = vunpack.c.l.b16 %v2943
          %v4220 = vunpack.c.h.b16 %v2943
          %v4221 = vunpack.c.l.b16 %v2944
          %v4222 = vunpack.c.h.b16 %v2944
          %v4223 = vunpack.c.l.b16 %v2945
          %v4224 = vunpack.c.h.b16 %v2945
          %v4225 = vunpack.c.l.b16 %v2946
          %v4226 = vunpack.c.h.b16 %v2946
          %v4227 = vunpack.c.l.b16 %v2947
          %v4228 = vunpack.c.h.b16 %v2947
          %v4229 = vunpack.c.l.b16 %v2948
          %v4230 = vunpack.c.h.b16 %v2948
          %v4231 = vunpack.c.l.b16 %v2949
          %v4232 = vunpack.c.h.b16 %v2949
          %v4233 = vunpack.c.l.b16 %v2950
          %v4234 = vunpack.c.h.b16 %v2950
          %v4235 = vunpack.c.l.b16 %v2951
          %v4236 = vunpack.c.h.b16 %v2951
          %v4237 = vunpack.c.l.b16 %v2952
          %v4238 = vunpack.c.h.b16 %v2952
          %v4239 = vunpack.c.l.b16 %v2953
          %v4240 = vunpack.c.h.b16 %v2953
          %v4241 = vunpack.c.l.b16 %v2954
          %v4242 = vunpack.c.h.b16 %v2954
          %v4243 = vunpack.c.l.b16 %v2955
          %v4244 = vunpack.c.h.b16 %v2955
          %v4245 = vunpack.c.l.b16 %v2956
          %v4246 = vunpack.c.h.b16 %v2956
          %v4247 = vunpack.c.l.b16 %v2957
          %v4248 = vunpack.c.h.b16 %v2957
          %v4249 = vunpack.c.l.b16 %v2958
          %v4250 = vunpack.c.h.b16 %v2958
          %v4251 = vunpack.c.l.b16 %v2959
          %v4252 = vunpack.c.h.b16 %v2959
          %v4253 = vunpack.c.l.b16 %v2960
          %v4254 = vunpack.c.h.b16 %v2960
          %v4255 = vunpack.c.l.b16 %v2961
          %v4256 = vunpack.c.h.b16 %v2961
          %v4257 = vunpack.c.l.b16 %v2962
          %v4258 = vunpack.c.h.b16 %v2962
          %v4259 = vunpack.c.l.b16 %v2963
          %v4260 = vunpack.c.h.b16 %v2963
          %v4261 = vunpack.c.l.b16 %v2964
          %v4262 = vunpack.c.h.b16 %v2964
          %v4263 = vunpack.c.l.b16 %v2965
          %v4264 = vunpack.c.h.b16 %v2965
          %v4265 = vunpack.c.l.b16 %v2966
          %v4266 = vunpack.c.h.b16 %v2966
          %v4267 = vunpack.c.l.b16 %v2967
          %v4268 = vunpack.c.h.b16 %v2967
          %v4269 = vunpack.c.l.b16 %v2968
          %v4270 = vunpack.c.h.b16 %v2968
          %v4271 = vunpack.c.l.b16 %v2969
          %v4272 = vunpack.c.h.b16 %v2969
          %v4273 = vunpack.c.l.b16 %v2970
          %v4274 = vunpack.c.h.b16 %v2970
          %v4275 = vunpack.c.l.b16 %v2971
          %v4276 = vunpack.c.h.b16 %v2971
          %v4277 = vunpack.c.l.b16 %v2972
          %v4278 = vunpack.c.h.b16 %v2972
          %v4279 = vunpack.c.l.b16 %v2973
          %v4280 = vunpack.c.h.b16 %v2973
          %v4281 = vunpack.c.l.b16 %v2974
          %v4282 = vunpack.c.h.b16 %v2974
          %v4283 = vunpack.c.l.b16 %v2975
          %v4284 = vunpack.c.h.b16 %v2975
          %v4285 = vunpack.c.l.b16 %v2976
          %v4286 = vunpack.c.h.b16 %v2976
          %v4287 = vunpack.c.l.b16 %v2977
          %v4288 = vunpack.c.h.b16 %v2977
          %v4289 = vunpack.c.l.b16 %v2978
          %v4290 = vunpack.c.h.b16 %v2978
          %v4291 = vunpack.c.l.b16 %v2979
          %v4292 = vunpack.c.h.b16 %v2979
          %v4293 = vunpack.c.l.b16 %v2980
          %v4294 = vunpack.c.h.b16 %v2980
          %v4295 = vunpack.c.l.b16 %v2981
          %v4296 = vunpack.c.h.b16 %v2981
          %v4297 = vunpack.c.l.b16 %v2982
          %v4298 = vunpack.c.h.b16 %v2982
          %v4299 = vunpack.c.l.b16 %v2983
          %v4300 = vunpack.c.h.b16 %v2983
          %v4301 = vunpack.c.l.b16 %v2984
          %v4302 = vunpack.c.h.b16 %v2984
          %v4303 = vunpack.c.l.b16 %v2985
          %v4304 = vunpack.c.h.b16 %v2985
          %v4305 = vunpack.c.l.b16 %v2986
          %v4306 = vunpack.c.h.b16 %v2986
          %v4307 = vunpack.c.l.b16 %v2987
          %v4308 = vunpack.c.h.b16 %v2987
          %v4309 = vunpack.c.l.b16 %v2988
          %v4310 = vunpack.c.h.b16 %v2988
          %v4311 = vunpack.c.l.b16 %v2989
          %v4312 = vunpack.c.h.b16 %v2989
          %v4313 = vunpack.c.l.b16 %v2990
          %v4314 = vunpack.c.h.b16 %v2990
          %v4315 = vunpack.c.l.b16 %v2991
          %v4316 = vunpack.c.h.b16 %v2991
          %v4317 = vunpack.c.l.b16 %v2992
          %v4318 = vunpack.c.h.b16 %v2992
          %v4319 = vunpack.c.l.b16 %v2993
          %v4320 = vunpack.c.h.b16 %v2993
          %v4321 = vunpack.c.l.b16 %v2994
          %v4322 = vunpack.c.h.b16 %v2994
          %v4323 = vunpack.c.l.b16 %v2995
          %v4324 = vunpack.c.h.b16 %v2995
          %v4325 = vunpack.c.l.b16 %v2996
          %v4326 = vunpack.c.h.b16 %v2996
          %v4327 = vunpack.c.l.b16 %v2997
          %v4328 = vunpack.c.h.b16 %v2997
          %v4329 = vunpack.c.l.b16 %v2998
          %v4330 = vunpack.c.h.b16 %v2998
          %v4331 = vunpack.c.l.b16 %v2999
          %v4332 = vunpack.c.h.b16 %v2999
          %v4333 = vunpack.c.l.b16 %v3000
          %v4334 = vunpack.c.h.b16 %v3000
          %v4335 = vunpack.c.l.b16 %v3001
          %v4336 = vunpack.c.h.b16 %v3001
          %v4337 = vunpack.c.l.b16 %v3002
          %v4338 = vunpack.c.h.b16 %v3002
          %v4339 = vunpack.c.l.b16 %v3003
          %v4340 = vunpack.c.h.b16 %v3003
          %v4341 = vunpack.c.l.b16 %v3004
          %v4342 = vunpack.c.h.b16 %v3004
          %v4343 = vunpack.c.l.b16 %v3005
          %v4344 = vunpack.c.h.b16 %v3005
          %v4345 = vunpack.c.l.b16 %v3006
          %v4346 = vunpack.c.h.b16 %v3006
          %v4347 = vunpack.c.l.b16 %v3007
          %v4348 = vunpack.c.h.b16 %v3007
          %v4349 = vunpack.c.l.b16 %v3008
          %v4350 = vunpack.c.h.b16 %v3008
          %v4351 = vunpack.c.l.b16 %v3009
          %v4352 = vunpack.c.h.b16 %v3009
          %v4353 = vunpack.c.l.b16 %v3010
          %v4354 = vunpack.c.h.b16 %v3010
          %v4355 = vunpack.c.l.b16 %v3011
          %v4356 = vunpack.c.h.b16 %v3011
          %v4357 = vunpack.c.l.b16 %v3012
          %v4358 = vunpack.c.h.b16 %v3012
          %v4359 = vunpack.c.l.b16 %v3013
          %v4360 = vunpack.c.h.b16 %v3013
          %v4361 = vunpack.c.l.b16 %v3014
          %v4362 = vunpack.c.h.b16 %v3014
          %v4363 = vunpack.c.l.b16 %v3015
          %v4364 = vunpack.c.h.b16 %v3015
          %v4365 = vunpack.c.l.b16 %v3016
          %v4366 = vunpack.c.h.b16 %v3016
          %v4367 = vunpack.c.l.b16 %v3017
          %v4368 = vunpack.c.h.b16 %v3017
          %v4369 = vunpack.c.l.b16 %v3018
          %v4370 = vunpack.c.h.b16 %v3018
          %v4371 = vunpack.c.l.b16 %v3019
          %v4372 = vunpack.c.h.b16 %v3019
          %v4373 = vunpack.c.l.b16 %v3020
          %v4374 = vunpack.c.h.b16 %v3020
          %v4375 = vunpack.c.l.b16 %v3021
          %v4376 = vunpack.c.h.b16 %v3021
          %v4377 = vunpack.c.l.b16 %v3022
          %v4378 = vunpack.c.h.b16 %v3022
          %v4379 = vunpack.c.l.b16 %v3023
          %v4380 = vunpack.c.h.b16 %v3023
          %v4381 = vunpack.c.l.b16 %v3024
          %v4382 = vunpack.c.h.b16 %v3024
          %v4383 = vunpack.c.l.b16 %v3025
          %v4384 = vunpack.c.h.b16 %v3025
          %v4385 = vunpack.c.l.b16 %v3026
          %v4386 = vunpack.c.h.b16 %v3026
          %v4387 = vunpack.c.l.b16 %v3027
          %v4388 = vunpack.c.h.b16 %v3027
          %v4389 = vunpack.c.l.b16 %v3028
          %v4390 = vunpack.c.h.b16 %v3028
          %v4391 = vunpack.c.l.b16 %v3029
          %v4392 = vunpack.c.h.b16 %v3029
          %v4393 = vunpack.c.l.b16 %v3030
          %v4394 = vunpack.c.h.b16 %v3030
          %v4395 = vunpack.c.l.b16 %v3031
          %v4396 = vunpack.c.h.b16 %v3031
          %v4397 = vunpack.c.l.b16 %v3032
          %v4398 = vunpack.c.h.b16 %v3032
          %v4399 = vunpack.c.l.b16 %v3033
          %v4400 = vunpack.c.h.b16 %v3033
          %v4401 = vunpack.c.l.b16 %v3034
          %v4402 = vunpack.c.h.b16 %v3034
          %v4403 = vunpack.c.l.b16 %v3035
          %v4404 = vunpack.c.h.b16 %v3035
          %v4405 = vunpack.c.l.b16 %v3036
          %v4406 = vunpack.c.h.b16 %v3036
          %v4407 = vunpack.c.l.b16 %v3037
          %v4408 = vunpack.c.h.b16 %v3037
          %v4409 = vunpack.c.l.b16 %v3038
          %v4410 = vunpack.c.h.b16 %v3038
          %v4411 = vunpack.c.l.b16 %v3039
          %v4412 = vunpack.c.h.b16 %v3039
          %v4413 = vunpack.c.l.b16 %v3040
          %v4414 = vunpack.c.h.b16 %v3040
          %v4415 = vunpack.c.l.b16 %v3041
          %v4416 = vunpack.c.h.b16 %v3041
          %v4417 = vunpack.c.l.b16 %v3042
          %v4418 = vunpack.c.h.b16 %v3042
          %v4419 = vunpack.c.l.b16 %v3043
          %v4420 = vunpack.c.h.b16 %v3043
          %v4421 = vunpack.c.l.b16 %v3044
          %v4422 = vunpack.c.h.b16 %v3044
          %v4423 = vunpack.c.l.b16 %v3045
          %v4424 = vunpack.c.h.b16 %v3045
          %v4425 = vunpack.c.l.b16 %v3046
          %v4426 = vunpack.c.h.b16 %v3046
          %v4427 = vunpack.c.l.b16 %v3047
          %v4428 = vunpack.c.h.b16 %v3047
          %v4429 = vunpack.c.l.b16 %v3048
          %v4430 = vunpack.c.h.b16 %v3048
          %v4431 = vunpack.c.l.b16 %v3049
          %v4432 = vunpack.c.h.b16 %v3049
          %v4433 = vunpack.c.l.b16 %v3050
          %v4434 = vunpack.c.h.b16 %v3050
          %v4435 = vunpack.c.l.b16 %v3051
          %v4436 = vunpack.c.h.b16 %v3051
          %v4437 = vunpack.c.l.b16 %v3052
          %v4438 = vunpack.c.h.b16 %v3052
          %v4439 = vunpack.c.l.b16 %v3053
          %v4440 = vunpack.c.h.b16 %v3053
          %v4441 = vunpack.c.l.b16 %v3054
          %v4442 = vunpack.c.h.b16 %v3054
          %v4443 = vunpack.c.l.b16 %v3055
          %v4444 = vunpack.c.h.b16 %v3055
          %v4445 = vunpack.c.l.b16 %v3056
          %v4446 = vunpack.c.h.b16 %v3056
          %v4447 = vunpack.c.l.b16 %v3057
          %v4448 = vunpack.c.h.b16 %v3057
          %v4449 = vunpack.c.l.b16 %v3058
          %v4450 = vunpack.c.h.b16 %v3058
          %v4451 = vunpack.c.l.b16 %v3059
          %v4452 = vunpack.c.h.b16 %v3059
          %v4453 = vunpack.c.l.b16 %v3060
          %v4454 = vunpack.c.h.b16 %v3060
          %v4455 = vunpack.c.l.b16 %v3061
          %v4456 = vunpack.c.h.b16 %v3061
          %v4457 = vunpack.c.l.b16 %v3062
          %v4458 = vunpack.c.h.b16 %v3062
          %v4459 = vunpack.c.l.b16 %v3063
          %v4460 = vunpack.c.h.b16 %v3063
          %v4461 = vunpack.c.l.b16 %v3064
          %v4462 = vunpack.c.h.b16 %v3064
          %v4463 = vunpack.c.l.b16 %v3065
          %v4464 = vunpack.c.h.b16 %v3065
          %v4465 = vunpack.c.l.b16 %v3066
          %v4466 = vunpack.c.h.b16 %v3066
          %v4467 = vunpack.c.l.b16 %v3067
          %v4468 = vunpack.c.h.b16 %v3067
          %v4469 = vunpack.c.l.b16 %v3068
          %v4470 = vunpack.c.h.b16 %v3068
          %v4471 = vunpack.c.l.b16 %v3069
          %v4472 = vunpack.c.h.b16 %v3069
          %v4473 = vunpack.c.l.b16 %v3070
          %v4474 = vunpack.c.h.b16 %v3070
          %v4475 = vunpack.c.l.b16 %v3071
          %v4476 = vunpack.c.h.b16 %v3071
          %v4477 = vunpack.c.l.b16 %v3072
          %v4478 = vunpack.c.h.b16 %v3072
          %v4479 = vunpack.c.l.b16 %v3073
          %v4480 = vunpack.c.h.b16 %v3073
          %v4481 = vunpack.c.l.b16 %v3074
          %v4482 = vunpack.c.h.b16 %v3074
          %v4483 = vunpack.c.l.b16 %v3075
          %v4484 = vunpack.c.h.b16 %v3075
          %v4485 = vunpack.c.l.b16 %v3076
          %v4486 = vunpack.c.h.b16 %v3076
          %v4487 = vunpack.c.l.b16 %v3077
          %v4488 = vunpack.c.h.b16 %v3077
          %v4489 = vunpack.c.l.b16 %v3078
          %v4490 = vunpack.c.h.b16 %v3078
          %v4491 = vunpack.c.l.b16 %v3079
          %v4492 = vunpack.c.h.b16 %v3079
          %v4493 = vunpack.c.l.b16 %v3080
          %v4494 = vunpack.c.h.b16 %v3080
          %v4495 = vunpack.c.l.b16 %v3081
          %v4496 = vunpack.c.h.b16 %v3081
          %v4497 = vunpack.c.l.b16 %v3082
          %v4498 = vunpack.c.h.b16 %v3082
          %v4499 = vunpack.c.l.b16 %v3083
          %v4500 = vunpack.c.h.b16 %v3083
          %v4501 = vunpack.c.l.b16 %v3084
          %v4502 = vunpack.c.h.b16 %v3084
          %v4503 = vunpack.c.l.b16 %v3085
          %v4504 = vunpack.c.h.b16 %v3085
          %v4505 = vunpack.c.l.b16 %v3086
          %v4506 = vunpack.c.h.b16 %v3086
          %v4507 = vunpack.c.l.b16 %v3087
          %v4508 = vunpack.c.h.b16 %v3087
          %v4509 = vunpack.c.l.b16 %v3088
          %v4510 = vunpack.c.h.b16 %v3088
          %v4511 = vunpack.c.l.b16 %v3089
          %v4512 = vunpack.c.h.b16 %v3089
          %v4513 = vunpack.c.l.b16 %v3090
          %v4514 = vunpack.c.h.b16 %v3090
          %v4515 = vunpack.c.l.b16 %v3091
          %v4516 = vunpack.c.h.b16 %v3091
          %v4517 = vunpack.c.l.b16 %v3092
          %v4518 = vunpack.c.h.b16 %v3092
          %v4519 = vunpack.c.l.b16 %v3093
          %v4520 = vunpack.c.h.b16 %v3093
          %v4521 = vunpack.c.l.b16 %v3094
          %v4522 = vunpack.c.h.b16 %v3094
          %v4523 = vunpack.c.l.b16 %v3095
          %v4524 = vunpack.c.h.b16 %v3095
          %v4525 = vunpack.c.l.b16 %v3096
          %v4526 = vunpack.c.h.b16 %v3096
          %v4527 = vunpack.c.l.b16 %v3097
          %v4528 = vunpack.c.h.b16 %v3097
          %v4529 = vunpack.c.l.b16 %v3098
          %v4530 = vunpack.c.h.b16 %v3098
          %v4531 = vunpack.c.l.b16 %v3099
          %v4532 = vunpack.c.h.b16 %v3099
          %v4533 = vunpack.c.l.b16 %v3100
          %v4534 = vunpack.c.h.b16 %v3100
          %v4535 = vunpack.c.l.b16 %v3101
          %v4536 = vunpack.c.h.b16 %v3101
          %v4537 = vunpack.c.l.b16 %v3102
          %v4538 = vunpack.c.h.b16 %v3102
          %v4539 = vunpack.c.l.b16 %v3103
          %v4540 = vunpack.c.h.b16 %v3103
          %v4541 = vunpack.c.l.b16 %v3104
          %v4542 = vunpack.c.h.b16 %v3104
          %v4543 = vunpack.c.l.b16 %v3105
          %v4544 = vunpack.c.h.b16 %v3105
          %v4545 = vunpack.c.l.b16 %v3106
          %v4546 = vunpack.c.h.b16 %v3106
          %v4547 = vunpack.c.l.b16 %v3107
          %v4548 = vunpack.c.h.b16 %v3107
          %v4549 = vunpack.c.l.b16 %v3108
          %v4550 = vunpack.c.h.b16 %v3108
          %v4551 = vunpack.c.l.b16 %v3109
          %v4552 = vunpack.c.h.b16 %v3109
          %v4553 = vunpack.c.l.b16 %v3110
          %v4554 = vunpack.c.h.b16 %v3110
          %v4555 = vunpack.c.l.b16 %v3111
          %v4556 = vunpack.c.h.b16 %v3111
          %v4557 = vunpack.c.l.b16 %v3112
          %v4558 = vunpack.c.h.b16 %v3112
          %v4559 = vunpack.c.l.b16 %v3113
          %v4560 = vunpack.c.h.b16 %v3113
          %v4561 = vunpack.c.l.b16 %v3114
          %v4562 = vunpack.c.h.b16 %v3114
          %v4563 = vunpack.c.l.b16 %v3115
          %v4564 = vunpack.c.h.b16 %v3115
          %v4565 = vunpack.c.l.b16 %v3116
          %v4566 = vunpack.c.h.b16 %v3116
          %v4567 = vunpack.c.l.b16 %v3117
          %v4568 = vunpack.c.h.b16 %v3117
          %v4569 = vunpack.c.l.b16 %v3118
          %v4570 = vunpack.c.h.b16 %v3118
          %v4571 = vunpack.c.l.b16 %v3119
          %v4572 = vunpack.c.h.b16 %v3119
          %v4573 = vunpack.c.l.b16 %v3120
          %v4574 = vunpack.c.h.b16 %v3120
          %v4575 = vunpack.c.l.b16 %v3121
          %v4576 = vunpack.c.h.b16 %v3121
          %v4577 = vunpack.c.l.b16 %v3122
          %v4578 = vunpack.c.h.b16 %v3122
          %v4579 = vunpack.c.l.b16 %v3123
          %v4580 = vunpack.c.h.b16 %v3123
          %v4581 = vunpack.c.l.b16 %v3124
          %v4582 = vunpack.c.h.b16 %v3124
          %v4583 = vunpack.c.l.b16 %v3125
          %v4584 = vunpack.c.h.b16 %v3125
          %v4585 = vunpack.c.l.b16 %v3126
          %v4586 = vunpack.c.h.b16 %v3126
          %v4587 = vunpack.c.l.b16 %v3127
          %v4588 = vunpack.c.h.b16 %v3127
          %v4589 = vunpack.c.l.b16 %v3128
          %v4590 = vunpack.c.h.b16 %v3128
          %v4591 = vunpack.c.l.b16 %v3129
          %v4592 = vunpack.c.h.b16 %v3129
          %v4593 = vunpack.c.l.b16 %v3130
          %v4594 = vunpack.c.h.b16 %v3130
          %v4595 = vunpack.c.l.b16 %v3131
          %v4596 = vunpack.c.h.b16 %v3131
          %v4597 = vunpack.c.l.b16 %v3132
          %v4598 = vunpack.c.h.b16 %v3132
          %v4599 = vunpack.c.l.b16 %v3133
          %v4600 = vunpack.c.h.b16 %v3133
          %v4601 = vunpack.c.l.b16 %v3134
          %v4602 = vunpack.c.h.b16 %v3134
          %v4603 = vunpack.c.l.b16 %v3135
          %v4604 = vunpack.c.h.b16 %v3135
          %v4605 = vunpack.c.l.b16 %v3136
          %v4606 = vunpack.c.h.b16 %v3136
          %v4607 = vunpack.c.l.b16 %v3137
          %v4608 = vunpack.c.h.b16 %v3137
          %v4609 = vunpack.c.l.b16 %v3138
          %v4610 = vunpack.c.h.b16 %v3138
          %v4611 = vunpack.c.l.b16 %v3139
          %v4612 = vunpack.c.h.b16 %v3139
          %v4613 = vunpack.c.l.b16 %v3140
          %v4614 = vunpack.c.h.b16 %v3140
          %v4615 = vunpack.c.l.b16 %v3141
          %v4616 = vunpack.c.h.b16 %v3141
          %v4617 = vunpack.c.l.b16 %v3142
          %v4618 = vunpack.c.h.b16 %v3142
          %v4619 = vunpack.c.l.b16 %v3143
          %v4620 = vunpack.c.h.b16 %v3143
          %v4621 = vunpack.c.l.b16 %v3144
          %v4622 = vunpack.c.h.b16 %v3144
          %v4623 = vunpack.c.l.b16 %v3145
          %v4624 = vunpack.c.h.b16 %v3145
          %v4625 = vunpack.c.l.b16 %v3146
          %v4626 = vunpack.c.h.b16 %v3146
          %v4627 = vunpack.c.l.b16 %v3147
          %v4628 = vunpack.c.h.b16 %v3147
          %v4629 = vunpack.c.l.b16 %v3148
          %v4630 = vunpack.c.h.b16 %v3148
          %v4631 = vunpack.c.l.b16 %v3149
          %v4632 = vunpack.c.h.b16 %v3149
          %v4633 = vunpack.c.l.b16 %v3150
          %v4634 = vunpack.c.h.b16 %v3150
          %v4635 = vunpack.c.l.b16 %v3151
          %v4636 = vunpack.c.h.b16 %v3151
          %v4637 = vunpack.c.l.b16 %v3152
          %v4638 = vunpack.c.h.b16 %v3152
          %v4639 = vunpack.c.l.b16 %v3153
          %v4640 = vunpack.c.h.b16 %v3153
          %v4641 = vunpack.c.l.b16 %v3154
          %v4642 = vunpack.c.h.b16 %v3154
          %v4643 = vunpack.c.l.b16 %v3155
          %v4644 = vunpack.c.h.b16 %v3155
          %v4645 = vunpack.c.l.b16 %v3156
          %v4646 = vunpack.c.h.b16 %v3156
          %v4647 = vunpack.c.l.b16 %v3157
          %v4648 = vunpack.c.h.b16 %v3157
          %v4649 = vunpack.c.l.b16 %v3158
          %v4650 = vunpack.c.h.b16 %v3158
          %v4651 = vunpack.c.l.b16 %v3159
          %v4652 = vunpack.c.h.b16 %v3159
          %v4653 = vunpack.c.l.b16 %v3160
          %v4654 = vunpack.c.h.b16 %v3160
          %v4655 = vunpack.c.l.b16 %v3161
          %v4656 = vunpack.c.h.b16 %v3161
          %v4657 = vunpack.c.l.b16 %v3162
          %v4658 = vunpack.c.h.b16 %v3162
          %v4659 = vunpack.c.l.b16 %v3163
          %v4660 = vunpack.c.h.b16 %v3163
          %v4661 = vunpack.c.l.b16 %v3164
          %v4662 = vunpack.c.h.b16 %v3164
          %v4663 = vunpack.c.l.b16 %v3165
          %v4664 = vunpack.c.h.b16 %v3165
          %v4665 = vunpack.c.l.b16 %v3166
          %v4666 = vunpack.c.h.b16 %v3166
          %v4667 = vunpack.c.l.b16 %v3167
          %v4668 = vunpack.c.h.b16 %v3167
          %v4669 = vunpack.c.l.b16 %v3168
          %v4670 = vunpack.c.h.b16 %v3168
          %v4671 = vunpack.c.l.b16 %v3169
          %v4672 = vunpack.c.h.b16 %v3169
          %v4673 = vunpack.c.l.b16 %v3170
          %v4674 = vunpack.c.h.b16 %v3170
          %v4675 = vunpack.c.l.b16 %v3171
          %v4676 = vunpack.c.h.b16 %v3171
          %v4677 = vunpack.c.l.b16 %v3172
          %v4678 = vunpack.c.h.b16 %v3172
          %v4679 = vunpack.c.l.b16 %v3173
          %v4680 = vunpack.c.h.b16 %v3173
          %v4681 = vunpack.c.l.b16 %v3174
          %v4682 = vunpack.c.h.b16 %v3174
          %v4683 = vunpack.c.l.b16 %v3175
          %v4684 = vunpack.c.h.b16 %v3175
          %v4685 = vunpack.c.l.b16 %v3176
          %v4686 = vunpack.c.h.b16 %v3176
          %v4687 = vunpack.c.l.b16 %v3177
          %v4688 = vunpack.c.h.b16 %v3177
          %v4689 = vunpack.c.l.b16 %v3178
          %v4690 = vunpack.c.h.b16 %v3178
          %v4691 = vunpack.c.l.b16 %v3179
          %v4692 = vunpack.c.h.b16 %v3179
          %v4693 = vunpack.c.l.b16 %v3180
          %v4694 = vunpack.c.h.b16 %v3180
          %v4695 = vunpack.c.l.b16 %v3181
          %v4696 = vunpack.c.h.b16 %v3181
          %v4697 = vunpack.c.l.b16 %v3182
          %v4698 = vunpack.c.h.b16 %v3182
          %v4699 = vunpack.c.l.b16 %v3183
          %v4700 = vunpack.c.h.b16 %v3183
          %v4701 = vunpack.c.l.b16 %v3184
          %v4702 = vunpack.c.h.b16 %v3184
          %v4703 = vunpack.c.l.b16 %v3185
          %v4704 = vunpack.c.h.b16 %v3185
          %v4705 = vunpack.c.l.b16 %v3186
          %v4706 = vunpack.c.h.b16 %v3186
          %v4707 = vunpack.c.l.b16 %v3187
          %v4708 = vunpack.c.h.b16 %v3187
          %v4709 = vunpack.c.l.b16 %v3188
          %v4710 = vunpack.c.h.b16 %v3188
          %v4711 = vunpack.c.l.b16 %v3189
          %v4712 = vunpack.c.h.b16 %v3189
          %v4713 = vunpack.c.l.b16 %v3190
          %v4714 = vunpack.c.h.b16 %v3190
          %v4715 = vunpack.c.l.b16 %v3191
          %v4716 = vunpack.c.h.b16 %v3191
          %v4717 = vunpack.c.l.b16 %v3192
          %v4718 = vunpack.c.h.b16 %v3192
          %v4719 = vunpack.c.l.b16 %v3193
          %v4720 = vunpack.c.h.b16 %v3193
          %v4721 = vunpack.c.l.b16 %v3194
          %v4722 = vunpack.c.h.b16 %v3194
          %v4723 = vunpack.c.l.b16 %v3195
          %v4724 = vunpack.c.h.b16 %v3195
          %v4725 = vunpack.c.l.b16 %v3196
          %v4726 = vunpack.c.h.b16 %v3196
          %v4727 = vunpack.c.l.b16 %v3197
          %v4728 = vunpack.c.h.b16 %v3197
          %v4729 = vunpack.c.l.b16 %v3198
          %v4730 = vunpack.c.h.b16 %v3198
          %v4731 = vunpack.c.l.b16 %v3199
          %v4732 = vunpack.c.h.b16 %v3199
          %v4733 = vunpack.c.l.b16 %v3200
          %v4734 = vunpack.c.h.b16 %v3200
          %v4735 = vunpack.c.l.b16 %v3201
          %v4736 = vunpack.c.h.b16 %v3201
          %v4737 = vunpack.c.l.b16 %v3202
          %v4738 = vunpack.c.h.b16 %v3202
          %v4739 = vunpack.c.l.b16 %v3203
          %v4740 = vunpack.c.h.b16 %v3203
          %v4741 = vunpack.c.l.b16 %v3204
          %v4742 = vunpack.c.h.b16 %v3204
          %v4743 = vunpack.c.l.b16 %v3205
          %v4744 = vunpack.c.h.b16 %v3205
          %v4745 = vunpack.c.l.b16 %v3206
          %v4746 = vunpack.c.h.b16 %v3206
          %v4747 = vunpack.c.l.b16 %v3207
          %v4748 = vunpack.c.h.b16 %v3207
          %v4749 = vunpack.c.l.b16 %v3208
          %v4750 = vunpack.c.h.b16 %v3208
          %v4751 = vunpack.c.l.b16 %v3209
          %v4752 = vunpack.c.h.b16 %v3209
          %v4753 = vunpack.c.l.b16 %v3210
          %v4754 = vunpack.c.h.b16 %v3210
          %v4755 = vunpack.c.l.b16 %v3211
          %v4756 = vunpack.c.h.b16 %v3211
          %v4757 = vunpack.c.l.b16 %v3212
          %v4758 = vunpack.c.h.b16 %v3212
          %v4759 = vunpack.c.l.b16 %v3213
          %v4760 = vunpack.c.h.b16 %v3213
          %v4761 = vunpack.c.l.b16 %v3214
          %v4762 = vunpack.c.h.b16 %v3214
          %v4763 = vunpack.c.l.b16 %v3215
          %v4764 = vunpack.c.h.b16 %v3215
          %v4765 = vunpack.c.l.b16 %v3216
          %v4766 = vunpack.c.h.b16 %v3216
          %v4767 = vunpack.c.l.b16 %v3217
          %v4768 = vunpack.c.h.b16 %v3217
          %v4769 = vunpack.c.l.b16 %v3218
          %v4770 = vunpack.c.h.b16 %v3218
          %v4771 = vunpack.c.l.b16 %v3219
          %v4772 = vunpack.c.h.b16 %v3219
          %v4773 = vunpack.c.l.b16 %v3220
          %v4774 = vunpack.c.h.b16 %v3220
          %v4775 = vunpack.c.l.b16 %v3221
          %v4776 = vunpack.c.h.b16 %v3221
          %v4777 = vunpack.c.l.b16 %v3222
          %v4778 = vunpack.c.h.b16 %v3222
          %v4779 = vunpack.c.l.b16 %v3223
          %v4780 = vunpack.c.h.b16 %v3223
          %v4781 = vunpack.c.l.b16 %v3224
          %v4782 = vunpack.c.h.b16 %v3224
          %v4783 = vunpack.c.l.b16 %v3225
          %v4784 = vunpack.c.h.b16 %v3225
          %v4785 = vunpack.c.l.b16 %v3226
          %v4786 = vunpack.c.h.b16 %v3226
          %v4787 = vunpack.c.l.b16 %v3227
          %v4788 = vunpack.c.h.b16 %v3227
          %v4789 = vunpack.c.l.b16 %v3228
          %v4790 = vunpack.c.h.b16 %v3228
          %v4791 = vunpack.c.l.b16 %v3229
          %v4792 = vunpack.c.h.b16 %v3229
          %v4793 = vunpack.c.l.b16 %v3230
          %v4794 = vunpack.c.h.b16 %v3230
          %v4795 = vunpack.c.l.b16 %v3231
          %v4796 = vunpack.c.h.b16 %v3231
          %v4797 = vunpack.c.l.b16 %v3232
          %v4798 = vunpack.c.h.b16 %v3232
          %v4799 = vunpack.c.l.b16 %v3233
          %v4800 = vunpack.c.h.b16 %v3233
          %v4801 = vunpack.c.l.b16 %v3234
          %v4802 = vunpack.c.h.b16 %v3234
          %v4803 = vunpack.c.l.b16 %v3235
          %v4804 = vunpack.c.h.b16 %v3235
          %v4805 = vunpack.c.l.b16 %v3236
          %v4806 = vunpack.c.h.b16 %v3236
          %v4807 = vunpack.c.l.b16 %v3237
          %v4808 = vunpack.c.h.b16 %v3237
          %v4809 = vunpack.c.l.b16 %v3238
          %v4810 = vunpack.c.h.b16 %v3238
          %v4811 = vunpack.c.l.b16 %v3239
          %v4812 = vunpack.c.h.b16 %v3239
          %v4813 = vunpack.c.l.b16 %v3240
          %v4814 = vunpack.c.h.b16 %v3240
          %v4815 = vunpack.c.l.b16 %v3241
          %v4816 = vunpack.c.h.b16 %v3241
          %v4817 = vunpack.c.l.b16 %v3242
          %v4818 = vunpack.c.h.b16 %v3242
          %v4819 = vunpack.c.l.b16 %v3243
          %v4820 = vunpack.c.h.b16 %v3243
          %v4821 = vunpack.c.l.b16 %v3244
          %v4822 = vunpack.c.h.b16 %v3244
          %v4823 = vpack.c.b16 %v3807, %v3799
          %v4824 = vpack.c.b16 %v3808, %v3800
          %v4825 = vpack.c.b16 %v3809, %v3801
          %v4826 = vpack.c.b16 %v3810, %v3802
          %v4827 = vpack.c.b16 %v3811, %v3803
          %v4828 = vpack.c.b16 %v3812, %v3804
          %v4829 = vpack.c.b16 %v3813, %v3805
          %v4830 = vpack.c.b16 %v3814, %v3806
          %v4831 = vpack.c.b16 %v3823, %v3815
          %v4832 = vpack.c.b16 %v3824, %v3816
          %v4833 = vpack.c.b16 %v3825, %v3817
          %v4834 = vpack.c.b16 %v3826, %v3818
          %v4835 = vpack.c.b16 %v3827, %v3819
          %v4836 = vpack.c.b16 %v3828, %v3820
          %v4837 = vpack.c.b16 %v3829, %v3821
          %v4838 = vpack.c.b16 %v3830, %v3822
          %v4839 = vpack.c.b16 %v3839, %v3831
          %v4840 = vpack.c.b16 %v3840, %v3832
          %v4841 = vpack.c.b16 %v3841, %v3833
          %v4842 = vpack.c.b16 %v3842, %v3834
          %v4843 = vpack.c.b16 %v3843, %v3835
          %v4844 = vpack.c.b16 %v3844, %v3836
          %v4845 = vpack.c.b16 %v3845, %v3837
          %v4846 = vpack.c.b16 %v3846, %v3838
          %v4847 = vpack.c.b16 %v3855, %v3847
          %v4848 = vpack.c.b16 %v3856, %v3848
          %v4849 = vpack.c.b16 %v3857, %v3849
          %v4850 = vpack.c.b16 %v3858, %v3850
          %v4851 = vpack.c.b16 %v3859, %v3851
          %v4852 = vpack.c.b16 %v3860, %v3852
          %v4853 = vpack.c.b16 %v3861, %v3853
          %v4854 = vpack.c.b16 %v3862, %v3854
          %v4855 = vpack.c.b16 %v3871, %v3863
          %v4856 = vpack.c.b16 %v3872, %v3864
          %v4857 = vpack.c.b16 %v3873, %v3865
          %v4858 = vpack.c.b16 %v3874, %v3866
          %v4859 = vpack.c.b16 %v3875, %v3867
          %v4860 = vpack.c.b16 %v3876, %v3868
          %v4861 = vpack.c.b16 %v3877, %v3869
          %v4862 = vpack.c.b16 %v3878, %v3870
          %v4863 = vpack.c.b16 %v3887, %v3879
          %v4864 = vpack.c.b16 %v3888, %v3880
          %v4865 = vpack.c.b16 %v3889, %v3881
          %v4866 = vpack.c.b16 %v3890, %v3882
          %v4867 = vpack.c.b16 %v3891, %v3883
          %v4868 = vpack.c.b16 %v3892, %v3884
          %v4869 = vpack.c.b16 %v3893, %v3885
          %v4870 = vpack.c.b16 %v3894, %v3886
          %v4871 = vpack.c.b16 %v3903, %v3895
          %v4872 = vpack.c.b16 %v3904, %v3896
          %v4873 = vpack.c.b16 %v3905, %v3897
          %v4874 = vpack.c.b16 %v3906, %v3898
          %v4875 = vpack.c.b16 %v3907, %v3899
          %v4876 = vpack.c.b16 %v3908, %v3900
          %v4877 = vpack.c.b16 %v3909, %v3901
          %v4878 = vpack.c.b16 %v3910, %v3902
          %v4879 = vpack.c.b16 %v3919, %v3911
          %v4880 = vpack.c.b16 %v3920, %v3912
          %v4881 = vpack.c.b16 %v3921, %v3913
          %v4882 = vpack.c.b16 %v3922, %v3914
          %v4883 = vpack.c.b16 %v3923, %v3915
          %v4884 = vpack.c.b16 %v3924, %v3916
          %v4885 = vpack.c.b16 %v3925, %v3917
          %v4886 = vpack.c.b16 %v3926, %v3918
          %v4887 = vpack.c.b16 %v3935, %v3927
          %v4888 = vpack.c.b16 %v3936, %v3928
          %v4889 = vpack.c.b16 %v3937, %v3929
          %v4890 = vpack.c.b16 %v3938, %v3930
          %v4891 = vpack.c.b16 %v3939, %v3931
          %v4892 = vpack.c.b16 %v3940, %v3932
          %v4893 = vpack.c.b16 %v3941, %v3933
          %v4894 = vpack.c.b16 %v3942, %v3934
          %v4895 = vpack.c.b16 %v3951, %v3943
          %v4896 = vpack.c.b16 %v3952, %v3944
          %v4897 = vpack.c.b16 %v3953, %v3945
          %v4898 = vpack.c.b16 %v3954, %v3946
          %v4899 = vpack.c.b16 %v3955, %v3947
          %v4900 = vpack.c.b16 %v3956, %v3948
          %v4901 = vpack.c.b16 %v3957, %v3949
          %v4902 = vpack.c.b16 %v3958, %v3950
          %v4903 = vpack.c.b16 %v3967, %v3959
          %v4904 = vpack.c.b16 %v3968, %v3960
          %v4905 = vpack.c.b16 %v3969, %v3961
          %v4906 = vpack.c.b16 %v3970, %v3962
          %v4907 = vpack.c.b16 %v3971, %v3963
          %v4908 = vpack.c.b16 %v3972, %v3964
          %v4909 = vpack.c.b16 %v3973, %v3965
          %v4910 = vpack.c.b16 %v3974, %v3966
          %v4911 = vpack.c.b16 %v3983, %v3975
          %v4912 = vpack.c.b16 %v3984, %v3976
          %v4913 = vpack.c.b16 %v3985, %v3977
          %v4914 = vpack.c.b16 %v3986, %v3978
          %v4915 = vpack.c.b16 %v3987, %v3979
          %v4916 = vpack.c.b16 %v3988, %v3980
          %v4917 = vpack.c.b16 %v3989, %v3981
          %v4918 = vpack.c.b16 %v3990, %v3982
          %v4919 = vpack.c.b16 %v3999, %v3991
          %v4920 = vpack.c.b16 %v4000, %v3992
          %v4921 = vpack.c.b16 %v4001, %v3993
          %v4922 = vpack.c.b16 %v4002, %v3994
          %v4923 = vpack.c.b16 %v4003, %v3995
          %v4924 = vpack.c.b16 %v4004, %v3996
          %v4925 = vpack.c.b16 %v4005, %v3997
          %v4926 = vpack.c.b16 %v4006, %v3998
          %v4927 = vpack.c.b16 %v4015, %v4007
          %v4928 = vpack.c.b16 %v4016, %v4008
          %v4929 = vpack.c.b16 %v4017, %v4009
          %v4930 = vpack.c.b16 %v4018, %v4010
          %v4931 = vpack.c.b16 %v4019, %v4011
          %v4932 = vpack.c.b16 %v4020, %v4012
          %v4933 = vpack.c.b16 %v4021, %v4013
          %v4934 = vpack.c.b16 %v4022, %v4014
          %v4935 = vpack.c.b16 %v4031, %v4023
          %v4936 = vpack.c.b16 %v4032, %v4024
          %v4937 = vpack.c.b16 %v4033, %v4025
          %v4938 = vpack.c.b16 %v4034, %v4026
          %v4939 = vpack.c.b16 %v4035, %v4027
          %v4940 = vpack.c.b16 %v4036, %v4028
          %v4941 = vpack.c.b16 %v4037, %v4029
          %v4942 = vpack.c.b16 %v4038, %v4030
          %v4943 = vpack.c.b16 %v4047, %v4039
          %v4944 = vpack.c.b16 %v4048, %v4040
          %v4945 = vpack.c.b16 %v4049, %v4041
          %v4946 = vpack.c.b16 %v4050, %v4042
          %v4947 = vpack.c.b16 %v4051, %v4043
          %v4948 = vpack.c.b16 %v4052, %v4044
          %v4949 = vpack.c.b16 %v4053, %v4045
          %v4950 = vpack.c.b16 %v4054, %v4046
          %v4951 = vpack.c.b16 %v4063, %v4055
          %v4952 = vpack.c.b16 %v4064, %v4056
          %v4953 = vpack.c.b16 %v4065, %v4057
          %v4954 = vpack.c.b16 %v4066, %v4058
          %v4955 = vpack.c.b16 %v4067, %v4059
          %v4956 = vpack.c.b16 %v4068, %v4060
          %v4957 = vpack.c.b16 %v4069, %v4061
          %v4958 = vpack.c.b16 %v4070, %v4062
          %v4959 = vpack.c.b16 %v4079, %v4071
          %v4960 = vpack.c.b16 %v4080, %v4072
          %v4961 = vpack.c.b16 %v4081, %v4073
          %v4962 = vpack.c.b16 %v4082, %v4074
          %v4963 = vpack.c.b16 %v4083, %v4075
          %v4964 = vpack.c.b16 %v4084, %v4076
          %v4965 = vpack.c.b16 %v4085, %v4077
          %v4966 = vpack.c.b16 %v4086, %v4078
          %v4967 = vpack.c.b16 %v4095, %v4087
          %v4968 = vpack.c.b16 %v4096, %v4088
          %v4969 = vpack.c.b16 %v4097, %v4089
          %v4970 = vpack.c.b16 %v4098, %v4090
          %v4971 = vpack.c.b16 %v4099, %v4091
          %v4972 = vpack.c.b16 %v4100, %v4092
          %v4973 = vpack.c.b16 %v4101, %v4093
          %v4974 = vpack.c.b16 %v4102, %v4094
          %v4975 = vpack.c.b16 %v4111, %v4103
          %v4976 = vpack.c.b16 %v4112, %v4104
          %v4977 = vpack.c.b16 %v4113, %v4105
          %v4978 = vpack.c.b16 %v4114, %v4106
          %v4979 = vpack.c.b16 %v4115, %v4107
          %v4980 = vpack.c.b16 %v4116, %v4108
          %v4981 = vpack.c.b16 %v4117, %v4109
          %v4982 = vpack.c.b16 %v4118, %v4110
          %v4983 = vpack.c.b16 %v4127, %v4119
          %v4984 = vpack.c.b16 %v4128, %v4120
          %v4985 = vpack.c.b16 %v4129, %v4121
          %v4986 = vpack.c.b16 %v4130, %v4122
          %v4987 = vpack.c.b16 %v4131, %v4123
          %v4988 = vpack.c.b16 %v4132, %v4124
          %v4989 = vpack.c.b16 %v4133, %v4125
          %v4990 = vpack.c.b16 %v4134, %v4126
          %v4991 = vpack.c.b16 %v4143, %v4135
          %v4992 = vpack.c.b16 %v4144, %v4136
          %v4993 = vpack.c.b16 %v4145, %v4137
          %v4994 = vpack.c.b16 %v4146, %v4138
          %v4995 = vpack.c.b16 %v4147, %v4139
          %v4996 = vpack.c.b16 %v4148, %v4140
          %v4997 = vpack.c.b16 %v4149, %v4141
          %v4998 = vpack.c.b16 %v4150, %v4142
          %v4999 = vpack.c.b16 %v4159, %v4151
          %v5000 = vpack.c.b16 %v4160, %v4152
          %v5001 = vpack.c.b16 %v4161, %v4153
          %v5002 = vpack.c.b16 %v4162, %v4154
          %v5003 = vpack.c.b16 %v4163, %v4155
          %v5004 = vpack.c.b16 %v4164, %v4156
          %v5005 = vpack.c.b16 %v4165, %v4157
          %v5006 = vpack.c.b16 %v4166, %v4158
          %v5007 = vpack.c.b16 %v4175, %v4167
          %v5008 = vpack.c.b16 %v4176, %v4168
          %v5009 = vpack.c.b16 %v4177, %v4169
          %v5010 = vpack.c.b16 %v4178, %v4170
          %v5011 = vpack.c.b16 %v4179, %v4171
          %v5012 = vpack.c.b16 %v4180, %v4172
          %v5013 = vpack.c.b16 %v4181, %v4173
          %v5014 = vpack.c.b16 %v4182, %v4174
          %v5015 = vpack.c.b16 %v4191, %v4183
          %v5016 = vpack.c.b16 %v4192, %v4184
          %v5017 = vpack.c.b16 %v4193, %v4185
          %v5018 = vpack.c.b16 %v4194, %v4186
          %v5019 = vpack.c.b16 %v4195, %v4187
          %v5020 = vpack.c.b16 %v4196, %v4188
          %v5021 = vpack.c.b16 %v4197, %v4189
          %v5022 = vpack.c.b16 %v4198, %v4190
          %v5023 = vpack.c.b16 %v4207, %v4199
          %v5024 = vpack.c.b16 %v4208, %v4200
          %v5025 = vpack.c.b16 %v4209, %v4201
          %v5026 = vpack.c.b16 %v4210, %v4202
          %v5027 = vpack.c.b16 %v4211, %v4203
          %v5028 = vpack.c.b16 %v4212, %v4204
          %v5029 = vpack.c.b16 %v4213, %v4205
          %v5030 = vpack.c.b16 %v4214, %v4206
          %v5031 = vpack.c.b16 %v4223, %v4215
          %v5032 = vpack.c.b16 %v4224, %v4216
          %v5033 = vpack.c.b16 %v4225, %v4217
          %v5034 = vpack.c.b16 %v4226, %v4218
          %v5035 = vpack.c.b16 %v4227, %v4219
          %v5036 = vpack.c.b16 %v4228, %v4220
          %v5037 = vpack.c.b16 %v4229, %v4221
          %v5038 = vpack.c.b16 %v4230, %v4222
          %v5039 = vpack.c.b16 %v4239, %v4231
          %v5040 = vpack.c.b16 %v4240, %v4232
          %v5041 = vpack.c.b16 %v4241, %v4233
          %v5042 = vpack.c.b16 %v4242, %v4234
          %v5043 = vpack.c.b16 %v4243, %v4235
          %v5044 = vpack.c.b16 %v4244, %v4236
          %v5045 = vpack.c.b16 %v4245, %v4237
          %v5046 = vpack.c.b16 %v4246, %v4238
          %v5047 = vpack.c.b16 %v4255, %v4247
          %v5048 = vpack.c.b16 %v4256, %v4248
          %v5049 = vpack.c.b16 %v4257, %v4249
          %v5050 = vpack.c.b16 %v4258, %v4250
          %v5051 = vpack.c.b16 %v4259, %v4251
          %v5052 = vpack.c.b16 %v4260, %v4252
          %v5053 = vpack.c.b16 %v4261, %v4253
          %v5054 = vpack.c.b16 %v4262, %v4254
          %v5055 = vpack.c.b16 %v4271, %v4263
          %v5056 = vpack.c.b16 %v4272, %v4264
          %v5057 = vpack.c.b16 %v4273, %v4265
          %v5058 = vpack.c.b16 %v4274, %v4266
          %v5059 = vpack.c.b16 %v4275, %v4267
          %v5060 = vpack.c.b16 %v4276, %v4268
          %v5061 = vpack.c.b16 %v4277, %v4269
          %v5062 = vpack.c.b16 %v4278, %v4270
          %v5063 = vpack.c.b16 %v4287, %v4279
          %v5064 = vpack.c.b16 %v4288, %v4280
          %v5065 = vpack.c.b16 %v4289, %v4281
          %v5066 = vpack.c.b16 %v4290, %v4282
          %v5067 = vpack.c.b16 %v4291, %v4283
          %v5068 = vpack.c.b16 %v4292, %v4284
          %v5069 = vpack.c.b16 %v4293, %v4285
          %v5070 = vpack.c.b16 %v4294, %v4286
          %v5071 = vpack.c.b16 %v4303, %v4295
          %v5072 = vpack.c.b16 %v4304, %v4296
          %v5073 = vpack.c.b16 %v4305, %v4297
          %v5074 = vpack.c.b16 %v4306, %v4298
          %v5075 = vpack.c.b16 %v4307, %v4299
          %v5076 = vpack.c.b16 %v4308, %v4300
          %v5077 = vpack.c.b16 %v4309, %v4301
          %v5078 = vpack.c.b16 %v4310, %v4302
          %v5079 = vpack.c.b16 %v4319, %v4311
          %v5080 = vpack.c.b16 %v4320, %v4312
          %v5081 = vpack.c.b16 %v4321, %v4313
          %v5082 = vpack.c.b16 %v4322, %v4314
          %v5083 = vpack.c.b16 %v4323, %v4315
          %v5084 = vpack.c.b16 %v4324, %v4316
          %v5085 = vpack.c.b16 %v4325, %v4317
          %v5086 = vpack.c.b16 %v4326, %v4318
          %v5087 = vpack.c.b16 %v4335, %v4327
          %v5088 = vpack.c.b16 %v4336, %v4328
          %v5089 = vpack.c.b16 %v4337, %v4329
          %v5090 = vpack.c.b16 %v4338, %v4330
          %v5091 = vpack.c.b16 %v4339, %v4331
          %v5092 = vpack.c.b16 %v4340, %v4332
          %v5093 = vpack.c.b16 %v4341, %v4333
          %v5094 = vpack.c.b16 %v4342, %v4334
          %v5095 = vpack.c.b16 %v4351, %v4343
          %v5096 = vpack.c.b16 %v4352, %v4344
          %v5097 = vpack.c.b16 %v4353, %v4345
          %v5098 = vpack.c.b16 %v4354, %v4346
          %v5099 = vpack.c.b16 %v4355, %v4347
          %v5100 = vpack.c.b16 %v4356, %v4348
          %v5101 = vpack.c.b16 %v4357, %v4349
          %v5102 = vpack.c.b16 %v4358, %v4350
          %v5103 = vpack.c.b16 %v4367, %v4359
          %v5104 = vpack.c.b16 %v4368, %v4360
          %v5105 = vpack.c.b16 %v4369, %v4361
          %v5106 = vpack.c.b16 %v4370, %v4362
          %v5107 = vpack.c.b16 %v4371, %v4363
          %v5108 = vpack.c.b16 %v4372, %v4364
          %v5109 = vpack.c.b16 %v4373, %v4365
          %v5110 = vpack.c.b16 %v4374, %v4366
          %v5111 = vpack.c.b16 %v4383, %v4375
          %v5112 = vpack.c.b16 %v4384, %v4376
          %v5113 = vpack.c.b16 %v4385, %v4377
          %v5114 = vpack.c.b16 %v4386, %v4378
          %v5115 = vpack.c.b16 %v4387, %v4379
          %v5116 = vpack.c.b16 %v4388, %v4380
          %v5117 = vpack.c.b16 %v4389, %v4381
          %v5118 = vpack.c.b16 %v4390, %v4382
          %v5119 = vpack.c.b16 %v4399, %v4391
          %v5120 = vpack.c.b16 %v4400, %v4392
          %v5121 = vpack.c.b16 %v4401, %v4393
          %v5122 = vpack.c.b16 %v4402, %v4394
          %v5123 = vpack.c.b16 %v4403, %v4395
          %v5124 = vpack.c.b16 %v4404, %v4396
          %v5125 = vpack.c.b16 %v4405, %v4397
          %v5126 = vpack.c.b16 %v4406, %v4398
          %v5127 = vpack.c.b16 %v4415, %v4407
          %v5128 = vpack.c.b16 %v4416, %v4408
          %v5129 = vpack.c.b16 %v4417, %v4409
          %v5130 = vpack.c.b16 %v4418, %v4410
          %v5131 = vpack.c.b16 %v4419, %v4411
          %v5132 = vpack.c.b16 %v4420, %v4412
          %v5133 = vpack.c.b16 %v4421, %v4413
          %v5134 = vpack.c.b16 %v4422, %v4414
          %v5135 = vpack.c.b16 %v4431, %v4423
          %v5136 = vpack.c.b16 %v4432, %v4424
          %v5137 = vpack.c.b16 %v4433, %v4425
          %v5138 = vpack.c.b16 %v4434, %v4426
          %v5139 = vpack.c.b16 %v4435, %v4427
          %v5140 = vpack.c.b16 %v4436, %v4428
          %v5141 = vpack.c.b16 %v4437, %v4429
          %v5142 = vpack.c.b16 %v4438, %v4430
          %v5143 = vpack.c.b16 %v4447, %v4439
          %v5144 = vpack.c.b16 %v4448, %v4440
          %v5145 = vpack.c.b16 %v4449, %v4441
          %v5146 = vpack.c.b16 %v4450, %v4442
          %v5147 = vpack.c.b16 %v4451, %v4443
          %v5148 = vpack.c.b16 %v4452, %v4444
          %v5149 = vpack.c.b16 %v4453, %v4445
          %v5150 = vpack.c.b16 %v4454, %v4446
          %v5151 = vpack.c.b16 %v4463, %v4455
          %v5152 = vpack.c.b16 %v4464, %v4456
          %v5153 = vpack.c.b16 %v4465, %v4457
          %v5154 = vpack.c.b16 %v4466, %v4458
          %v5155 = vpack.c.b16 %v4467, %v4459
          %v5156 = vpack.c.b16 %v4468, %v4460
          %v5157 = vpack.c.b16 %v4469, %v4461
          %v5158 = vpack.c.b16 %v4470, %v4462
          %v5159 = vpack.c.b16 %v4479, %v4471
          %v5160 = vpack.c.b16 %v4480, %v4472
          %v5161 = vpack.c.b16 %v4481, %v4473
          %v5162 = vpack.c.b16 %v4482, %v4474
          %v5163 = vpack.c.b16 %v4483, %v4475
          %v5164 = vpack.c.b16 %v4484, %v4476
          %v5165 = vpack.c.b16 %v4485, %v4477
          %v5166 = vpack.c.b16 %v4486, %v4478
          %v5167 = vpack.c.b16 %v4495, %v4487
          %v5168 = vpack.c.b16 %v4496, %v4488
          %v5169 = vpack.c.b16 %v4497, %v4489
          %v5170 = vpack.c.b16 %v4498, %v4490
          %v5171 = vpack.c.b16 %v4499, %v4491
          %v5172 = vpack.c.b16 %v4500, %v4492
          %v5173 = vpack.c.b16 %v4501, %v4493
          %v5174 = vpack.c.b16 %v4502, %v4494
          %v5175 = vpack.c.b16 %v4511, %v4503
          %v5176 = vpack.c.b16 %v4512, %v4504
          %v5177 = vpack.c.b16 %v4513, %v4505
          %v5178 = vpack.c.b16 %v4514, %v4506
          %v5179 = vpack.c.b16 %v4515, %v4507
          %v5180 = vpack.c.b16 %v4516, %v4508
          %v5181 = vpack.c.b16 %v4517, %v4509
          %v5182 = vpack.c.b16 %v4518, %v4510
          %v5183 = vpack.c.b16 %v4527, %v4519
          %v5184 = vpack.c.b16 %v4528, %v4520
          %v5185 = vpack.c.b16 %v4529, %v4521
          %v5186 = vpack.c.b16 %v4530, %v4522
          %v5187 = vpack.c.b16 %v4531, %v4523
          %v5188 = vpack.c.b16 %v4532, %v4524
          %v5189 = vpack.c.b16 %v4533, %v4525
          %v5190 = vpack.c.b16 %v4534, %v4526
          %v5191 = vpack.c.b16 %v4543, %v4535
          %v5192 = vpack.c.b16 %v4544, %v4536
          %v5193 = vpack.c.b16 %v4545, %v4537
          %v5194 = vpack.c.b16 %v4546, %v4538
          %v5195 = vpack.c.b16 %v4547, %v4539
          %v5196 = vpack.c.b16 %v4548, %v4540
          %v5197 = vpack.c.b16 %v4549, %v4541
          %v5198 = vpack.c.b16 %v4550, %v4542
          %v5199 = vpack.c.b16 %v4559, %v4551
          %v5200 = vpack.c.b16 %v4560, %v4552
          %v5201 = vpack.c.b16 %v4561, %v4553
          %v5202 = vpack.c.b16 %v4562, %v4554
          %v5203 = vpack.c.b16 %v4563, %v4555
          %v5204 = vpack.c.b16 %v4564, %v4556
          %v5205 = vpack.c.b16 %v4565, %v4557
          %v5206 = vpack.c.b16 %v4566, %v4558
          %v5207 = vpack.c.b16 %v4575, %v4567
          %v5208 = vpack.c.b16 %v4576, %v4568
          %v5209 = vpack.c.b16 %v4577, %v4569
          %v5210 = vpack.c.b16 %v4578, %v4570
          %v5211 = vpack.c.b16 %v4579, %v4571
          %v5212 = vpack.c.b16 %v4580, %v4572
          %v5213 = vpack.c.b16 %v4581, %v4573
          %v5214 = vpack.c.b16 %v4582, %v4574
          %v5215 = vpack.c.b16 %v4591, %v4583
          %v5216 = vpack.c.b16 %v4592, %v4584
          %v5217 = vpack.c.b16 %v4593, %v4585
          %v5218 = vpack.c.b16 %v4594, %v4586
          %v5219 = vpack.c.b16 %v4595, %v4587
          %v5220 = vpack.c.b16 %v4596, %v4588
          %v5221 = vpack.c.b16 %v4597, %v4589
          %v5222 = vpack.c.b16 %v4598, %v4590
          %v5223 = vpack.c.b16 %v4607, %v4599
          %v5224 = vpack.c.b16 %v4608, %v4600
          %v5225 = vpack.c.b16 %v4609, %v4601
          %v5226 = vpack.c.b16 %v4610, %v4602
          %v5227 = vpack.c.b16 %v4611, %v4603
          %v5228 = vpack.c.b16 %v4612, %v4604
          %v5229 = vpack.c.b16 %v4613, %v4605
          %v5230 = vpack.c.b16 %v4614, %v4606
          %v5231 = vpack.c.b16 %v4623, %v4615
          %v5232 = vpack.c.b16 %v4624, %v4616
          %v5233 = vpack.c.b16 %v4625, %v4617
          %v5234 = vpack.c.b16 %v4626, %v4618
          %v5235 = vpack.c.b16 %v4627, %v4619
          %v5236 = vpack.c.b16 %v4628, %v4620
          %v5237 = vpack.c.b16 %v4629, %v4621
          %v5238 = vpack.c.b16 %v4630, %v4622
          %v5239 = vpack.c.b16 %v4639, %v4631
          %v5240 = vpack.c.b16 %v4640, %v4632
          %v5241 = vpack.c.b16 %v4641, %v4633
          %v5242 = vpack.c.b16 %v4642, %v4634
          %v5243 = vpack.c.b16 %v4643, %v4635
          %v5244 = vpack.c.b16 %v4644, %v4636
          %v5245 = vpack.c.b16 %v4645, %v4637
          %v5246 = vpack.c.b16 %v4646, %v4638
          %v5247 = vpack.c.b16 %v4655, %v4647
          %v5248 = vpack.c.b16 %v4656, %v4648
          %v5249 = vpack.c.b16 %v4657, %v4649
          %v5250 = vpack.c.b16 %v4658, %v4650
          %v5251 = vpack.c.b16 %v4659, %v4651
          %v5252 = vpack.c.b16 %v4660, %v4652
          %v5253 = vpack.c.b16 %v4661, %v4653
          %v5254 = vpack.c.b16 %v4662, %v4654
          %v5255 = vpack.c.b16 %v4671, %v4663
          %v5256 = vpack.c.b16 %v4672, %v4664
          %v5257 = vpack.c.b16 %v4673, %v4665
          %v5258 = vpack.c.b16 %v4674, %v4666
          %v5259 = vpack.c.b16 %v4675, %v4667
          %v5260 = vpack.c.b16 %v4676, %v4668
          %v5261 = vpack.c.b16 %v4677, %v4669
          %v5262 = vpack.c.b16 %v4678, %v4670
          %v5263 = vpack.c.b16 %v4687, %v4679
          %v5264 = vpack.c.b16 %v4688, %v4680
          %v5265 = vpack.c.b16 %v4689, %v4681
          %v5266 = vpack.c.b16 %v4690, %v4682
          %v5267 = vpack.c.b16 %v4691, %v4683
          %v5268 = vpack.c.b16 %v4692, %v4684
          %v5269 = vpack.c.b16 %v4693, %v4685
          %v5270 = vpack.c.b16 %v4694, %v4686
          %v5271 = vpack.c.b16 %v4703, %v4695
          %v5272 = vpack.c.b16 %v4704, %v4696
          %v5273 = vpack.c.b16 %v4705, %v4697
          %v5274 = vpack.c.b16 %v4706, %v4698
          %v5275 = vpack.c.b16 %v4707, %v4699
          %v5276 = vpack.c.b16 %v4708, %v4700
          %v5277 = vpack.c.b16 %v4709, %v4701
          %v5278 = vpack.c.b16 %v4710, %v4702
          %v5279 = vpack.c.b16 %v4719, %v4711
          %v5280 = vpack.c.b16 %v4720, %v4712
          %v5281 = vpack.c.b16 %v4721, %v4713
          %v5282 = vpack.c.b16 %v4722, %v4714
          %v5283 = vpack.c.b16 %v4723, %v4715
          %v5284 = vpack.c.b16 %v4724, %v4716
          %v5285 = vpack.c.b16 %v4725, %v4717
          %v5286 = vpack.c.b16 %v4726, %v4718
          %v5287 = vpack.c.b16 %v4735, %v4727
          %v5288 = vpack.c.b16 %v4736, %v4728
          %v5289 = vpack.c.b16 %v4737, %v4729
          %v5290 = vpack.c.b16 %v4738, %v4730
          %v5291 = vpack.c.b16 %v4739, %v4731
          %v5292 = vpack.c.b16 %v4740, %v4732
          %v5293 = vpack.c.b16 %v4741, %v4733
          %v5294 = vpack.c.b16 %v4742, %v4734
          %v5295 = vpack.c.b16 %v4751, %v4743
          %v5296 = vpack.c.b16 %v4752, %v4744
          %v5297 = vpack.c.b16 %v4753, %v4745
          %v5298 = vpack.c.b16 %v4754, %v4746
          %v5299 = vpack.c.b16 %v4755, %v4747
          %v5300 = vpack.c.b16 %v4756, %v4748
          %v5301 = vpack.c.b16 %v4757, %v4749
          %v5302 = vpack.c.b16 %v4758, %v4750
          %v5303 = vpack.c.b16 %v4767, %v4759
          %v5304 = vpack.c.b16 %v4768, %v4760
          %v5305 = vpack.c.b16 %v4769, %v4761
          %v5306 = vpack.c.b16 %v4770, %v4762
          %v5307 = vpack.c.b16 %v4771, %v4763
          %v5308 = vpack.c.b16 %v4772, %v4764
          %v5309 = vpack.c.b16 %v4773, %v4765
          %v5310 = vpack.c.b16 %v4774, %v4766
          %v5311 = vpack.c.b16 %v4783, %v4775
          %v5312 = vpack.c.b16 %v4784, %v4776
          %v5313 = vpack.c.b16 %v4785, %v4777
          %v5314 = vpack.c.b16 %v4786, %v4778
          %v5315 = vpack.c.b16 %v4787, %v4779
          %v5316 = vpack.c.b16 %v4788, %v4780
          %v5317 = vpack.c.b16 %v4789, %v4781
          %v5318 = vpack.c.b16 %v4790, %v4782
          %v5319 = vpack.c.b16 %v4799, %v4791
          %v5320 = vpack.c.b16 %v4800, %v4792
          %v5321 = vpack.c.b16 %v4801, %v4793
          %v5322 = vpack.c.b16 %v4802, %v4794
          %v5323 = vpack.c.b16 %v4803, %v4795
          %v5324 = vpack.c.b16 %v4804, %v4796
          %v5325 = vpack.c.b16 %v4805, %v4797
          %v5326 = vpack.c.b16 %v4806, %v4798
          %v5327 = vpack.c.b16 %v4815, %v4807
          %v5328 = vpack.c.b16 %v4816, %v4808
          %v5329 = vpack.c.b16 %v4817, %v4809
          %v5330 = vpack.c.b16 %v4818, %v4810
          %v5331 = vpack.c.b16 %v4819, %v4811
          %v5332 = vpack.c.b16 %v4820, %v4812
          %v5333 = vpack.c.b16 %v4821, %v4813
          %v5334 = vpack.c.b16 %v4822, %v4814
          %5847 = vmatprep.subr.bf16.mxu0 %v4880
          %5848 = vmatpush1.bf16.msra.mxu0 %v4879
          %5849 = vmatprep.subr.bf16.mxu0 %v4872
          %5850 = vmatpush1.bf16.msra.mxu0 %v4871
          %5851 = vmatprep.subr.bf16.mxu0 %v4864
          %5852 = vmatpush1.bf16.msra.mxu0 %v4863
          %5853 = vmatprep.subr.bf16.mxu0 %v4856
          %5854 = vmatpush1.bf16.msra.mxu0 %v4855
          %5855 = vmatprep.subr.bf16.mxu0 %v4848
          %5856 = vmatpush1.bf16.msra.mxu0 %v4847
          %5857 = vmatprep.subr.bf16.mxu0 %v4840
          %5858 = vmatpush1.bf16.msra.mxu0 %v4839
          %5859 = vmatprep.subr.bf16.mxu0 %v4832
          %5860 = vmatpush1.bf16.msra.mxu0 %v4831
          %5861 = vmatprep.subr.bf16.mxu0 %v4824
          %5862 = vmatpush1.bf16.msra.mxu0 %v4823
          %5863 = vmatprep.subr.bf16.mxu0 %v4944
          %5864 = vmatpush2.bf16.msra.mxu0 %v4943
          %5865 = vmatprep.subr.bf16.mxu0 %v4936
          %5866 = vmatpush2.bf16.msra.mxu0 %v4935
          %5867 = vmatprep.subr.bf16.mxu0 %v4928
          %5868 = vmatpush2.bf16.msra.mxu0 %v4927
          %5869 = vmatprep.subr.bf16.mxu0 %v4920
          %5870 = vmatpush2.bf16.msra.mxu0 %v4919
          %5871 = vmatprep.subr.bf16.mxu0 %v4912
          %5872 = vmatpush2.bf16.msra.mxu0 %v4911
          %5873 = vmatprep.subr.bf16.mxu0 %v4904
          %5874 = vmatpush2.bf16.msra.mxu0 %v4903
          %5875 = vmatprep.subr.bf16.mxu0 %v4896
          %5876 = vmatpush2.bf16.msra.mxu0 %v4895
          %5877 = vmatprep.subr.bf16.mxu0 %v4888
          %5878 = vmatpush2.bf16.msra.mxu0 %v4887
          %5879 = vmatprep.mubr.bf16.mxu0 %v2726
          %5880 = vmatmul.mubr.bf16.gmra.mxu0 %v2725
          %v5881 = vpop.f32.mrf.mxu0
          %v5882 = vadd.f32 %v3250, %v5881
          %v5883 = vpop.f32.mrf.mxu0
          %v5884 = vadd.f32 %v3254, %v5883
          %v5885 = vpop.f32.mrf.mxu0
          %v5886 = vadd.f32 %v3250, %v5885
          %v5887 = vpop.f32.mrf.mxu0
          %v5888 = vadd.f32 %v3254, %v5887
          %5889 = vdwg.mxu0
          %5890 = vmatprep.subr.bf16.mxu0 %v5008
          %5891 = vmatpush1.bf16.msra.mxu0 %v5007
          %5892 = vmatprep.subr.bf16.mxu0 %v5000
          %5893 = vmatpush1.bf16.msra.mxu0 %v4999
          %5894 = vmatprep.subr.bf16.mxu0 %v4992
          %5895 = vmatpush1.bf16.msra.mxu0 %v4991
          %5896 = vmatprep.subr.bf16.mxu0 %v4984
          %5897 = vmatpush1.bf16.msra.mxu0 %v4983
          %5898 = vmatprep.subr.bf16.mxu0 %v4976
          %5899 = vmatpush1.bf16.msra.mxu0 %v4975
          %5900 = vmatprep.subr.bf16.mxu0 %v4968
          %5901 = vmatpush1.bf16.msra.mxu0 %v4967
          %5902 = vmatprep.subr.bf16.mxu0 %v4960
          %5903 = vmatpush1.bf16.msra.mxu0 %v4959
          %5904 = vmatprep.subr.bf16.mxu0 %v4952
          %5905 = vmatpush1.bf16.msra.mxu0 %v4951
          %5906 = vmatprep.subr.bf16.mxu0 %v5072
          %5907 = vmatpush2.bf16.msra.mxu0 %v5071
          %5908 = vmatprep.subr.bf16.mxu0 %v5064
          %5909 = vmatpush2.bf16.msra.mxu0 %v5063
          %5910 = vmatprep.subr.bf16.mxu0 %v5056
          %5911 = vmatpush2.bf16.msra.mxu0 %v5055
          %5912 = vmatprep.subr.bf16.mxu0 %v5048
          %5913 = vmatpush2.bf16.msra.mxu0 %v5047
          %5914 = vmatprep.subr.bf16.mxu0 %v5040
          %5915 = vmatpush2.bf16.msra.mxu0 %v5039
          %5916 = vmatprep.subr.bf16.mxu0 %v5032
          %5917 = vmatpush2.bf16.msra.mxu0 %v5031
          %5918 = vmatprep.subr.bf16.mxu0 %v5024
          %5919 = vmatpush2.bf16.msra.mxu0 %v5023
          %5920 = vmatprep.subr.bf16.mxu0 %v5016
          %5921 = vmatpush2.bf16.msra.mxu0 %v5015
          %5922 = vmatprep.mubr.bf16.mxu0 %v2728
          %5923 = vmatmul.mubr.bf16.gmra.mxu0 %v2727
          %v5924 = vpop.f32.mrf.mxu0
          %v5925 = vadd.f32 %v5882, %v5924
          %v5926 = vpop.f32.mrf.mxu0
          %v5927 = vadd.f32 %v5884, %v5926
          %v5928 = vpop.f32.mrf.mxu0
          %v5929 = vadd.f32 %v5886, %v5928
          %v5930 = vpop.f32.mrf.mxu0
          %v5931 = vadd.f32 %v5888, %v5930
          %5932 = vdwg.mxu0
          %5933 = vmatprep.subr.bf16.mxu0 %v5136
          %5934 = vmatpush1.bf16.msra.mxu0 %v5135
          %5935 = vmatprep.subr.bf16.mxu0 %v5128
          %5936 = vmatpush1.bf16.msra.mxu0 %v5127
          %5937 = vmatprep.subr.bf16.mxu0 %v5120
          %5938 = vmatpush1.bf16.msra.mxu0 %v5119
          %5939 = vmatprep.subr.bf16.mxu0 %v5112
          %5940 = vmatpush1.bf16.msra.mxu0 %v5111
          %5941 = vmatprep.subr.bf16.mxu0 %v5104
          %5942 = vmatpush1.bf16.msra.mxu0 %v5103
          %5943 = vmatprep.subr.bf16.mxu0 %v5096
          %5944 = vmatpush1.bf16.msra.mxu0 %v5095
          %5945 = vmatprep.subr.bf16.mxu0 %v5088
          %5946 = vmatpush1.bf16.msra.mxu0 %v5087
          %5947 = vmatprep.subr.bf16.mxu0 %v5080
          %5948 = vmatpush1.bf16.msra.mxu0 %v5079
          %5949 = vmatprep.subr.bf16.mxu0 %v5200
          %5950 = vmatpush2.bf16.msra.mxu0 %v5199
          %5951 = vmatprep.subr.bf16.mxu0 %v5192
          %5952 = vmatpush2.bf16.msra.mxu0 %v5191
          %5953 = vmatprep.subr.bf16.mxu0 %v5184
          %5954 = vmatpush2.bf16.msra.mxu0 %v5183
          %5955 = vmatprep.subr.bf16.mxu0 %v5176
          %5956 = vmatpush2.bf16.msra.mxu0 %v5175
          %5957 = vmatprep.subr.bf16.mxu0 %v5168
          %5958 = vmatpush2.bf16.msra.mxu0 %v5167
          %5959 = vmatprep.subr.bf16.mxu0 %v5160
          %5960 = vmatpush2.bf16.msra.mxu0 %v5159
          %5961 = vmatprep.subr.bf16.mxu0 %v5152
          %5962 = vmatpush2.bf16.msra.mxu0 %v5151
          %5963 = vmatprep.subr.bf16.mxu0 %v5144
          %5964 = vmatpush2.bf16.msra.mxu0 %v5143
          %5965 = vmatprep.mubr.bf16.mxu0 %v2730
          %5966 = vmatmul.mubr.bf16.gmra.mxu0 %v2729
          %v5967 = vpop.f32.mrf.mxu0
          %v5968 = vadd.f32 %v5925, %v5967
          %v5969 = vpop.f32.mrf.mxu0
          %v5970 = vadd.f32 %v5927, %v5969
          %v5971 = vpop.f32.mrf.mxu0
          %v5972 = vadd.f32 %v5929, %v5971
          %v5973 = vpop.f32.mrf.mxu0
          %v5974 = vadd.f32 %v5931, %v5973
          %5975 = vdwg.mxu0
          %5976 = vmatprep.subr.bf16.mxu0 %v5264
          %5977 = vmatpush1.bf16.msra.mxu0 %v5263
          %5978 = vmatprep.subr.bf16.mxu0 %v5256
          %5979 = vmatpush1.bf16.msra.mxu0 %v5255
          %5980 = vmatprep.subr.bf16.mxu0 %v5248
          %5981 = vmatpush1.bf16.msra.mxu0 %v5247
          %5982 = vmatprep.subr.bf16.mxu0 %v5240
          %5983 = vmatpush1.bf16.msra.mxu0 %v5239
          %5984 = vmatprep.subr.bf16.mxu0 %v5232
          %5985 = vmatpush1.bf16.msra.mxu0 %v5231
          %5986 = vmatprep.subr.bf16.mxu0 %v5224
          %5987 = vmatpush1.bf16.msra.mxu0 %v5223
          %5988 = vmatprep.subr.bf16.mxu0 %v5216
          %5989 = vmatpush1.bf16.msra.mxu0 %v5215
          %5990 = vmatprep.subr.bf16.mxu0 %v5208
          %5991 = vmatpush1.bf16.msra.mxu0 %v5207
          %5992 = vmatprep.subr.bf16.mxu0 %v5328
          %5993 = vmatpush2.bf16.msra.mxu0 %v5327
          %5994 = vmatprep.subr.bf16.mxu0 %v5320
          %5995 = vmatpush2.bf16.msra.mxu0 %v5319
          %5996 = vmatprep.subr.bf16.mxu0 %v5312
          %5997 = vmatpush2.bf16.msra.mxu0 %v5311
          %5998 = vmatprep.subr.bf16.mxu0 %v5304
          %5999 = vmatpush2.bf16.msra.mxu0 %v5303
          %6000 = vmatprep.subr.bf16.mxu0 %v5296
          %6001 = vmatpush2.bf16.msra.mxu0 %v5295
          %6002 = vmatprep.subr.bf16.mxu0 %v5288
          %6003 = vmatpush2.bf16.msra.mxu0 %v5287
          %6004 = vmatprep.subr.bf16.mxu0 %v5280
          %6005 = vmatpush2.bf16.msra.mxu0 %v5279
          %6006 = vmatprep.subr.bf16.mxu0 %v5272
          %6007 = vmatpush2.bf16.msra.mxu0 %v5271
          %6008 = vmatprep.mubr.bf16.mxu0 %v2732
          %6009 = vmatmul.mubr.bf16.gmra.mxu0 %v2731
          %v6010 = vpop.f32.mrf.mxu0
          %v6011 = vadd.f32 %v5968, %v6010
          %v6012 = vpop.f32.mrf.mxu0
          %v6013 = vadd.f32 %v5970, %v6012
          %v6014 = vpop.f32.mrf.mxu0
          %v6015 = vadd.f32 %v5972, %v6014
          %v6016 = vpop.f32.mrf.mxu0
          %v6017 = vadd.f32 %v5974, %v6016
          %6018 = vdwg.mxu0
          %6019 = vmatprep.subr.bf16.mxu0 %v4882
          %6020 = vmatpush1.bf16.msra.mxu0 %v4881
          %6021 = vmatprep.subr.bf16.mxu0 %v4874
          %6022 = vmatpush1.bf16.msra.mxu0 %v4873
          %6023 = vmatprep.subr.bf16.mxu0 %v4866
          %6024 = vmatpush1.bf16.msra.mxu0 %v4865
          %6025 = vmatprep.subr.bf16.mxu0 %v4858
          %6026 = vmatpush1.bf16.msra.mxu0 %v4857
          %6027 = vmatprep.subr.bf16.mxu0 %v4850
          %6028 = vmatpush1.bf16.msra.mxu0 %v4849
          %6029 = vmatprep.subr.bf16.mxu0 %v4842
          %6030 = vmatpush1.bf16.msra.mxu0 %v4841
          %6031 = vmatprep.subr.bf16.mxu0 %v4834
          %6032 = vmatpush1.bf16.msra.mxu0 %v4833
          %6033 = vmatprep.subr.bf16.mxu0 %v4826
          %6034 = vmatpush1.bf16.msra.mxu0 %v4825
          %6035 = vmatprep.subr.bf16.mxu0 %v4946
          %6036 = vmatpush2.bf16.msra.mxu0 %v4945
          %6037 = vmatprep.subr.bf16.mxu0 %v4938
          %6038 = vmatpush2.bf16.msra.mxu0 %v4937
          %6039 = vmatprep.subr.bf16.mxu0 %v4930
          %6040 = vmatpush2.bf16.msra.mxu0 %v4929
          %6041 = vmatprep.subr.bf16.mxu0 %v4922
          %6042 = vmatpush2.bf16.msra.mxu0 %v4921
          %6043 = vmatprep.subr.bf16.mxu0 %v4914
          %6044 = vmatpush2.bf16.msra.mxu0 %v4913
          %6045 = vmatprep.subr.bf16.mxu0 %v4906
          %6046 = vmatpush2.bf16.msra.mxu0 %v4905
          %6047 = vmatprep.subr.bf16.mxu0 %v4898
          %6048 = vmatpush2.bf16.msra.mxu0 %v4897
          %6049 = vmatprep.subr.bf16.mxu0 %v4890
          %6050 = vmatpush2.bf16.msra.mxu0 %v4889
          %6051 = vmatprep.mubr.bf16.mxu0 %v2726
          %6052 = vmatmul.mubr.bf16.gmra.mxu0 %v2725
          %v6053 = vpop.f32.mrf.mxu0
          %v6054 = vadd.f32 %v3258, %v6053
          %v6055 = vpop.f32.mrf.mxu0
          %v6056 = vadd.f32 %v3262, %v6055
          %v6057 = vpop.f32.mrf.mxu0
          %v6058 = vadd.f32 %v3258, %v6057
          %v6059 = vpop.f32.mrf.mxu0
          %v6060 = vadd.f32 %v3262, %v6059
          %6061 = vdwg.mxu0
          %6062 = vmatprep.subr.bf16.mxu0 %v5010
          %6063 = vmatpush1.bf16.msra.mxu0 %v5009
          %6064 = vmatprep.subr.bf16.mxu0 %v5002
          %6065 = vmatpush1.bf16.msra.mxu0 %v5001
          %6066 = vmatprep.subr.bf16.mxu0 %v4994
          %6067 = vmatpush1.bf16.msra.mxu0 %v4993
          %6068 = vmatprep.subr.bf16.mxu0 %v4986
          %6069 = vmatpush1.bf16.msra.mxu0 %v4985
          %6070 = vmatprep.subr.bf16.mxu0 %v4978
          %6071 = vmatpush1.bf16.msra.mxu0 %v4977
          %6072 = vmatprep.subr.bf16.mxu0 %v4970
          %6073 = vmatpush1.bf16.msra.mxu0 %v4969
          %6074 = vmatprep.subr.bf16.mxu0 %v4962
          %6075 = vmatpush1.bf16.msra.mxu0 %v4961
          %6076 = vmatprep.subr.bf16.mxu0 %v4954
          %6077 = vmatpush1.bf16.msra.mxu0 %v4953
          %6078 = vmatprep.subr.bf16.mxu0 %v5074
          %6079 = vmatpush2.bf16.msra.mxu0 %v5073
          %6080 = vmatprep.subr.bf16.mxu0 %v5066
          %6081 = vmatpush2.bf16.msra.mxu0 %v5065
          %6082 = vmatprep.subr.bf16.mxu0 %v5058
          %6083 = vmatpush2.bf16.msra.mxu0 %v5057
          %6084 = vmatprep.subr.bf16.mxu0 %v5050
          %6085 = vmatpush2.bf16.msra.mxu0 %v5049
          %6086 = vmatprep.subr.bf16.mxu0 %v5042
          %6087 = vmatpush2.bf16.msra.mxu0 %v5041
          %6088 = vmatprep.subr.bf16.mxu0 %v5034
          %6089 = vmatpush2.bf16.msra.mxu0 %v5033
          %6090 = vmatprep.subr.bf16.mxu0 %v5026
          %6091 = vmatpush2.bf16.msra.mxu0 %v5025
          %6092 = vmatprep.subr.bf16.mxu0 %v5018
          %6093 = vmatpush2.bf16.msra.mxu0 %v5017
          %6094 = vmatprep.mubr.bf16.mxu0 %v2728
          %6095 = vmatmul.mubr.bf16.gmra.mxu0 %v2727
          %v6096 = vpop.f32.mrf.mxu0
          %v6097 = vadd.f32 %v6054, %v6096
          %v6098 = vpop.f32.mrf.mxu0
          %v6099 = vadd.f32 %v6056, %v6098
          %v6100 = vpop.f32.mrf.mxu0
          %v6101 = vadd.f32 %v6058, %v6100
          %v6102 = vpop.f32.mrf.mxu0
          %v6103 = vadd.f32 %v6060, %v6102
          %6104 = vdwg.mxu0
          %6105 = vmatprep.subr.bf16.mxu0 %v5138
          %6106 = vmatpush1.bf16.msra.mxu0 %v5137
          %6107 = vmatprep.subr.bf16.mxu0 %v5130
          %6108 = vmatpush1.bf16.msra.mxu0 %v5129
          %6109 = vmatprep.subr.bf16.mxu0 %v5122
          %6110 = vmatpush1.bf16.msra.mxu0 %v5121
          %6111 = vmatprep.subr.bf16.mxu0 %v5114
          %6112 = vmatpush1.bf16.msra.mxu0 %v5113
          %6113 = vmatprep.subr.bf16.mxu0 %v5106
          %6114 = vmatpush1.bf16.msra.mxu0 %v5105
          %6115 = vmatprep.subr.bf16.mxu0 %v5098
          %6116 = vmatpush1.bf16.msra.mxu0 %v5097
          %6117 = vmatprep.subr.bf16.mxu0 %v5090
          %6118 = vmatpush1.bf16.msra.mxu0 %v5089
          %6119 = vmatprep.subr.bf16.mxu0 %v5082
          %6120 = vmatpush1.bf16.msra.mxu0 %v5081
          %6121 = vmatprep.subr.bf16.mxu0 %v5202
          %6122 = vmatpush2.bf16.msra.mxu0 %v5201
          %6123 = vmatprep.subr.bf16.mxu0 %v5194
          %6124 = vmatpush2.bf16.msra.mxu0 %v5193
          %6125 = vmatprep.subr.bf16.mxu0 %v5186
          %6126 = vmatpush2.bf16.msra.mxu0 %v5185
          %6127 = vmatprep.subr.bf16.mxu0 %v5178
          %6128 = vmatpush2.bf16.msra.mxu0 %v5177
          %6129 = vmatprep.subr.bf16.mxu0 %v5170
          %6130 = vmatpush2.bf16.msra.mxu0 %v5169
          %6131 = vmatprep.subr.bf16.mxu0 %v5162
          %6132 = vmatpush2.bf16.msra.mxu0 %v5161
          %6133 = vmatprep.subr.bf16.mxu0 %v5154
          %6134 = vmatpush2.bf16.msra.mxu0 %v5153
          %6135 = vmatprep.subr.bf16.mxu0 %v5146
          %6136 = vmatpush2.bf16.msra.mxu0 %v5145
          %6137 = vmatprep.mubr.bf16.mxu0 %v2730
          %6138 = vmatmul.mubr.bf16.gmra.mxu0 %v2729
          %v6139 = vpop.f32.mrf.mxu0
          %v6140 = vadd.f32 %v6097, %v6139
          %v6141 = vpop.f32.mrf.mxu0
          %v6142 = vadd.f32 %v6099, %v6141
          %v6143 = vpop.f32.mrf.mxu0
          %v6144 = vadd.f32 %v6101, %v6143
          %v6145 = vpop.f32.mrf.mxu0
          %v6146 = vadd.f32 %v6103, %v6145
          %6147 = vdwg.mxu0
          %6148 = vmatprep.subr.bf16.mxu0 %v5266
          %6149 = vmatpush1.bf16.msra.mxu0 %v5265
          %6150 = vmatprep.subr.bf16.mxu0 %v5258
          %6151 = vmatpush1.bf16.msra.mxu0 %v5257
          %6152 = vmatprep.subr.bf16.mxu0 %v5250
          %6153 = vmatpush1.bf16.msra.mxu0 %v5249
          %6154 = vmatprep.subr.bf16.mxu0 %v5242
          %6155 = vmatpush1.bf16.msra.mxu0 %v5241
          %6156 = vmatprep.subr.bf16.mxu0 %v5234
          %6157 = vmatpush1.bf16.msra.mxu0 %v5233
          %6158 = vmatprep.subr.bf16.mxu0 %v5226
          %6159 = vmatpush1.bf16.msra.mxu0 %v5225
          %6160 = vmatprep.subr.bf16.mxu0 %v5218
          %6161 = vmatpush1.bf16.msra.mxu0 %v5217
          %6162 = vmatprep.subr.bf16.mxu0 %v5210
          %6163 = vmatpush1.bf16.msra.mxu0 %v5209
          %6164 = vmatprep.subr.bf16.mxu0 %v5330
          %6165 = vmatpush2.bf16.msra.mxu0 %v5329
          %6166 = vmatprep.subr.bf16.mxu0 %v5322
          %6167 = vmatpush2.bf16.msra.mxu0 %v5321
          %6168 = vmatprep.subr.bf16.mxu0 %v5314
          %6169 = vmatpush2.bf16.msra.mxu0 %v5313
          %6170 = vmatprep.subr.bf16.mxu0 %v5306
          %6171 = vmatpush2.bf16.msra.mxu0 %v5305
          %6172 = vmatprep.subr.bf16.mxu0 %v5298
          %6173 = vmatpush2.bf16.msra.mxu0 %v5297
          %6174 = vmatprep.subr.bf16.mxu0 %v5290
          %6175 = vmatpush2.bf16.msra.mxu0 %v5289
          %6176 = vmatprep.subr.bf16.mxu0 %v5282
          %6177 = vmatpush2.bf16.msra.mxu0 %v5281
          %6178 = vmatprep.subr.bf16.mxu0 %v5274
          %6179 = vmatpush2.bf16.msra.mxu0 %v5273
          %6180 = vmatprep.mubr.bf16.mxu0 %v2732
          %6181 = vmatmul.mubr.bf16.gmra.mxu0 %v2731
          %v6182 = vpop.f32.mrf.mxu0
          %v6183 = vadd.f32 %v6140, %v6182
          %v6184 = vpop.f32.mrf.mxu0
          %v6185 = vadd.f32 %v6142, %v6184
          %v6186 = vpop.f32.mrf.mxu0
          %v6187 = vadd.f32 %v6144, %v6186
          %v6188 = vpop.f32.mrf.mxu0
          %v6189 = vadd.f32 %v6146, %v6188
          %6190 = vdwg.mxu0
          %6191 = vmatprep.subr.bf16.mxu0 %v4884
          %6192 = vmatpush1.bf16.msra.mxu0 %v4883
          %6193 = vmatprep.subr.bf16.mxu0 %v4876
          %6194 = vmatpush1.bf16.msra.mxu0 %v4875
          %6195 = vmatprep.subr.bf16.mxu0 %v4868
          %6196 = vmatpush1.bf16.msra.mxu0 %v4867
          %6197 = vmatprep.subr.bf16.mxu0 %v4860
          %6198 = vmatpush1.bf16.msra.mxu0 %v4859
          %6199 = vmatprep.subr.bf16.mxu0 %v4852
          %6200 = vmatpush1.bf16.msra.mxu0 %v4851
          %6201 = vmatprep.subr.bf16.mxu0 %v4844
          %6202 = vmatpush1.bf16.msra.mxu0 %v4843
          %6203 = vmatprep.subr.bf16.mxu0 %v4836
          %6204 = vmatpush1.bf16.msra.mxu0 %v4835
          %6205 = vmatprep.subr.bf16.mxu0 %v4828
          %6206 = vmatpush1.bf16.msra.mxu0 %v4827
          %6207 = vmatprep.subr.bf16.mxu0 %v4948
          %6208 = vmatpush2.bf16.msra.mxu0 %v4947
          %6209 = vmatprep.subr.bf16.mxu0 %v4940
          %6210 = vmatpush2.bf16.msra.mxu0 %v4939
          %6211 = vmatprep.subr.bf16.mxu0 %v4932
          %6212 = vmatpush2.bf16.msra.mxu0 %v4931
          %6213 = vmatprep.subr.bf16.mxu0 %v4924
          %6214 = vmatpush2.bf16.msra.mxu0 %v4923
          %6215 = vmatprep.subr.bf16.mxu0 %v4916
          %6216 = vmatpush2.bf16.msra.mxu0 %v4915
          %6217 = vmatprep.subr.bf16.mxu0 %v4908
          %6218 = vmatpush2.bf16.msra.mxu0 %v4907
          %6219 = vmatprep.subr.bf16.mxu0 %v4900
          %6220 = vmatpush2.bf16.msra.mxu0 %v4899
          %6221 = vmatprep.subr.bf16.mxu0 %v4892
          %6222 = vmatpush2.bf16.msra.mxu0 %v4891
          %6223 = vmatprep.mubr.bf16.mxu0 %v2726
          %6224 = vmatmul.mubr.bf16.gmra.mxu0 %v2725
          %v6225 = vpop.f32.mrf.mxu0
          %v6226 = vadd.f32 %v3266, %v6225
          %v6227 = vpop.f32.mrf.mxu0
          %v6228 = vadd.f32 %v3270, %v6227
          %v6229 = vpop.f32.mrf.mxu0
          %v6230 = vadd.f32 %v3266, %v6229
          %v6231 = vpop.f32.mrf.mxu0
          %v6232 = vadd.f32 %v3270, %v6231
          %6233 = vdwg.mxu0
          %6234 = vmatprep.subr.bf16.mxu0 %v5012
          %6235 = vmatpush1.bf16.msra.mxu0 %v5011
          %6236 = vmatprep.subr.bf16.mxu0 %v5004
          %6237 = vmatpush1.bf16.msra.mxu0 %v5003
          %6238 = vmatprep.subr.bf16.mxu0 %v4996
          %6239 = vmatpush1.bf16.msra.mxu0 %v4995
          %6240 = vmatprep.subr.bf16.mxu0 %v4988
          %6241 = vmatpush1.bf16.msra.mxu0 %v4987
          %6242 = vmatprep.subr.bf16.mxu0 %v4980
          %6243 = vmatpush1.bf16.msra.mxu0 %v4979
          %6244 = vmatprep.subr.bf16.mxu0 %v4972
          %6245 = vmatpush1.bf16.msra.mxu0 %v4971
          %6246 = vmatprep.subr.bf16.mxu0 %v4964
          %6247 = vmatpush1.bf16.msra.mxu0 %v4963
          %6248 = vmatprep.subr.bf16.mxu0 %v4956
          %6249 = vmatpush1.bf16.msra.mxu0 %v4955
          %6250 = vmatprep.subr.bf16.mxu0 %v5076
          %6251 = vmatpush2.bf16.msra.mxu0 %v5075
          %6252 = vmatprep.subr.bf16.mxu0 %v5068
          %6253 = vmatpush2.bf16.msra.mxu0 %v5067
          %6254 = vmatprep.subr.bf16.mxu0 %v5060
          %6255 = vmatpush2.bf16.msra.mxu0 %v5059
          %6256 = vmatprep.subr.bf16.mxu0 %v5052
          %6257 = vmatpush2.bf16.msra.mxu0 %v5051
          %6258 = vmatprep.subr.bf16.mxu0 %v5044
          %6259 = vmatpush2.bf16.msra.mxu0 %v5043
          %6260 = vmatprep.subr.bf16.mxu0 %v5036
          %6261 = vmatpush2.bf16.msra.mxu0 %v5035
          %6262 = vmatprep.subr.bf16.mxu0 %v5028
          %6263 = vmatpush2.bf16.msra.mxu0 %v5027
          %6264 = vmatprep.subr.bf16.mxu0 %v5020
          %6265 = vmatpush2.bf16.msra.mxu0 %v5019
          %6266 = vmatprep.mubr.bf16.mxu0 %v2728
          %6267 = vmatmul.mubr.bf16.gmra.mxu0 %v2727
          %v6268 = vpop.f32.mrf.mxu0
          %v6269 = vadd.f32 %v6226, %v6268
          %v6270 = vpop.f32.mrf.mxu0
          %v6271 = vadd.f32 %v6228, %v6270
          %v6272 = vpop.f32.mrf.mxu0
          %v6273 = vadd.f32 %v6230, %v6272
          %v6274 = vpop.f32.mrf.mxu0
          %v6275 = vadd.f32 %v6232, %v6274
          %6276 = vdwg.mxu0
          %6277 = vmatprep.subr.bf16.mxu0 %v5140
          %6278 = vmatpush1.bf16.msra.mxu0 %v5139
          %6279 = vmatprep.subr.bf16.mxu0 %v5132
          %6280 = vmatpush1.bf16.msra.mxu0 %v5131
          %6281 = vmatprep.subr.bf16.mxu0 %v5124
          %6282 = vmatpush1.bf16.msra.mxu0 %v5123
          %6283 = vmatprep.subr.bf16.mxu0 %v5116
          %6284 = vmatpush1.bf16.msra.mxu0 %v5115
          %6285 = vmatprep.subr.bf16.mxu0 %v5108
          %6286 = vmatpush1.bf16.msra.mxu0 %v5107
          %6287 = vmatprep.subr.bf16.mxu0 %v5100
          %6288 = vmatpush1.bf16.msra.mxu0 %v5099
          %6289 = vmatprep.subr.bf16.mxu0 %v5092
          %6290 = vmatpush1.bf16.msra.mxu0 %v5091
          %6291 = vmatprep.subr.bf16.mxu0 %v5084
          %6292 = vmatpush1.bf16.msra.mxu0 %v5083
          %6293 = vmatprep.subr.bf16.mxu0 %v5204
          %6294 = vmatpush2.bf16.msra.mxu0 %v5203
          %6295 = vmatprep.subr.bf16.mxu0 %v5196
          %6296 = vmatpush2.bf16.msra.mxu0 %v5195
          %6297 = vmatprep.subr.bf16.mxu0 %v5188
          %6298 = vmatpush2.bf16.msra.mxu0 %v5187
          %6299 = vmatprep.subr.bf16.mxu0 %v5180
          %6300 = vmatpush2.bf16.msra.mxu0 %v5179
          %6301 = vmatprep.subr.bf16.mxu0 %v5172
          %6302 = vmatpush2.bf16.msra.mxu0 %v5171
          %6303 = vmatprep.subr.bf16.mxu0 %v5164
          %6304 = vmatpush2.bf16.msra.mxu0 %v5163
          %6305 = vmatprep.subr.bf16.mxu0 %v5156
          %6306 = vmatpush2.bf16.msra.mxu0 %v5155
          %6307 = vmatprep.subr.bf16.mxu0 %v5148
          %6308 = vmatpush2.bf16.msra.mxu0 %v5147
          %6309 = vmatprep.mubr.bf16.mxu0 %v2730
          %6310 = vmatmul.mubr.bf16.gmra.mxu0 %v2729
          %v6311 = vpop.f32.mrf.mxu0
          %v6312 = vadd.f32 %v6269, %v6311
          %v6313 = vpop.f32.mrf.mxu0
          %v6314 = vadd.f32 %v6271, %v6313
          %v6315 = vpop.f32.mrf.mxu0
          %v6316 = vadd.f32 %v6273, %v6315
          %v6317 = vpop.f32.mrf.mxu0
          %v6318 = vadd.f32 %v6275, %v6317
          %6319 = vdwg.mxu0
          %6320 = vmatprep.subr.bf16.mxu0 %v5268
          %6321 = vmatpush1.bf16.msra.mxu0 %v5267
          %6322 = vmatprep.subr.bf16.mxu0 %v5260
          %6323 = vmatpush1.bf16.msra.mxu0 %v5259
          %6324 = vmatprep.subr.bf16.mxu0 %v5252
          %6325 = vmatpush1.bf16.msra.mxu0 %v5251
          %6326 = vmatprep.subr.bf16.mxu0 %v5244
          %6327 = vmatpush1.bf16.msra.mxu0 %v5243
          %6328 = vmatprep.subr.bf16.mxu0 %v5236
          %6329 = vmatpush1.bf16.msra.mxu0 %v5235
          %6330 = vmatprep.subr.bf16.mxu0 %v5228
          %6331 = vmatpush1.bf16.msra.mxu0 %v5227
          %6332 = vmatprep.subr.bf16.mxu0 %v5220
          %6333 = vmatpush1.bf16.msra.mxu0 %v5219
          %6334 = vmatprep.subr.bf16.mxu0 %v5212
          %6335 = vmatpush1.bf16.msra.mxu0 %v5211
          %6336 = vmatprep.subr.bf16.mxu0 %v5332
          %6337 = vmatpush2.bf16.msra.mxu0 %v5331
          %6338 = vmatprep.subr.bf16.mxu0 %v5324
          %6339 = vmatpush2.bf16.msra.mxu0 %v5323
          %6340 = vmatprep.subr.bf16.mxu0 %v5316
          %6341 = vmatpush2.bf16.msra.mxu0 %v5315
          %6342 = vmatprep.subr.bf16.mxu0 %v5308
          %6343 = vmatpush2.bf16.msra.mxu0 %v5307
          %6344 = vmatprep.subr.bf16.mxu0 %v5300
          %6345 = vmatpush2.bf16.msra.mxu0 %v5299
          %6346 = vmatprep.subr.bf16.mxu0 %v5292
          %6347 = vmatpush2.bf16.msra.mxu0 %v5291
          %6348 = vmatprep.subr.bf16.mxu0 %v5284
          %6349 = vmatpush2.bf16.msra.mxu0 %v5283
          %6350 = vmatprep.subr.bf16.mxu0 %v5276
          %6351 = vmatpush2.bf16.msra.mxu0 %v5275
          %6352 = vmatprep.mubr.bf16.mxu0 %v2732
          %6353 = vmatmul.mubr.bf16.gmra.mxu0 %v2731
          %v6354 = vpop.f32.mrf.mxu0
          %v6355 = vadd.f32 %v6312, %v6354
          %v6356 = vpop.f32.mrf.mxu0
          %v6357 = vadd.f32 %v6314, %v6356
          %v6358 = vpop.f32.mrf.mxu0
          %v6359 = vadd.f32 %v6316, %v6358
          %v6360 = vpop.f32.mrf.mxu0
          %v6361 = vadd.f32 %v6318, %v6360
          %6362 = vdwg.mxu0
          %6363 = vmatprep.subr.bf16.mxu0 %v4886
          %6364 = vmatpush1.bf16.msra.mxu0 %v4885
          %6365 = vmatprep.subr.bf16.mxu0 %v4878
          %6366 = vmatpush1.bf16.msra.mxu0 %v4877
          %6367 = vmatprep.subr.bf16.mxu0 %v4870
          %6368 = vmatpush1.bf16.msra.mxu0 %v4869
          %6369 = vmatprep.subr.bf16.mxu0 %v4862
          %6370 = vmatpush1.bf16.msra.mxu0 %v4861
          %6371 = vmatprep.subr.bf16.mxu0 %v4854
          %6372 = vmatpush1.bf16.msra.mxu0 %v4853
          %6373 = vmatprep.subr.bf16.mxu0 %v4846
          %6374 = vmatpush1.bf16.msra.mxu0 %v4845
          %6375 = vmatprep.subr.bf16.mxu0 %v4838
          %6376 = vmatpush1.bf16.msra.mxu0 %v4837
          %6377 = vmatprep.subr.bf16.mxu0 %v4830
          %6378 = vmatpush1.bf16.msra.mxu0 %v4829
          %6379 = vmatprep.subr.bf16.mxu0 %v4950
          %6380 = vmatpush2.bf16.msra.mxu0 %v4949
          %6381 = vmatprep.subr.bf16.mxu0 %v4942
          %6382 = vmatpush2.bf16.msra.mxu0 %v4941
          %6383 = vmatprep.subr.bf16.mxu0 %v4934
          %6384 = vmatpush2.bf16.msra.mxu0 %v4933
          %6385 = vmatprep.subr.bf16.mxu0 %v4926
          %6386 = vmatpush2.bf16.msra.mxu0 %v4925
          %6387 = vmatprep.subr.bf16.mxu0 %v4918
          %6388 = vmatpush2.bf16.msra.mxu0 %v4917
          %6389 = vmatprep.subr.bf16.mxu0 %v4910
          %6390 = vmatpush2.bf16.msra.mxu0 %v4909
          %6391 = vmatprep.subr.bf16.mxu0 %v4902
          %6392 = vmatpush2.bf16.msra.mxu0 %v4901
          %6393 = vmatprep.subr.bf16.mxu0 %v4894
          %6394 = vmatpush2.bf16.msra.mxu0 %v4893
          %6395 = vmatprep.mubr.bf16.mxu0 %v2726
          %6396 = vmatmul.mubr.bf16.gmra.mxu0 %v2725
          %v6397 = vpop.f32.mrf.mxu0
          %v6398 = vadd.f32 %v3274, %v6397
          %v6399 = vpop.f32.mrf.mxu0
          %v6400 = vadd.f32 %v3278, %v6399
          %v6401 = vpop.f32.mrf.mxu0
          %v6402 = vadd.f32 %v3274, %v6401
          %v6403 = vpop.f32.mrf.mxu0
          %v6404 = vadd.f32 %v3278, %v6403
          %6405 = vdwg.mxu0
          %6406 = vmatprep.subr.bf16.mxu0 %v5014
          %6407 = vmatpush1.bf16.msra.mxu0 %v5013
          %6408 = vmatprep.subr.bf16.mxu0 %v5006
          %6409 = vmatpush1.bf16.msra.mxu0 %v5005
          %6410 = vmatprep.subr.bf16.mxu0 %v4998
          %6411 = vmatpush1.bf16.msra.mxu0 %v4997
          %6412 = vmatprep.subr.bf16.mxu0 %v4990
          %6413 = vmatpush1.bf16.msra.mxu0 %v4989
          %6414 = vmatprep.subr.bf16.mxu0 %v4982
          %6415 = vmatpush1.bf16.msra.mxu0 %v4981
          %6416 = vmatprep.subr.bf16.mxu0 %v4974
          %6417 = vmatpush1.bf16.msra.mxu0 %v4973
          %6418 = vmatprep.subr.bf16.mxu0 %v4966
          %6419 = vmatpush1.bf16.msra.mxu0 %v4965
          %6420 = vmatprep.subr.bf16.mxu0 %v4958
          %6421 = vmatpush1.bf16.msra.mxu0 %v4957
          %6422 = vmatprep.subr.bf16.mxu0 %v5078
          %6423 = vmatpush2.bf16.msra.mxu0 %v5077
          %6424 = vmatprep.subr.bf16.mxu0 %v5070
          %6425 = vmatpush2.bf16.msra.mxu0 %v5069
          %6426 = vmatprep.subr.bf16.mxu0 %v5062
          %6427 = vmatpush2.bf16.msra.mxu0 %v5061
          %6428 = vmatprep.subr.bf16.mxu0 %v5054
          %6429 = vmatpush2.bf16.msra.mxu0 %v5053
          %6430 = vmatprep.subr.bf16.mxu0 %v5046
          %6431 = vmatpush2.bf16.msra.mxu0 %v5045
          %6432 = vmatprep.subr.bf16.mxu0 %v5038
          %6433 = vmatpush2.bf16.msra.mxu0 %v5037
          %6434 = vmatprep.subr.bf16.mxu0 %v5030
          %6435 = vmatpush2.bf16.msra.mxu0 %v5029
          %6436 = vmatprep.subr.bf16.mxu0 %v5022
          %6437 = vmatpush2.bf16.msra.mxu0 %v5021
          %6438 = vmatprep.mubr.bf16.mxu0 %v2728
          %6439 = vmatmul.mubr.bf16.gmra.mxu0 %v2727
          %v6440 = vpop.f32.mrf.mxu0
          %v6441 = vadd.f32 %v6398, %v6440
          %v6442 = vpop.f32.mrf.mxu0
          %v6443 = vadd.f32 %v6400, %v6442
          %v6444 = vpop.f32.mrf.mxu0
          %v6445 = vadd.f32 %v6402, %v6444
          %v6446 = vpop.f32.mrf.mxu0
          %v6447 = vadd.f32 %v6404, %v6446
          %6448 = vdwg.mxu0
          %6449 = vmatprep.subr.bf16.mxu0 %v5142
          %6450 = vmatpush1.bf16.msra.mxu0 %v5141
          %6451 = vmatprep.subr.bf16.mxu0 %v5134
          %6452 = vmatpush1.bf16.msra.mxu0 %v5133
          %6453 = vmatprep.subr.bf16.mxu0 %v5126
          %6454 = vmatpush1.bf16.msra.mxu0 %v5125
          %6455 = vmatprep.subr.bf16.mxu0 %v5118
          %6456 = vmatpush1.bf16.msra.mxu0 %v5117
          %6457 = vmatprep.subr.bf16.mxu0 %v5110
          %6458 = vmatpush1.bf16.msra.mxu0 %v5109
          %6459 = vmatprep.subr.bf16.mxu0 %v5102
          %6460 = vmatpush1.bf16.msra.mxu0 %v5101
          %6461 = vmatprep.subr.bf16.mxu0 %v5094
          %6462 = vmatpush1.bf16.msra.mxu0 %v5093
          %6463 = vmatprep.subr.bf16.mxu0 %v5086
          %6464 = vmatpush1.bf16.msra.mxu0 %v5085
          %6465 = vmatprep.subr.bf16.mxu0 %v5206
          %6466 = vmatpush2.bf16.msra.mxu0 %v5205
          %6467 = vmatprep.subr.bf16.mxu0 %v5198
          %6468 = vmatpush2.bf16.msra.mxu0 %v5197
          %6469 = vmatprep.subr.bf16.mxu0 %v5190
          %6470 = vmatpush2.bf16.msra.mxu0 %v5189
          %6471 = vmatprep.subr.bf16.mxu0 %v5182
          %6472 = vmatpush2.bf16.msra.mxu0 %v5181
          %6473 = vmatprep.subr.bf16.mxu0 %v5174
          %6474 = vmatpush2.bf16.msra.mxu0 %v5173
          %6475 = vmatprep.subr.bf16.mxu0 %v5166
          %6476 = vmatpush2.bf16.msra.mxu0 %v5165
          %6477 = vmatprep.subr.bf16.mxu0 %v5158
          %6478 = vmatpush2.bf16.msra.mxu0 %v5157
          %6479 = vmatprep.subr.bf16.mxu0 %v5150
          %6480 = vmatpush2.bf16.msra.mxu0 %v5149
          %6481 = vmatprep.mubr.bf16.mxu0 %v2730
          %6482 = vmatmul.mubr.bf16.gmra.mxu0 %v2729
          %v6483 = vpop.f32.mrf.mxu0
          %v6484 = vadd.f32 %v6441, %v6483
          %v6485 = vpop.f32.mrf.mxu0
          %v6486 = vadd.f32 %v6443, %v6485
          %v6487 = vpop.f32.mrf.mxu0
          %v6488 = vadd.f32 %v6445, %v6487
          %v6489 = vpop.f32.mrf.mxu0
          %v6490 = vadd.f32 %v6447, %v6489
          %6491 = vdwg.mxu0
          %6492 = vmatprep.subr.bf16.mxu0 %v5270
          %6493 = vmatpush1.bf16.msra.mxu0 %v5269
          %6494 = vmatprep.subr.bf16.mxu0 %v5262
          %6495 = vmatpush1.bf16.msra.mxu0 %v5261
          %6496 = vmatprep.subr.bf16.mxu0 %v5254
          %6497 = vmatpush1.bf16.msra.mxu0 %v5253
          %6498 = vmatprep.subr.bf16.mxu0 %v5246
          %6499 = vmatpush1.bf16.msra.mxu0 %v5245
          %6500 = vmatprep.subr.bf16.mxu0 %v5238
          %6501 = vmatpush1.bf16.msra.mxu0 %v5237
          %6502 = vmatprep.subr.bf16.mxu0 %v5230
          %6503 = vmatpush1.bf16.msra.mxu0 %v5229
          %6504 = vmatprep.subr.bf16.mxu0 %v5222
          %6505 = vmatpush1.bf16.msra.mxu0 %v5221
          %6506 = vmatprep.subr.bf16.mxu0 %v5214
          %6507 = vmatpush1.bf16.msra.mxu0 %v5213
          %6508 = vmatprep.subr.bf16.mxu0 %v5334
          %6509 = vmatpush2.bf16.msra.mxu0 %v5333
          %6510 = vmatprep.subr.bf16.mxu0 %v5326
          %6511 = vmatpush2.bf16.msra.mxu0 %v5325
          %6512 = vmatprep.subr.bf16.mxu0 %v5318
          %6513 = vmatpush2.bf16.msra.mxu0 %v5317
          %6514 = vmatprep.subr.bf16.mxu0 %v5310
          %6515 = vmatpush2.bf16.msra.mxu0 %v5309
          %6516 = vmatprep.subr.bf16.mxu0 %v5302
          %6517 = vmatpush2.bf16.msra.mxu0 %v5301
          %6518 = vmatprep.subr.bf16.mxu0 %v5294
          %6519 = vmatpush2.bf16.msra.mxu0 %v5293
          %6520 = vmatprep.subr.bf16.mxu0 %v5286
          %6521 = vmatpush2.bf16.msra.mxu0 %v5285
          %6522 = vmatprep.subr.bf16.mxu0 %v5278
          %6523 = vmatpush2.bf16.msra.mxu0 %v5277
          %6524 = vmatprep.mubr.bf16.mxu0 %v2732
          %6525 = vmatmul.mubr.bf16.gmra.mxu0 %v2731
          %v6526 = vpop.f32.mrf.mxu0
          %v6527 = vadd.f32 %v6484, %v6526
          %v6528 = vpop.f32.mrf.mxu0
          %v6529 = vadd.f32 %v6486, %v6528
          %v6530 = vpop.f32.mrf.mxu0
          %v6531 = vadd.f32 %v6488, %v6530
          %v6532 = vpop.f32.mrf.mxu0
          %v6533 = vadd.f32 %v6490, %v6532
          %6534 = vdwg.mxu0
          %v6535 = vxor.u32 %v6011, 2147483648
          %v6536 = vxor.u32 %v6013, 2147483648
          %v6537 = vxor.u32 %v6183, 2147483648
          %v6538 = vxor.u32 %v6185, 2147483648
          %v6539 = vxor.u32 %v6355, 2147483648
          %v6540 = vxor.u32 %v6357, 2147483648
          %v6541 = vxor.u32 %v6527, 2147483648
          %v6542 = vxor.u32 %v6529, 2147483648
          %v6543 = vxor.u32 %v6015, 2147483648
          %v6544 = vxor.u32 %v6017, 2147483648
          %v6545 = vxor.u32 %v6187, 2147483648
          %v6546 = vxor.u32 %v6189, 2147483648
          %v6547 = vxor.u32 %v6359, 2147483648
          %v6548 = vxor.u32 %v6361, 2147483648
          %v6549 = vxor.u32 %v6531, 2147483648
          %v6550 = vxor.u32 %v6533, 2147483648
          %v6551 = vmul.f32 %v6535, 1.442695
          %v6552 = vpow.pop %v6551
          %v6553 = vmul.f32 %v6536, 1.442695
          %v6554 = vpow.pop %v6553
          %v6555 = vmul.f32 %v6537, 1.442695
          %v6556 = vpow.pop %v6555
          %v6557 = vmul.f32 %v6538, 1.442695
          %v6558 = vpow.pop %v6557
          %v6559 = vmul.f32 %v6539, 1.442695
          %v6560 = vpow.pop %v6559
          %v6561 = vmul.f32 %v6540, 1.442695
          %v6562 = vpow.pop %v6561
          %v6563 = vmul.f32 %v6541, 1.442695
          %v6564 = vpow.pop %v6563
          %v6565 = vmul.f32 %v6542, 1.442695
          %v6566 = vpow.pop %v6565
          %v6567 = vmul.f32 %v6543, 1.442695
          %v6568 = vpow.pop %v6567
          %v6569 = vmul.f32 %v6544, 1.442695
          %v6570 = vpow.pop %v6569
          %v6571 = vmul.f32 %v6545, 1.442695
          %v6572 = vpow.pop %v6571
          %v6573 = vmul.f32 %v6546, 1.442695
          %v6574 = vpow.pop %v6573
          %v6575 = vmul.f32 %v6547, 1.442695
          %v6576 = vpow.pop %v6575
          %v6577 = vmul.f32 %v6548, 1.442695
          %v6578 = vpow.pop %v6577
          %v6579 = vmul.f32 %v6549, 1.442695
          %v6580 = vpow.pop %v6579
          %v6581 = vmul.f32 %v6550, 1.442695
          %v6582 = vpow.pop %v6581
          %v6583 = vadd.f32 %v6552, 1.0
          %v6584 = vadd.f32 %v6554, 1.0
          %v6585 = vadd.f32 %v6556, 1.0
          %v6586 = vadd.f32 %v6558, 1.0
          %v6587 = vadd.f32 %v6560, 1.0
          %v6588 = vadd.f32 %v6562, 1.0
          %v6589 = vadd.f32 %v6564, 1.0
          %v6590 = vadd.f32 %v6566, 1.0
          %v6591 = vadd.f32 %v6568, 1.0
          %v6592 = vadd.f32 %v6570, 1.0
          %v6593 = vadd.f32 %v6572, 1.0
          %v6594 = vadd.f32 %v6574, 1.0
          %v6595 = vadd.f32 %v6576, 1.0
          %v6596 = vadd.f32 %v6578, 1.0
          %v6597 = vadd.f32 %v6580, 1.0
          %v6598 = vadd.f32 %v6582, 1.0
          %v6599 = vrcp.pop %v6583
          %v6600 = vmul.f32 1.0, %v6599
          %v6601 = vrcp.pop %v6584
          %v6602 = vmul.f32 1.0, %v6601
          %v6603 = vrcp.pop %v6585
          %v6604 = vmul.f32 1.0, %v6603
          %v6605 = vrcp.pop %v6586
          %v6606 = vmul.f32 1.0, %v6605
          %v6607 = vrcp.pop %v6587
          %v6608 = vmul.f32 1.0, %v6607
          %v6609 = vrcp.pop %v6588
          %v6610 = vmul.f32 1.0, %v6609
          %v6611 = vrcp.pop %v6589
          %v6612 = vmul.f32 1.0, %v6611
          %v6613 = vrcp.pop %v6590
          %v6614 = vmul.f32 1.0, %v6613
          %v6615 = vrcp.pop %v6591
          %v6616 = vmul.f32 1.0, %v6615
          %v6617 = vrcp.pop %v6592
          %v6618 = vmul.f32 1.0, %v6617
          %v6619 = vrcp.pop %v6593
          %v6620 = vmul.f32 1.0, %v6619
          %v6621 = vrcp.pop %v6594
          %v6622 = vmul.f32 1.0, %v6621
          %v6623 = vrcp.pop %v6595
          %v6624 = vmul.f32 1.0, %v6623
          %v6625 = vrcp.pop %v6596
          %v6626 = vmul.f32 1.0, %v6625
          %v6627 = vrcp.pop %v6597
          %v6628 = vmul.f32 1.0, %v6627
          %v6629 = vrcp.pop %v6598
          %v6630 = vmul.f32 1.0, %v6629
          %v6631 = vmul.f32 %v6011, %v6600
          %v6632 = vmul.f32 %v6013, %v6602
          %v6633 = vmul.f32 %v6183, %v6604
          %v6634 = vmul.f32 %v6185, %v6606
          %v6635 = vmul.f32 %v6355, %v6608
          %v6636 = vmul.f32 %v6357, %v6610
          %v6637 = vmul.f32 %v6527, %v6612
          %v6638 = vmul.f32 %v6529, %v6614
          %v6639 = vmul.f32 %v6015, %v6616
          %v6640 = vmul.f32 %v6017, %v6618
          %v6641 = vmul.f32 %v6187, %v6620
          %v6642 = vmul.f32 %v6189, %v6622
          %v6643 = vmul.f32 %v6359, %v6624
          %v6644 = vmul.f32 %v6361, %v6626
          %v6645 = vmul.f32 %v6531, %v6628
          %v6646 = vmul.f32 %v6533, %v6630
          %v6647 = vpack.c.bf16 %v6639, %v6631
          %v6648 = vpack.c.bf16 %v6640, %v6632
          %v6649 = vpack.c.bf16 %v6641, %v6633
          %v6650 = vpack.c.bf16 %v6642, %v6634
          %v6651 = vpack.c.bf16 %v6643, %v6635
          %v6652 = vpack.c.bf16 %v6644, %v6636
          %v6653 = vpack.c.bf16 %v6645, %v6637
          %v6654 = vpack.c.bf16 %v6646, %v6638
          %v6655 = vld [vmem:[#allocation12] sm:$0xf]
          %v6656 = vld [vmem:[#allocation12 + $0x4] sm:$0xf]
          %v6657 = vld [vmem:[#allocation12 + $0x8] sm:$0xf]
          %v6658 = vld [vmem:[#allocation12 + $0xc] sm:$0xf]
          %v6659 = vld [vmem:[#allocation12 + $0x10] sm:$0xf]
          %v6660 = vld [vmem:[#allocation12 + $0x14] sm:$0xf]
          %v6661 = vld [vmem:[#allocation12 + $0x18] sm:$0xf]
          %v6662 = vld [vmem:[#allocation12 + $0x1c] sm:$0xf]
          %v6663 = vld [vmem:[#allocation12 + $0x20] sm:$0xf]
          %v6664 = vld [vmem:[#allocation12 + $0x24] sm:$0xf]
          %v6665 = vld [vmem:[#allocation12 + $0x28] sm:$0xf]
          %v6666 = vld [vmem:[#allocation12 + $0x2c] sm:$0xf]
          %v6667 = vld [vmem:[#allocation12 + $0x30] sm:$0xf]
          %v6668 = vld [vmem:[#allocation12 + $0x34] sm:$0xf]
          %v6669 = vld [vmem:[#allocation12 + $0x38] sm:$0xf]
          %v6670 = vld [vmem:[#allocation12 + $0x3c] sm:$0xf]
          %v6671 = vld [vmem:[#allocation12 + $0x40] sm:$0xf]
          %v6672 = vld [vmem:[#allocation12 + $0x44] sm:$0xf]
          %v6673 = vld [vmem:[#allocation12 + $0x48] sm:$0xf]
          %v6674 = vld [vmem:[#allocation12 + $0x4c] sm:$0xf]
          %v6675 = vld [vmem:[#allocation12 + $0x50] sm:$0xf]
          %v6676 = vld [vmem:[#allocation12 + $0x54] sm:$0xf]
          %v6677 = vld [vmem:[#allocation12 + $0x58] sm:$0xf]
          %v6678 = vld [vmem:[#allocation12 + $0x5c] sm:$0xf]
          %v6679 = vld [vmem:[#allocation12 + $0x60] sm:$0xf]
          %v6680 = vld [vmem:[#allocation12 + $0x64] sm:$0xf]
          %v6681 = vld [vmem:[#allocation12 + $0x68] sm:$0xf]
          %v6682 = vld [vmem:[#allocation12 + $0x6c] sm:$0xf]
          %v6683 = vld [vmem:[#allocation12 + $0x70] sm:$0xf]
          %v6684 = vld [vmem:[#allocation12 + $0x74] sm:$0xf]
          %v6685 = vld [vmem:[#allocation12 + $0x78] sm:$0xf]
          %v6686 = vld [vmem:[#allocation12 + $0x7c] sm:$0xf]
          %v6687 = vld [vmem:[#allocation12 + $0x80] sm:$0xf]
          %v6688 = vld [vmem:[#allocation12 + $0x84] sm:$0xf]
          %v6689 = vld [vmem:[#allocation12 + $0x88] sm:$0xf]
          %v6690 = vld [vmem:[#allocation12 + $0x8c] sm:$0xf]
          %v6691 = vld [vmem:[#allocation12 + $0x90] sm:$0xf]
          %v6692 = vld [vmem:[#allocation12 + $0x94] sm:$0xf]
          %v6693 = vld [vmem:[#allocation12 + $0x98] sm:$0xf]
          %v6694 = vld [vmem:[#allocation12 + $0x9c] sm:$0xf]
          %v6695 = vld [vmem:[#allocation12 + $0xa0] sm:$0xf]
          %v6696 = vld [vmem:[#allocation12 + $0xa4] sm:$0xf]
          %v6697 = vld [vmem:[#allocation12 + $0xa8] sm:$0xf]
          %v6698 = vld [vmem:[#allocation12 + $0xac] sm:$0xf]
          %v6699 = vld [vmem:[#allocation12 + $0xb0] sm:$0xf]
          %v6700 = vld [vmem:[#allocation12 + $0xb4] sm:$0xf]
          %v6701 = vld [vmem:[#allocation12 + $0xb8] sm:$0xf]
          %v6702 = vld [vmem:[#allocation12 + $0xbc] sm:$0xf]
          %v6703 = vld [vmem:[#allocation12 + $0xc0] sm:$0xf]
          %v6704 = vld [vmem:[#allocation12 + $0xc4] sm:$0xf]
          %v6705 = vld [vmem:[#allocation12 + $0xc8] sm:$0xf]
          %v6706 = vld [vmem:[#allocation12 + $0xcc] sm:$0xf]
          %v6707 = vld [vmem:[#allocation12 + $0xd0] sm:$0xf]
          %v6708 = vld [vmem:[#allocation12 + $0xd4] sm:$0xf]
          %v6709 = vld [vmem:[#allocation12 + $0xd8] sm:$0xf]
          %v6710 = vld [vmem:[#allocation12 + $0xdc] sm:$0xf]
          %v6711 = vld [vmem:[#allocation12 + $0xe0] sm:$0xf]
          %v6712 = vld [vmem:[#allocation12 + $0xe4] sm:$0xf]
          %v6713 = vld [vmem:[#allocation12 + $0xe8] sm:$0xf]
          %v6714 = vld [vmem:[#allocation12 + $0xec] sm:$0xf]
          %v6715 = vld [vmem:[#allocation12 + $0xf0] sm:$0xf]
          %v6716 = vld [vmem:[#allocation12 + $0xf4] sm:$0xf]
          %v6717 = vld [vmem:[#allocation12 + $0xf8] sm:$0xf]
          %v6718 = vld [vmem:[#allocation12 + $0xfc] sm:$0xf]
          %v6719 = vld [vmem:[#allocation12 + $0x100] sm:$0xf]
          %v6720 = vld [vmem:[#allocation12 + $0x104] sm:$0xf]
          %v6721 = vld [vmem:[#allocation12 + $0x108] sm:$0xf]
          %v6722 = vld [vmem:[#allocation12 + $0x10c] sm:$0xf]
          %v6723 = vld [vmem:[#allocation12 + $0x110] sm:$0xf]
          %v6724 = vld [vmem:[#allocation12 + $0x114] sm:$0xf]
          %v6725 = vld [vmem:[#allocation12 + $0x118] sm:$0xf]
          %v6726 = vld [vmem:[#allocation12 + $0x11c] sm:$0xf]
          %v6727 = vld [vmem:[#allocation12 + $0x120] sm:$0xf]
          %v6728 = vld [vmem:[#allocation12 + $0x124] sm:$0xf]
          %v6729 = vld [vmem:[#allocation12 + $0x128] sm:$0xf]
          %v6730 = vld [vmem:[#allocation12 + $0x12c] sm:$0xf]
          %v6731 = vld [vmem:[#allocation12 + $0x130] sm:$0xf]
          %v6732 = vld [vmem:[#allocation12 + $0x134] sm:$0xf]
          %v6733 = vld [vmem:[#allocation12 + $0x138] sm:$0xf]
          %v6734 = vld [vmem:[#allocation12 + $0x13c] sm:$0xf]
          %v6735 = vld [vmem:[#allocation12 + $0x140] sm:$0xf]
          %v6736 = vld [vmem:[#allocation12 + $0x144] sm:$0xf]
          %v6737 = vld [vmem:[#allocation12 + $0x148] sm:$0xf]
          %v6738 = vld [vmem:[#allocation12 + $0x14c] sm:$0xf]
          %v6739 = vld [vmem:[#allocation12 + $0x150] sm:$0xf]
          %v6740 = vld [vmem:[#allocation12 + $0x154] sm:$0xf]
          %v6741 = vld [vmem:[#allocation12 + $0x158] sm:$0xf]
          %v6742 = vld [vmem:[#allocation12 + $0x15c] sm:$0xf]
          %v6743 = vld [vmem:[#allocation12 + $0x160] sm:$0xf]
          %v6744 = vld [vmem:[#allocation12 + $0x164] sm:$0xf]
          %v6745 = vld [vmem:[#allocation12 + $0x168] sm:$0xf]
          %v6746 = vld [vmem:[#allocation12 + $0x16c] sm:$0xf]
          %v6747 = vld [vmem:[#allocation12 + $0x170] sm:$0xf]
          %v6748 = vld [vmem:[#allocation12 + $0x174] sm:$0xf]
          %v6749 = vld [vmem:[#allocation12 + $0x178] sm:$0xf]
          %v6750 = vld [vmem:[#allocation12 + $0x17c] sm:$0xf]
          %v6751 = vld [vmem:[#allocation12 + $0x180] sm:$0xf]
          %v6752 = vld [vmem:[#allocation12 + $0x184] sm:$0xf]
          %v6753 = vld [vmem:[#allocation12 + $0x188] sm:$0xf]
          %v6754 = vld [vmem:[#allocation12 + $0x18c] sm:$0xf]
          %v6755 = vld [vmem:[#allocation12 + $0x190] sm:$0xf]
          %v6756 = vld [vmem:[#allocation12 + $0x194] sm:$0xf]
          %v6757 = vld [vmem:[#allocation12 + $0x198] sm:$0xf]
          %v6758 = vld [vmem:[#allocation12 + $0x19c] sm:$0xf]
          %v6759 = vld [vmem:[#allocation12 + $0x1a0] sm:$0xf]
          %v6760 = vld [vmem:[#allocation12 + $0x1a4] sm:$0xf]
          %v6761 = vld [vmem:[#allocation12 + $0x1a8] sm:$0xf]
          %v6762 = vld [vmem:[#allocation12 + $0x1ac] sm:$0xf]
          %v6763 = vld [vmem:[#allocation12 + $0x1b0] sm:$0xf]
          %v6764 = vld [vmem:[#allocation12 + $0x1b4] sm:$0xf]
          %v6765 = vld [vmem:[#allocation12 + $0x1b8] sm:$0xf]
          %v6766 = vld [vmem:[#allocation12 + $0x1bc] sm:$0xf]
          %v6767 = vld [vmem:[#allocation12 + $0x1c0] sm:$0xf]
          %v6768 = vld [vmem:[#allocation12 + $0x1c4] sm:$0xf]
          %v6769 = vld [vmem:[#allocation12 + $0x1c8] sm:$0xf]
          %v6770 = vld [vmem:[#allocation12 + $0x1cc] sm:$0xf]
          %v6771 = vld [vmem:[#allocation12 + $0x1d0] sm:$0xf]
          %v6772 = vld [vmem:[#allocation12 + $0x1d4] sm:$0xf]
          %v6773 = vld [vmem:[#allocation12 + $0x1d8] sm:$0xf]
          %v6774 = vld [vmem:[#allocation12 + $0x1dc] sm:$0xf]
          %v6775 = vld [vmem:[#allocation12 + $0x1e0] sm:$0xf]
          %v6776 = vld [vmem:[#allocation12 + $0x1e4] sm:$0xf]
          %v6777 = vld [vmem:[#allocation12 + $0x1e8] sm:$0xf]
          %v6778 = vld [vmem:[#allocation12 + $0x1ec] sm:$0xf]
          %v6779 = vld [vmem:[#allocation12 + $0x1f0] sm:$0xf]
          %v6780 = vld [vmem:[#allocation12 + $0x1f4] sm:$0xf]
          %v6781 = vld [vmem:[#allocation12 + $0x1f8] sm:$0xf]
          %v6782 = vld [vmem:[#allocation12 + $0x1fc] sm:$0xf]
          %v6783 = vld [vmem:[#allocation14] sm:$0x1]
          %v6785 = vlaneseq
          %v6786 = vshrl.u32 %v6785, 7
          %v6787 = vsub.s32 0, %v6786
          %v6788 = vrot.slane %v6783, %v6787
          %v6918 = vunpack.c.l.b16 %v6655
          %v6919 = vunpack.c.l.b16 %v6656
          %v6920 = vunpack.c.l.b16 %v6657
          %v6921 = vunpack.c.l.b16 %v6658
          %v6922 = vunpack.c.l.b16 %v6659
          %v6923 = vunpack.c.l.b16 %v6660
          %v6924 = vunpack.c.l.b16 %v6661
          %v6925 = vunpack.c.l.b16 %v6662
          %v6926 = vunpack.c.l.b16 %v6663
          %v6927 = vunpack.c.l.b16 %v6664
          %v6928 = vunpack.c.l.b16 %v6665
          %v6929 = vunpack.c.l.b16 %v6666
          %v6930 = vunpack.c.l.b16 %v6667
          %v6931 = vunpack.c.l.b16 %v6668
          %v6932 = vunpack.c.l.b16 %v6669
          %v6933 = vunpack.c.l.b16 %v6670
          %v6934 = vunpack.c.l.b16 %v6671
          %v6935 = vunpack.c.l.b16 %v6672
          %v6936 = vunpack.c.l.b16 %v6673
          %v6937 = vunpack.c.l.b16 %v6674
          %v6938 = vunpack.c.l.b16 %v6675
          %v6939 = vunpack.c.l.b16 %v6676
          %v6940 = vunpack.c.l.b16 %v6677
          %v6941 = vunpack.c.l.b16 %v6678
          %v6942 = vunpack.c.l.b16 %v6679
          %v6943 = vunpack.c.l.b16 %v6680
          %v6944 = vunpack.c.l.b16 %v6681
          %v6945 = vunpack.c.l.b16 %v6682
          %v6946 = vunpack.c.l.b16 %v6683
          %v6947 = vunpack.c.l.b16 %v6684
          %v6948 = vunpack.c.l.b16 %v6685
          %v6949 = vunpack.c.l.b16 %v6686
          %v6950 = vunpack.c.l.b16 %v6687
          %v6951 = vunpack.c.l.b16 %v6688
          %v6952 = vunpack.c.l.b16 %v6689
          %v6953 = vunpack.c.l.b16 %v6690
          %v6954 = vunpack.c.l.b16 %v6691
          %v6955 = vunpack.c.l.b16 %v6692
          %v6956 = vunpack.c.l.b16 %v6693
          %v6957 = vunpack.c.l.b16 %v6694
          %v6958 = vunpack.c.l.b16 %v6695
          %v6959 = vunpack.c.l.b16 %v6696
          %v6960 = vunpack.c.l.b16 %v6697
          %v6961 = vunpack.c.l.b16 %v6698
          %v6962 = vunpack.c.l.b16 %v6699
          %v6963 = vunpack.c.l.b16 %v6700
          %v6964 = vunpack.c.l.b16 %v6701
          %v6965 = vunpack.c.l.b16 %v6702
          %v6966 = vunpack.c.l.b16 %v6703
          %v6967 = vunpack.c.l.b16 %v6704
          %v6968 = vunpack.c.l.b16 %v6705
          %v6969 = vunpack.c.l.b16 %v6706
          %v6970 = vunpack.c.l.b16 %v6707
          %v6971 = vunpack.c.l.b16 %v6708
          %v6972 = vunpack.c.l.b16 %v6709
          %v6973 = vunpack.c.l.b16 %v6710
          %v6974 = vunpack.c.l.b16 %v6711
          %v6975 = vunpack.c.l.b16 %v6712
          %v6976 = vunpack.c.l.b16 %v6713
          %v6977 = vunpack.c.l.b16 %v6714
          %v6978 = vunpack.c.l.b16 %v6715
          %v6979 = vunpack.c.l.b16 %v6716
          %v6980 = vunpack.c.l.b16 %v6717
          %v6981 = vunpack.c.l.b16 %v6718
          %v6982 = vunpack.c.l.b16 %v6719
          %v6983 = vunpack.c.l.b16 %v6720
          %v6984 = vunpack.c.l.b16 %v6721
          %v6985 = vunpack.c.l.b16 %v6722
          %v6986 = vunpack.c.l.b16 %v6723
          %v6987 = vunpack.c.l.b16 %v6724
          %v6988 = vunpack.c.l.b16 %v6725
          %v6989 = vunpack.c.l.b16 %v6726
          %v6990 = vunpack.c.l.b16 %v6727
          %v6991 = vunpack.c.l.b16 %v6728
          %v6992 = vunpack.c.l.b16 %v6729
          %v6993 = vunpack.c.l.b16 %v6730
          %v6994 = vunpack.c.l.b16 %v6731
          %v6995 = vunpack.c.l.b16 %v6732
          %v6996 = vunpack.c.l.b16 %v6733
          %v6997 = vunpack.c.l.b16 %v6734
          %v6998 = vunpack.c.l.b16 %v6735
          %v6999 = vunpack.c.l.b16 %v6736
          %v7000 = vunpack.c.l.b16 %v6737
          %v7001 = vunpack.c.l.b16 %v6738
          %v7002 = vunpack.c.l.b16 %v6739
          %v7003 = vunpack.c.l.b16 %v6740
          %v7004 = vunpack.c.l.b16 %v6741
          %v7005 = vunpack.c.l.b16 %v6742
          %v7006 = vunpack.c.l.b16 %v6743
          %v7007 = vunpack.c.l.b16 %v6744
          %v7008 = vunpack.c.l.b16 %v6745
          %v7009 = vunpack.c.l.b16 %v6746
          %v7010 = vunpack.c.l.b16 %v6747
          %v7011 = vunpack.c.l.b16 %v6748
          %v7012 = vunpack.c.l.b16 %v6749
          %v7013 = vunpack.c.l.b16 %v6750
          %v7014 = vunpack.c.l.b16 %v6751
          %v7015 = vunpack.c.l.b16 %v6752
          %v7016 = vunpack.c.l.b16 %v6753
          %v7017 = vunpack.c.l.b16 %v6754
          %v7018 = vunpack.c.l.b16 %v6755
          %v7019 = vunpack.c.l.b16 %v6756
          %v7020 = vunpack.c.l.b16 %v6757
          %v7021 = vunpack.c.l.b16 %v6758
          %v7022 = vunpack.c.l.b16 %v6759
          %v7023 = vunpack.c.l.b16 %v6760
          %v7024 = vunpack.c.l.b16 %v6761
          %v7025 = vunpack.c.l.b16 %v6762
          %v7026 = vunpack.c.l.b16 %v6763
          %v7027 = vunpack.c.l.b16 %v6764
          %v7028 = vunpack.c.l.b16 %v6765
          %v7029 = vunpack.c.l.b16 %v6766
          %v7030 = vunpack.c.l.b16 %v6767
          %v7031 = vunpack.c.l.b16 %v6768
          %v7032 = vunpack.c.l.b16 %v6769
          %v7033 = vunpack.c.l.b16 %v6770
          %v7034 = vunpack.c.l.b16 %v6771
          %v7035 = vunpack.c.l.b16 %v6772
          %v7036 = vunpack.c.l.b16 %v6773
          %v7037 = vunpack.c.l.b16 %v6774
          %v7038 = vunpack.c.l.b16 %v6775
          %v7039 = vunpack.c.l.b16 %v6776
          %v7040 = vunpack.c.l.b16 %v6777
          %v7041 = vunpack.c.l.b16 %v6778
          %v7042 = vunpack.c.l.b16 %v6779
          %v7043 = vunpack.c.l.b16 %v6780
          %v7044 = vunpack.c.l.b16 %v6781
          %v7045 = vunpack.c.l.b16 %v6782
          %v7046 = vpack.c.b16 %v6919, %v6918
          %v7047 = vpack.c.b16 %v6921, %v6920
          %v7048 = vpack.c.b16 %v6923, %v6922
          %v7049 = vpack.c.b16 %v6925, %v6924
          %v7050 = vpack.c.b16 %v6927, %v6926
          %v7051 = vpack.c.b16 %v6929, %v6928
          %v7052 = vpack.c.b16 %v6931, %v6930
          %v7053 = vpack.c.b16 %v6933, %v6932
          %v7054 = vpack.c.b16 %v6935, %v6934
          %v7055 = vpack.c.b16 %v6937, %v6936
          %v7056 = vpack.c.b16 %v6939, %v6938
          %v7057 = vpack.c.b16 %v6941, %v6940
          %v7058 = vpack.c.b16 %v6943, %v6942
          %v7059 = vpack.c.b16 %v6945, %v6944
          %v7060 = vpack.c.b16 %v6947, %v6946
          %v7061 = vpack.c.b16 %v6949, %v6948
          %v7062 = vpack.c.b16 %v6951, %v6950
          %v7063 = vpack.c.b16 %v6953, %v6952
          %v7064 = vpack.c.b16 %v6955, %v6954
          %v7065 = vpack.c.b16 %v6957, %v6956
          %v7066 = vpack.c.b16 %v6959, %v6958
          %v7067 = vpack.c.b16 %v6961, %v6960
          %v7068 = vpack.c.b16 %v6963, %v6962
          %v7069 = vpack.c.b16 %v6965, %v6964
          %v7070 = vpack.c.b16 %v6967, %v6966
          %v7071 = vpack.c.b16 %v6969, %v6968
          %v7072 = vpack.c.b16 %v6971, %v6970
          %v7073 = vpack.c.b16 %v6973, %v6972
          %v7074 = vpack.c.b16 %v6975, %v6974
          %v7075 = vpack.c.b16 %v6977, %v6976
          %v7076 = vpack.c.b16 %v6979, %v6978
          %v7077 = vpack.c.b16 %v6981, %v6980
          %v7078 = vpack.c.b16 %v6983, %v6982
          %v7079 = vpack.c.b16 %v6985, %v6984
          %v7080 = vpack.c.b16 %v6987, %v6986
          %v7081 = vpack.c.b16 %v6989, %v6988
          %v7082 = vpack.c.b16 %v6991, %v6990
          %v7083 = vpack.c.b16 %v6993, %v6992
          %v7084 = vpack.c.b16 %v6995, %v6994
          %v7085 = vpack.c.b16 %v6997, %v6996
          %v7086 = vpack.c.b16 %v6999, %v6998
          %v7087 = vpack.c.b16 %v7001, %v7000
          %v7088 = vpack.c.b16 %v7003, %v7002
          %v7089 = vpack.c.b16 %v7005, %v7004
          %v7090 = vpack.c.b16 %v7007, %v7006
          %v7091 = vpack.c.b16 %v7009, %v7008
          %v7092 = vpack.c.b16 %v7011, %v7010
          %v7093 = vpack.c.b16 %v7013, %v7012
          %v7094 = vpack.c.b16 %v7015, %v7014
          %v7095 = vpack.c.b16 %v7017, %v7016
          %v7096 = vpack.c.b16 %v7019, %v7018
          %v7097 = vpack.c.b16 %v7021, %v7020
          %v7098 = vpack.c.b16 %v7023, %v7022
          %v7099 = vpack.c.b16 %v7025, %v7024
          %v7100 = vpack.c.b16 %v7027, %v7026
          %v7101 = vpack.c.b16 %v7029, %v7028
          %v7102 = vpack.c.b16 %v7031, %v7030
          %v7103 = vpack.c.b16 %v7033, %v7032
          %v7104 = vpack.c.b16 %v7035, %v7034
          %v7105 = vpack.c.b16 %v7037, %v7036
          %v7106 = vpack.c.b16 %v7039, %v7038
          %v7107 = vpack.c.b16 %v7041, %v7040
          %v7108 = vpack.c.b16 %v7043, %v7042
          %v7109 = vpack.c.b16 %v7045, %v7044
          %7174 = vmatprep.subr.bf16.mxu0 0
          %7175 = vmatpush1.bf16.msra.mxu0 %v7053
          %7176 = vmatprep.subr.bf16.mxu0 0
          %7177 = vmatpush1.bf16.msra.mxu0 %v7052
          %7178 = vmatprep.subr.bf16.mxu0 0
          %7179 = vmatpush1.bf16.msra.mxu0 %v7051
          %7180 = vmatprep.subr.bf16.mxu0 0
          %7181 = vmatpush1.bf16.msra.mxu0 %v7050
          %7182 = vmatprep.subr.bf16.mxu0 0
          %7183 = vmatpush1.bf16.msra.mxu0 %v7049
          %7184 = vmatprep.subr.bf16.mxu0 0
          %7185 = vmatpush1.bf16.msra.mxu0 %v7048
          %7186 = vmatprep.subr.bf16.mxu0 0
          %7187 = vmatpush1.bf16.msra.mxu0 %v7047
          %7188 = vmatprep.subr.bf16.mxu0 0
          %7189 = vmatpush1.bf16.msra.mxu0 %v7046
          %7190 = vmatprep.subr.bf16.mxu0 0
          %7191 = vmatpush2.bf16.msra.mxu0 %v7061
          %7192 = vmatprep.subr.bf16.mxu0 0
          %7193 = vmatpush2.bf16.msra.mxu0 %v7060
          %7194 = vmatprep.subr.bf16.mxu0 0
          %7195 = vmatpush2.bf16.msra.mxu0 %v7059
          %7196 = vmatprep.subr.bf16.mxu0 0
          %7197 = vmatpush2.bf16.msra.mxu0 %v7058
          %7198 = vmatprep.subr.bf16.mxu0 0
          %7199 = vmatpush2.bf16.msra.mxu0 %v7057
          %7200 = vmatprep.subr.bf16.mxu0 0
          %7201 = vmatpush2.bf16.msra.mxu0 %v7056
          %7202 = vmatprep.subr.bf16.mxu0 0
          %7203 = vmatpush2.bf16.msra.mxu0 %v7055
          %7204 = vmatprep.subr.bf16.mxu0 0
          %7205 = vmatpush2.bf16.msra.mxu0 %v7054
          %7206 = vmatprep.mubr.bf16.mxu0 %v6648
          %7207 = vmatmul.mubr.bf16.gmra.mxu0 %v6647
          %v7208 = vpop.f32.mrf.mxu0
          %v7209 = vadd.f32 %v6788, %v7208
          %v7210 = vpop.f32.mrf.mxu0
          %v7211 = vpop.f32.mrf.mxu0
          %v7212 = vadd.f32 %v6788, %v7211
          %v7213 = vpop.f32.mrf.mxu0
          %7214 = vdwg.mxu0
          %7215 = vmatprep.subr.bf16.mxu0 0
          %7216 = vmatpush1.bf16.msra.mxu0 %v7069
          %7217 = vmatprep.subr.bf16.mxu0 0
          %7218 = vmatpush1.bf16.msra.mxu0 %v7068
          %7219 = vmatprep.subr.bf16.mxu0 0
          %7220 = vmatpush1.bf16.msra.mxu0 %v7067
          %7221 = vmatprep.subr.bf16.mxu0 0
          %7222 = vmatpush1.bf16.msra.mxu0 %v7066
          %7223 = vmatprep.subr.bf16.mxu0 0
          %7224 = vmatpush1.bf16.msra.mxu0 %v7065
          %7225 = vmatprep.subr.bf16.mxu0 0
          %7226 = vmatpush1.bf16.msra.mxu0 %v7064
          %7227 = vmatprep.subr.bf16.mxu0 0
          %7228 = vmatpush1.bf16.msra.mxu0 %v7063
          %7229 = vmatprep.subr.bf16.mxu0 0
          %7230 = vmatpush1.bf16.msra.mxu0 %v7062
          %7231 = vmatprep.subr.bf16.mxu0 0
          %7232 = vmatpush2.bf16.msra.mxu0 %v7077
          %7233 = vmatprep.subr.bf16.mxu0 0
          %7234 = vmatpush2.bf16.msra.mxu0 %v7076
          %7235 = vmatprep.subr.bf16.mxu0 0
          %7236 = vmatpush2.bf16.msra.mxu0 %v7075
          %7237 = vmatprep.subr.bf16.mxu0 0
          %7238 = vmatpush2.bf16.msra.mxu0 %v7074
          %7239 = vmatprep.subr.bf16.mxu0 0
          %7240 = vmatpush2.bf16.msra.mxu0 %v7073
          %7241 = vmatprep.subr.bf16.mxu0 0
          %7242 = vmatpush2.bf16.msra.mxu0 %v7072
          %7243 = vmatprep.subr.bf16.mxu0 0
          %7244 = vmatpush2.bf16.msra.mxu0 %v7071
          %7245 = vmatprep.subr.bf16.mxu0 0
          %7246 = vmatpush2.bf16.msra.mxu0 %v7070
          %7247 = vmatprep.mubr.bf16.mxu0 %v6650
          %7248 = vmatmul.mubr.bf16.gmra.mxu0 %v6649
          %v7249 = vpop.f32.mrf.mxu0
          %v7250 = vadd.f32 %v7209, %v7249
          %v7251 = vpop.f32.mrf.mxu0
          %v7252 = vpop.f32.mrf.mxu0
          %v7253 = vadd.f32 %v7212, %v7252
          %v7254 = vpop.f32.mrf.mxu0
          %7255 = vdwg.mxu0
          %7256 = vmatprep.subr.bf16.mxu0 0
          %7257 = vmatpush1.bf16.msra.mxu0 %v7085
          %7258 = vmatprep.subr.bf16.mxu0 0
          %7259 = vmatpush1.bf16.msra.mxu0 %v7084
          %7260 = vmatprep.subr.bf16.mxu0 0
          %7261 = vmatpush1.bf16.msra.mxu0 %v7083
          %7262 = vmatprep.subr.bf16.mxu0 0
          %7263 = vmatpush1.bf16.msra.mxu0 %v7082
          %7264 = vmatprep.subr.bf16.mxu0 0
          %7265 = vmatpush1.bf16.msra.mxu0 %v7081
          %7266 = vmatprep.subr.bf16.mxu0 0
          %7267 = vmatpush1.bf16.msra.mxu0 %v7080
          %7268 = vmatprep.subr.bf16.mxu0 0
          %7269 = vmatpush1.bf16.msra.mxu0 %v7079
          %7270 = vmatprep.subr.bf16.mxu0 0
          %7271 = vmatpush1.bf16.msra.mxu0 %v7078
          %7272 = vmatprep.subr.bf16.mxu0 0
          %7273 = vmatpush2.bf16.msra.mxu0 %v7093
          %7274 = vmatprep.subr.bf16.mxu0 0
          %7275 = vmatpush2.bf16.msra.mxu0 %v7092
          %7276 = vmatprep.subr.bf16.mxu0 0
          %7277 = vmatpush2.bf16.msra.mxu0 %v7091
          %7278 = vmatprep.subr.bf16.mxu0 0
          %7279 = vmatpush2.bf16.msra.mxu0 %v7090
          %7280 = vmatprep.subr.bf16.mxu0 0
          %7281 = vmatpush2.bf16.msra.mxu0 %v7089
          %7282 = vmatprep.subr.bf16.mxu0 0
          %7283 = vmatpush2.bf16.msra.mxu0 %v7088
          %7284 = vmatprep.subr.bf16.mxu0 0
          %7285 = vmatpush2.bf16.msra.mxu0 %v7087
          %7286 = vmatprep.subr.bf16.mxu0 0
          %7287 = vmatpush2.bf16.msra.mxu0 %v7086
          %7288 = vmatprep.mubr.bf16.mxu0 %v6652
          %7289 = vmatmul.mubr.bf16.gmra.mxu0 %v6651
          %v7290 = vpop.f32.mrf.mxu0
          %v7291 = vadd.f32 %v7250, %v7290
          %v7292 = vpop.f32.mrf.mxu0
          %v7293 = vpop.f32.mrf.mxu0
          %v7294 = vadd.f32 %v7253, %v7293
          %v7295 = vpop.f32.mrf.mxu0
          %7296 = vdwg.mxu0
          %7297 = vmatprep.subr.bf16.mxu0 0
          %7298 = vmatpush1.bf16.msra.mxu0 %v7101
          %7299 = vmatprep.subr.bf16.mxu0 0
          %7300 = vmatpush1.bf16.msra.mxu0 %v7100
          %7301 = vmatprep.subr.bf16.mxu0 0
          %7302 = vmatpush1.bf16.msra.mxu0 %v7099
          %7303 = vmatprep.subr.bf16.mxu0 0
          %7304 = vmatpush1.bf16.msra.mxu0 %v7098
          %7305 = vmatprep.subr.bf16.mxu0 0
          %7306 = vmatpush1.bf16.msra.mxu0 %v7097
          %7307 = vmatprep.subr.bf16.mxu0 0
          %7308 = vmatpush1.bf16.msra.mxu0 %v7096
          %7309 = vmatprep.subr.bf16.mxu0 0
          %7310 = vmatpush1.bf16.msra.mxu0 %v7095
          %7311 = vmatprep.subr.bf16.mxu0 0
          %7312 = vmatpush1.bf16.msra.mxu0 %v7094
          %7313 = vmatprep.subr.bf16.mxu0 0
          %7314 = vmatpush2.bf16.msra.mxu0 %v7109
          %7315 = vmatprep.subr.bf16.mxu0 0
          %7316 = vmatpush2.bf16.msra.mxu0 %v7108
          %7317 = vmatprep.subr.bf16.mxu0 0
          %7318 = vmatpush2.bf16.msra.mxu0 %v7107
          %7319 = vmatprep.subr.bf16.mxu0 0
          %7320 = vmatpush2.bf16.msra.mxu0 %v7106
          %7321 = vmatprep.subr.bf16.mxu0 0
          %7322 = vmatpush2.bf16.msra.mxu0 %v7105
          %7323 = vmatprep.subr.bf16.mxu0 0
          %7324 = vmatpush2.bf16.msra.mxu0 %v7104
          %7325 = vmatprep.subr.bf16.mxu0 0
          %7326 = vmatpush2.bf16.msra.mxu0 %v7103
          %7327 = vmatprep.subr.bf16.mxu0 0
          %7328 = vmatpush2.bf16.msra.mxu0 %v7102
          %7329 = vmatprep.mubr.bf16.mxu0 %v6654
          %7330 = vmatmul.mubr.bf16.gmra.mxu0 %v6653
          %v7331 = vpop.f32.mrf.mxu0
          %v7332 = vadd.f32 %v7291, %v7331
          %v7333 = vpop.f32.mrf.mxu0
          %v7334 = vpop.f32.mrf.mxu0
          %v7335 = vadd.f32 %v7294, %v7334
          %v7336 = vpop.f32.mrf.mxu0
          %7337 = vdwg.mxu0
          %7338 = vst [vmem:[%s403] sm:$0xff] %v7332
          %7339 = vst [vmem:[%s403 + $0x8] sm:$0xff] %v7335
        $region84: #{model_forward.1} parent=47 // pred_fallthru
          _
        %s7340 = smul.u32 2, %s28
        %p7341 = scmp.lt.s32.totalorder %s7340, 1
        %s7342 = scalar_select %p7341, %s7340, 1
        %s7343 = smul.addr %s7342, 8
        %s7344 = scalar_lea.vmem %s7, %s7343
        // Predicated region
        $region85: #{model_forward.1} parent=47 // pred_check
          %p7345 = pneg %p211
        $region86: #{model_forward.1} parent=47 // pred_check_branch
          %7347 = sbr.rel (%p7345) target = $region88
        $region87: #{model_forward.1} parent=47 // pred_region
          %s7348 = smul.u32 2, %s28
        $region88: #{model_forward.1} parent=47 // pred_fallthru
          _
        // Predicated region
        $region89: #{model_forward.1} parent=47 // pred_check
          %p7349 = pneg %p211
        $region90: #{model_forward.1} parent=47 // pred_check_branch
          %7351 = sbr.rel (%p7349) target = $region92
        $region91: #{model_forward.1} parent=47 // pred_region
          %s7352 = smul.u32 2, %s28
          %p7353 = scmp.lt.s32.totalorder %s7352, 1
          %s7354 = scalar_select %p7353, %s7352, 1
          %s7355 = smul.addr %s7354, 8
          %s7356 = scalar_lea.vmem %s7, %s7355
        $region92: #{model_forward.1} parent=47 // pred_fallthru
          _
      $region48: #{model_forward.1} parent=5 // pred_fallthru
        _
      %p7357 = scmp.le.s32.totalorder 2, %s19
      // Predicated region
      $region93: #{model_forward.1} parent=5 // pred_check
        %p7358 = pneg %p7357
      $region94: #{model_forward.1} parent=5 // pred_check_branch
        %7360 = sbr.rel (%p7358) target = $region96
      $region95: #{model_forward.1} parent=5 // pred_region
        %s7361 = ssub.s32 %s19, 2
      $region96: #{model_forward.1} parent=5 // pred_fallthru
        _
    $region6: #{model_forward.1} parent=1 // loop_footer
      %s23 = sadd.s32 1, %s19
    $region7: #{model_forward.1} parent=1 // loop_footer_branch
      %18 = sbr.rel target = $region3
    $region8: #{model_forward.1} parent=1 // loop_exit
      _
    %7362 = vsyncpa [#allocation5], 1
    %s7363 = scalar_lea.sflag [#allocation5], 1
    %7364 = vsyncpa %s7363, 1
    %7365 = vsyncpa [#allocation7], 1
    %s7366 = scalar_lea.sflag [#allocation7], 1
    %7367 = vsyncpa %s7366, 1
    %7368 = vsyncpa [#allocation10], 1
    %7369 = vsyncpa [#allocation13], 1

</llo_original>
